<compile_context>
chip_gen: v6e
topology: v6e:2x2x1
jax: 0.10.0
libtpu: 0.0.40
codegen_flags: <defaults>
</compile_context>

<pallas_src>
import functools

import jax
import jax.numpy as jnp
from jax.experimental import pallas as pl
from jax.experimental.pallas import tpu as pltpu

LAYERS = 4          # `layers = 4` in the reference module
MAX_LEN = 256       # unused (pos embedding never applied in forward)
NEG_INF = -1e30


def _encoder_kernel(x_ref, wattn_ref, wffn_ref, vec_ref, out_ref, *, seq_len):
    """All encoder layers + output head for Bt packed sequences (VMEM resident).

    x_ref     : (R, D)  bf16, R = Bt * S packed token embeddings
    wattn_ref : (L, 3, D, D) bf16, per-layer [Wq*1/sqrt(D), Wk, Wv]
    wffn_ref  : (L, 2, D, D) bf16, per-layer [W1, W2]
    vec_ref   : (2L+2, D) f32: rows 0..L-1 = b1, L..2L-1 = b2,
                row 2L = wout (as a row), row 2L+1 col 0 = bout
    out_ref   : (1, R_PAD) f32, sigmoid scores lane-major (first R lanes live)
    """
    R, D = x_ref.shape
    S = seq_len
    bt = R // S
    R_PAD = out_ref.shape[-1]

    h = x_ref[...].astype(jnp.float32)                 # (R, D) residual stream, f32

    # Additive causal mask (built once per grid step): j <= i -> 0 else -inf.
    row = jax.lax.broadcasted_iota(jnp.int32, (S, S), 0)
    col = jax.lax.broadcasted_iota(jnp.int32, (S, S), 1)
    mask_add = jnp.where(col <= row, 0.0, NEG_INF).astype(jnp.float32)

    for i in range(LAYERS):                            # static unroll (LAYERS = 4)
        hb = h.astype(jnp.bfloat16)

        # --- masked self-attention: Q/K/V via 3 lane-aligned (R,D)@(D,D) dots
        # (1/sqrt(D) pre-folded into Wq at init).
        q = jnp.dot(hb, wattn_ref[i, 0], preferred_element_type=jnp.float32)
        k = jnp.dot(hb, wattn_ref[i, 1], preferred_element_type=jnp.float32)
        v = jnp.dot(hb, wattn_ref[i, 2], preferred_element_type=jnp.float32)

        # f32 reshapes (sublane-aligned when S % 8 == 0); bf16 casts after.
        q3 = q.reshape(bt, S, D).astype(jnp.bfloat16)
        k3 = k.reshape(bt, S, D).astype(jnp.bfloat16)
        v3 = v.reshape(bt, S, D).astype(jnp.bfloat16)

        # scores: batched contraction over feature dim (no k.T / vxpose)
        s = jax.lax.dot_general(q3, k3, (((2,), (2,)), ((0,), (0,))),
                                preferred_element_type=jnp.float32)   # (bt,S,S)
        s = s + mask_add
        m = jnp.max(s, axis=-1, keepdims=True)
        p = jnp.exp(s - m)
        denom = jnp.sum(p, axis=-1, keepdims=True)
        p = p * pl.reciprocal(denom, approx=True)          # EUP vrcp

        h1_3 = jax.lax.dot_general(p.astype(jnp.bfloat16), v3,
                                   (((2,), (1,)), ((0,), (0,))),
                                   preferred_element_type=jnp.float32)  # (bt,S,D)
        h1 = h1_3.reshape(R, D)

        # --- FFN with ReLU + residual from attention output (matches reference)
        b1 = vec_ref[i:i + 1, :]                           # (1, D)
        b2 = vec_ref[LAYERS + i:LAYERS + i + 1, :]         # (1, D)
        h2 = jnp.dot(h1.astype(jnp.bfloat16), wffn_ref[i, 0],
                     preferred_element_type=jnp.float32) + b1
        h3 = jnp.maximum(h2, 0.0)
        h4 = jnp.dot(h3.astype(jnp.bfloat16), wffn_ref[i, 1],
                     preferred_element_type=jnp.float32) + b2
        h = h4 + h1

    # --- output head: Linear(dims, 1) + sigmoid as one row matmul -> (1, R)
    wout_row = vec_ref[2 * LAYERS:2 * LAYERS + 1, :]       # (1, D) f32
    bout = vec_ref[2 * LAYERS + 1:2 * LAYERS + 2, 0:1]     # (1, 1)
    h5 = jax.lax.dot_general(wout_row, h, (((1,), (1,)), ((), ())),
                             preferred_element_type=jnp.float32) + bout  # (1, R)
    sig = jax.nn.sigmoid(h5)                               # (1, R) f32

    if R == R_PAD:
        out_ref[...] = sig                                 # fully lane-dense vst
    else:
        out_ref[...] = jnp.zeros((1, R_PAD), jnp.float32)  # clear pad lanes
        out_ref[:, :R] = sig                               # single small masked store


def _choose_block_batch(B, S, max_rows=512):
    """Largest divisor Bt of B such that:
         * the grid keeps >= 2 steps when B >= 2 (v7x: keep both TCs busy),
         * Bt*S is sublane-aligned (or the block covers the full batch),
         * Bt*S <= max_rows (bound per-step vreg / VMEM pressure)."""
    best = 1
    for d in range(1, B + 1):
        if B % d != 0:
            continue
        if B >= 2 and B // d < 2:
            continue
        if (d * S) % 8 != 0 and d != B:
            continue
        if d * S > max_rows:
            continue
        best = d
    return best


@jax.jit
def classifier_encoder(words, params):
    """words: (B, S) int32 token ids (CLS at column 0).  Returns (B, S, 1)."""
    emb = params["emb"]                              # (vocab, D) — glue: gather
    x = jnp.take(emb, words, axis=0)                 # (B, S, D)
    B, S, D = x.shape

    bt = _choose_block_batch(B, S)                   # sequences packed per step
    steps = B // bt
    R = bt * S                                       # rows per grid step
    r_pad = ((R + 127) // 128) * 128                 # lane-padded output row

    x2 = x.reshape(B * S, D).astype(jnp.bfloat16)    # packed token-major slab

    w_attn = params["w_attn"]                        # (L, 3, D, D) bf16
    w_ffn = params["w_ffn"]                          # (L, 2, D, D) bf16
    vec = params["vec"]                              # (2L+2, D)    f32

    kernel = functools.partial(_encoder_kernel, seq_len=S)

    out = pl.pallas_call(
        kernel,
        out_shape=jax.ShapeDtypeStruct((steps, 1, r_pad), jnp.float32),
        grid=(steps,),
        in_specs=[
            pl.BlockSpec((R, D), lambda b: (b, 0)),                   # packed seqs
            pl.BlockSpec((LAYERS, 3, D, D), lambda b: (0, 0, 0, 0)),  # resident
            pl.BlockSpec((LAYERS, 2, D, D), lambda b: (0, 0, 0, 0)),  # resident
            pl.BlockSpec((2 * LAYERS + 2, D), lambda b: (0, 0)),      # resident
        ],
        out_specs=pl.BlockSpec((None, 1, r_pad), lambda b: (b, 0, 0)),
        compiler_params=pltpu.CompilerParams(
            dimension_semantics=("parallel",)),      # v7x: shard steps over 2 TCs
    )(x2, w_attn, w_ffn, vec)

    # (steps, 1, r_pad) -> first R lanes per step -> (B, S, 1)
    return out[:, 0, :R].reshape(B, S, 1)


def init_params(key, vocab_size, dims):
    """Deterministic synthetic parameters, packed for the kernel."""
    ks = jax.random.split(key, 10)
    scale = 0.05
    n = lambda k, shape: (scale * jax.random.normal(k, shape)).astype(jnp.float32)

    wq = n(ks[1], (LAYERS, dims, dims)) * (float(dims) ** -0.5)  # fold 1/sqrt(D)
    wk = n(ks[2], (LAYERS, dims, dims))
    wv = n(ks[3], (LAYERS, dims, dims))
    w1 = n(ks[4], (LAYERS, dims, dims))
    b1 = n(ks[5], (LAYERS, dims))
    w2 = n(ks[6], (LAYERS, dims, dims))
    b2 = n(ks[7], (LAYERS, dims))
    wout = n(ks[8], (dims,))
    bout = n(ks[9], (1,))

    vec = jnp.concatenate(
        [b1, b2, wout[None, :], jnp.pad(bout, (0, dims - 1))[None, :]], axis=0
    ).astype(jnp.float32)                                        # (2L+2, D)

    return {
        "emb": n(ks[0], (vocab_size, dims)),                     # f32 (gather)
        "w_attn": jnp.stack([wq, wk, wv], axis=1).astype(jnp.bfloat16),  # (L,3,D,D)
        "w_ffn": jnp.stack([w1, w2], axis=1).astype(jnp.bfloat16),       # (L,2,D,D)
        "vec": vec,                                              # (2L+2, D)
    }


if __name__ == "__main__":
    key = jax.random.PRNGKey(0)
    k_param, k_words = jax.random.split(key)

    # seq includes the CLS token; batch=8 exercises packing (Bt=4) + 2 grid steps.
    vocab_size, dims, seq, batch = 50, 32, 8, 8

    params = init_params(k_param, vocab_size, dims)

    cls_col = jnp.ones((batch, 1), dtype=jnp.int32)  # CLS token id = 1
    body = jax.random.randint(k_words, (batch, seq - 1), 2, vocab_size,
                              dtype=jnp.int32)
    words = jnp.concatenate([cls_col, body], axis=1)  # (B, S)

    res = classifier_encoder(words, params)           # (B, S, 1); col 0 = CLS
    jax.block_until_ready(res)

    assert res.shape == (batch, seq, 1)
    assert bool(jnp.all((res >= 0.0) & (res <= 1.0)))
    print("KERNEL_OK")
</pallas_src>

<mosaic_0001>
module attributes {stable_mosaic.version = 11 : i64} {
  func.func @_encoder_kernel(%arg0: i32, %arg1: memref<32x32xbf16, #tpu.memory_space<vmem>>, %arg2: memref<4x3x32x32xbf16, #tpu.memory_space<vmem>>, %arg3: memref<4x2x32x32xbf16, #tpu.memory_space<vmem>>, %arg4: memref<10x32xf32, #tpu.memory_space<vmem>>, %arg5: memref<1x1x128xf32, #tpu.memory_space<vmem>>) attributes {dimension_semantics = [#tpu.dimension_semantics<parallel>], iteration_bounds = array<i64: 2>, scalar_prefetch = 0 : i64, scratch_operands = 0 : i64, tpu.core_type = #tpu.core_type<tc>, window_params = [{transform_indices = @transform_0, window_bounds = array<i64: 32, 32>}, {pipeline_mode = #tpu.pipeline_mode<synchronous>, transform_indices = @transform_1, window_bounds = array<i64: 4, 3, 32, 32>}, {pipeline_mode = #tpu.pipeline_mode<synchronous>, transform_indices = @transform_2, window_bounds = array<i64: 4, 2, 32, 32>}, {pipeline_mode = #tpu.pipeline_mode<synchronous>, transform_indices = @transform_3, window_bounds = array<i64: 10, 32>}, {transform_indices = @transform_4, window_bounds = array<i64: 1, 1, 128>}]} {
    %c0 = arith.constant 0 : index
    %c0_0 = arith.constant 0 : index
    %0 = vector.load %arg1[%c0, %c0_0] : memref<32x32xbf16, #tpu.memory_space<vmem>>, vector<32x32xbf16>
    %1 = arith.extf %0 : vector<32x32xbf16> to vector<32x32xf32>
    %2 = tpu.iota {dimensions = array<i32: 0>} : vector<8x8xi32>
    %3 = tpu.iota {dimensions = array<i32: 1>} : vector<8x8xi32>
    %4 = arith.cmpi sle, %3, %2 : vector<8x8xi32>
    %cst = arith.constant 0.000000e+00 : f32
    %cst_1 = arith.constant -1.000000e+30 : f32
    %5 = vector.broadcast %cst : f32 to vector<8x8xf32>
    %6 = vector.broadcast %cst_1 : f32 to vector<8x8xf32>
    %7 = arith.select %4, %5, %6 : vector<8x8xi1>, vector<8x8xf32>
    %8 = arith.truncf %1 : vector<32x32xf32> to vector<32x32xbf16>
    %c0_2 = arith.constant 0 : index
    %c0_3 = arith.constant 0 : index
    %c0_4 = arith.constant 0 : index
    %c0_5 = arith.constant 0 : index
    %9 = vector.load %arg2[%c0_2, %c0_3, %c0_4, %c0_5] : memref<4x3x32x32xbf16, #tpu.memory_space<vmem>>, vector<1x1x32x32xbf16>
    %10 = vector.shape_cast %9 : vector<1x1x32x32xbf16> to vector<32x32xbf16>
    %cst_6 = arith.constant dense<0.000000e+00> : vector<32x32xf32>
    %11 = tpu.matmul %8, %10, %cst_6 {dimension_numbers = #tpu.dot_dimension_numbers<[1], [0], [0], [1], [0, 0, 1, 1], [], []>} : vector<32x32xbf16>, vector<32x32xbf16>, vector<32x32xf32> -> vector<32x32xf32>
    %c0_7 = arith.constant 0 : index
    %c1 = arith.constant 1 : index
    %c0_8 = arith.constant 0 : index
    %c0_9 = arith.constant 0 : index
    %12 = vector.load %arg2[%c0_7, %c1, %c0_8, %c0_9] : memref<4x3x32x32xbf16, #tpu.memory_space<vmem>>, vector<1x1x32x32xbf16>
    %13 = vector.shape_cast %12 : vector<1x1x32x32xbf16> to vector<32x32xbf16>
    %cst_10 = arith.constant dense<0.000000e+00> : vector<32x32xf32>
    %14 = tpu.matmul %8, %13, %cst_10 {dimension_numbers = #tpu.dot_dimension_numbers<[1], [0], [0], [1], [0, 0, 1, 1], [], []>} : vector<32x32xbf16>, vector<32x32xbf16>, vector<32x32xf32> -> vector<32x32xf32>
    %c0_11 = arith.constant 0 : index
    %c2 = arith.constant 2 : index
    %c0_12 = arith.constant 0 : index
    %c0_13 = arith.constant 0 : index
    %15 = vector.load %arg2[%c0_11, %c2, %c0_12, %c0_13] : memref<4x3x32x32xbf16, #tpu.memory_space<vmem>>, vector<1x1x32x32xbf16>
    %16 = vector.shape_cast %15 : vector<1x1x32x32xbf16> to vector<32x32xbf16>
    %cst_14 = arith.constant dense<0.000000e+00> : vector<32x32xf32>
    %17 = tpu.matmul %8, %16, %cst_14 {dimension_numbers = #tpu.dot_dimension_numbers<[1], [0], [0], [1], [0, 0, 1, 1], [], []>} : vector<32x32xbf16>, vector<32x32xbf16>, vector<32x32xf32> -> vector<32x32xf32>
    %18 = vector.shape_cast %11 : vector<32x32xf32> to vector<4x8x32xf32>
    %19 = arith.truncf %18 : vector<4x8x32xf32> to vector<4x8x32xbf16>
    %20 = vector.shape_cast %14 : vector<32x32xf32> to vector<4x8x32xf32>
    %21 = arith.truncf %20 : vector<4x8x32xf32> to vector<4x8x32xbf16>
    %22 = vector.shape_cast %17 : vector<32x32xf32> to vector<4x8x32xf32>
    %23 = arith.truncf %22 : vector<4x8x32xf32> to vector<4x8x32xbf16>
    %cst_15 = arith.constant dense<0.000000e+00> : vector<4x8x8xf32>
    %24 = tpu.matmul %19, %21, %cst_15 {dimension_numbers = #tpu.dot_dimension_numbers<[2], [2], [1], [1], [0, 0, 0, 1, 1, 1], [0], [0]>} : vector<4x8x32xbf16>, vector<4x8x32xbf16>, vector<4x8x8xf32> -> vector<4x8x8xf32>
    %25 = vector.shape_cast %7 : vector<8x8xf32> to vector<1x8x8xf32>
    %26 = vector.broadcast %25 : vector<1x8x8xf32> to vector<4x8x8xf32>
    %27 = arith.addf %24, %26 : vector<4x8x8xf32>
    %cst_16 = arith.constant dense<0xFF800000> : vector<4x8xf32>
    %28 = vector.multi_reduction <maximumf>, %27, %cst_16 [2] : vector<4x8x8xf32> to vector<4x8xf32>
    %29 = vector.shape_cast %28 : vector<4x8xf32> to vector<4x8x1xf32>
    %30 = vector.broadcast %29 : vector<4x8x1xf32> to vector<4x8x8xf32>
    %31 = arith.subf %27, %30 : vector<4x8x8xf32>
    %32 = math.exp %31 : vector<4x8x8xf32>
    %cst_17 = arith.constant dense<0.000000e+00> : vector<4x8xf32>
    %33 = vector.multi_reduction <add>, %32, %cst_17 [2] : vector<4x8x8xf32> to vector<4x8xf32>
    %34 = vector.shape_cast %33 : vector<4x8xf32> to vector<4x8x1xf32>
    %35 = tpu.reciprocal %34 {approx = true} : vector<4x8x1xf32> -> vector<4x8x1xf32>
    %36 = vector.broadcast %35 : vector<4x8x1xf32> to vector<4x8x8xf32>
    %37 = arith.mulf %32, %36 : vector<4x8x8xf32>
    %38 = arith.truncf %37 : vector<4x8x8xf32> to vector<4x8x8xbf16>
    %cst_18 = arith.constant dense<0.000000e+00> : vector<4x8x32xf32>
    %39 = tpu.matmul %38, %23, %cst_18 {dimension_numbers = #tpu.dot_dimension_numbers<[2], [1], [1], [2], [0, 0, 0, 1, 1, 2], [0], [0]>} : vector<4x8x8xbf16>, vector<4x8x32xbf16>, vector<4x8x32xf32> -> vector<4x8x32xf32>
    %40 = vector.shape_cast %39 : vector<4x8x32xf32> to vector<32x32xf32>
    %c0_19 = arith.constant 0 : index
    %c0_20 = arith.constant 0 : index
    %41 = vector.load %arg4[%c0_19, %c0_20] : memref<10x32xf32, #tpu.memory_space<vmem>>, vector<1x32xf32>
    %c4 = arith.constant 4 : index
    %c0_21 = arith.constant 0 : index
    %42 = vector.load %arg4[%c4, %c0_21] : memref<10x32xf32, #tpu.memory_space<vmem>>, vector<1x32xf32>
    %43 = arith.truncf %40 : vector<32x32xf32> to vector<32x32xbf16>
    %c0_22 = arith.constant 0 : index
    %c0_23 = arith.constant 0 : index
    %c0_24 = arith.constant 0 : index
    %c0_25 = arith.constant 0 : index
    %44 = vector.load %arg3[%c0_22, %c0_23, %c0_24, %c0_25] : memref<4x2x32x32xbf16, #tpu.memory_space<vmem>>, vector<1x1x32x32xbf16>
    %45 = vector.shape_cast %44 : vector<1x1x32x32xbf16> to vector<32x32xbf16>
    %cst_26 = arith.constant dense<0.000000e+00> : vector<32x32xf32>
    %46 = tpu.matmul %43, %45, %cst_26 {dimension_numbers = #tpu.dot_dimension_numbers<[1], [0], [0], [1], [0, 0, 1, 1], [], []>} : vector<32x32xbf16>, vector<32x32xbf16>, vector<32x32xf32> -> vector<32x32xf32>
    %47 = vector.broadcast %41 : vector<1x32xf32> to vector<32x32xf32>
    %48 = arith.addf %46, %47 : vector<32x32xf32>
    %cst_27 = arith.constant 0.000000e+00 : f32
    %49 = vector.broadcast %cst_27 : f32 to vector<32x32xf32>
    %50 = arith.maximumf %48, %49 : vector<32x32xf32>
    %51 = arith.truncf %50 : vector<32x32xf32> to vector<32x32xbf16>
    %c0_28 = arith.constant 0 : index
    %c1_29 = arith.constant 1 : index
    %c0_30 = arith.constant 0 : index
    %c0_31 = arith.constant 0 : index
    %52 = vector.load %arg3[%c0_28, %c1_29, %c0_30, %c0_31] : memref<4x2x32x32xbf16, #tpu.memory_space<vmem>>, vector<1x1x32x32xbf16>
    %53 = vector.shape_cast %52 : vector<1x1x32x32xbf16> to vector<32x32xbf16>
    %cst_32 = arith.constant dense<0.000000e+00> : vector<32x32xf32>
    %54 = tpu.matmul %51, %53, %cst_32 {dimension_numbers = #tpu.dot_dimension_numbers<[1], [0], [0], [1], [0, 0, 1, 1], [], []>} : vector<32x32xbf16>, vector<32x32xbf16>, vector<32x32xf32> -> vector<32x32xf32>
    %55 = vector.broadcast %42 : vector<1x32xf32> to vector<32x32xf32>
    %56 = arith.addf %54, %55 : vector<32x32xf32>
    %57 = arith.addf %56, %40 : vector<32x32xf32>
    %58 = arith.truncf %57 : vector<32x32xf32> to vector<32x32xbf16>
    %c1_33 = arith.constant 1 : index
    %c0_34 = arith.constant 0 : index
    %c0_35 = arith.constant 0 : index
    %c0_36 = arith.constant 0 : index
    %59 = vector.load %arg2[%c1_33, %c0_34, %c0_35, %c0_36] : memref<4x3x32x32xbf16, #tpu.memory_space<vmem>>, vector<1x1x32x32xbf16>
    %60 = vector.shape_cast %59 : vector<1x1x32x32xbf16> to vector<32x32xbf16>
    %cst_37 = arith.constant dense<0.000000e+00> : vector<32x32xf32>
    %61 = tpu.matmul %58, %60, %cst_37 {dimension_numbers = #tpu.dot_dimension_numbers<[1], [0], [0], [1], [0, 0, 1, 1], [], []>} : vector<32x32xbf16>, vector<32x32xbf16>, vector<32x32xf32> -> vector<32x32xf32>
    %c1_38 = arith.constant 1 : index
    %c1_39 = arith.constant 1 : index
    %c0_40 = arith.constant 0 : index
    %c0_41 = arith.constant 0 : index
    %62 = vector.load %arg2[%c1_38, %c1_39, %c0_40, %c0_41] : memref<4x3x32x32xbf16, #tpu.memory_space<vmem>>, vector<1x1x32x32xbf16>
    %63 = vector.shape_cast %62 : vector<1x1x32x32xbf16> to vector<32x32xbf16>
    %cst_42 = arith.constant dense<0.000000e+00> : vector<32x32xf32>
    %64 = tpu.matmul %58, %63, %cst_42 {dimension_numbers = #tpu.dot_dimension_numbers<[1], [0], [0], [1], [0, 0, 1, 1], [], []>} : vector<32x32xbf16>, vector<32x32xbf16>, vector<32x32xf32> -> vector<32x32xf32>
    %c1_43 = arith.constant 1 : index
    %c2_44 = arith.constant 2 : index
    %c0_45 = arith.constant 0 : index
    %c0_46 = arith.constant 0 : index
    %65 = vector.load %arg2[%c1_43, %c2_44, %c0_45, %c0_46] : memref<4x3x32x32xbf16, #tpu.memory_space<vmem>>, vector<1x1x32x32xbf16>
    %66 = vector.shape_cast %65 : vector<1x1x32x32xbf16> to vector<32x32xbf16>
    %cst_47 = arith.constant dense<0.000000e+00> : vector<32x32xf32>
    %67 = tpu.matmul %58, %66, %cst_47 {dimension_numbers = #tpu.dot_dimension_numbers<[1], [0], [0], [1], [0, 0, 1, 1], [], []>} : vector<32x32xbf16>, vector<32x32xbf16>, vector<32x32xf32> -> vector<32x32xf32>
    %68 = vector.shape_cast %61 : vector<32x32xf32> to vector<4x8x32xf32>
    %69 = arith.truncf %68 : vector<4x8x32xf32> to vector<4x8x32xbf16>
    %70 = vector.shape_cast %64 : vector<32x32xf32> to vector<4x8x32xf32>
    %71 = arith.truncf %70 : vector<4x8x32xf32> to vector<4x8x32xbf16>
    %72 = vector.shape_cast %67 : vector<32x32xf32> to vector<4x8x32xf32>
    %73 = arith.truncf %72 : vector<4x8x32xf32> to vector<4x8x32xbf16>
    %cst_48 = arith.constant dense<0.000000e+00> : vector<4x8x8xf32>
    %74 = tpu.matmul %69, %71, %cst_48 {dimension_numbers = #tpu.dot_dimension_numbers<[2], [2], [1], [1], [0, 0, 0, 1, 1, 1], [0], [0]>} : vector<4x8x32xbf16>, vector<4x8x32xbf16>, vector<4x8x8xf32> -> vector<4x8x8xf32>
    %75 = vector.shape_cast %7 : vector<8x8xf32> to vector<1x8x8xf32>
    %76 = vector.broadcast %75 : vector<1x8x8xf32> to vector<4x8x8xf32>
    %77 = arith.addf %74, %76 : vector<4x8x8xf32>
    %cst_49 = arith.constant dense<0xFF800000> : vector<4x8xf32>
    %78 = vector.multi_reduction <maximumf>, %77, %cst_49 [2] : vector<4x8x8xf32> to vector<4x8xf32>
    %79 = vector.shape_cast %78 : vector<4x8xf32> to vector<4x8x1xf32>
    %80 = vector.broadcast %79 : vector<4x8x1xf32> to vector<4x8x8xf32>
    %81 = arith.subf %77, %80 : vector<4x8x8xf32>
    %82 = math.exp %81 : vector<4x8x8xf32>
    %cst_50 = arith.constant dense<0.000000e+00> : vector<4x8xf32>
    %83 = vector.multi_reduction <add>, %82, %cst_50 [2] : vector<4x8x8xf32> to vector<4x8xf32>
    %84 = vector.shape_cast %83 : vector<4x8xf32> to vector<4x8x1xf32>
    %85 = tpu.reciprocal %84 {approx = true} : vector<4x8x1xf32> -> vector<4x8x1xf32>
    %86 = vector.broadcast %85 : vector<4x8x1xf32> to vector<4x8x8xf32>
    %87 = arith.mulf %82, %86 : vector<4x8x8xf32>
    %88 = arith.truncf %87 : vector<4x8x8xf32> to vector<4x8x8xbf16>
    %cst_51 = arith.constant dense<0.000000e+00> : vector<4x8x32xf32>
    %89 = tpu.matmul %88, %73, %cst_51 {dimension_numbers = #tpu.dot_dimension_numbers<[2], [1], [1], [2], [0, 0, 0, 1, 1, 2], [0], [0]>} : vector<4x8x8xbf16>, vector<4x8x32xbf16>, vector<4x8x32xf32> -> vector<4x8x32xf32>
    %90 = vector.shape_cast %89 : vector<4x8x32xf32> to vector<32x32xf32>
    %c1_52 = arith.constant 1 : index
    %c0_53 = arith.constant 0 : index
    %91 = vector.load %arg4[%c1_52, %c0_53] : memref<10x32xf32, #tpu.memory_space<vmem>>, vector<1x32xf32>
    %c5 = arith.constant 5 : index
    %c0_54 = arith.constant 0 : index
    %92 = vector.load %arg4[%c5, %c0_54] : memref<10x32xf32, #tpu.memory_space<vmem>>, vector<1x32xf32>
    %93 = arith.truncf %90 : vector<32x32xf32> to vector<32x32xbf16>
    %c1_55 = arith.constant 1 : index
    %c0_56 = arith.constant 0 : index
    %c0_57 = arith.constant 0 : index
    %c0_58 = arith.constant 0 : index
    %94 = vector.load %arg3[%c1_55, %c0_56, %c0_57, %c0_58] : memref<4x2x32x32xbf16, #tpu.memory_space<vmem>>, vector<1x1x32x32xbf16>
    %95 = vector.shape_cast %94 : vector<1x1x32x32xbf16> to vector<32x32xbf16>
    %cst_59 = arith.constant dense<0.000000e+00> : vector<32x32xf32>
    %96 = tpu.matmul %93, %95, %cst_59 {dimension_numbers = #tpu.dot_dimension_numbers<[1], [0], [0], [1], [0, 0, 1, 1], [], []>} : vector<32x32xbf16>, vector<32x32xbf16>, vector<32x32xf32> -> vector<32x32xf32>
    %97 = vector.broadcast %91 : vector<1x32xf32> to vector<32x32xf32>
    %98 = arith.addf %96, %97 : vector<32x32xf32>
    %cst_60 = arith.constant 0.000000e+00 : f32
    %99 = vector.broadcast %cst_60 : f32 to vector<32x32xf32>
    %100 = arith.maximumf %98, %99 : vector<32x32xf32>
    %101 = arith.truncf %100 : vector<32x32xf32> to vector<32x32xbf16>
    %c1_61 = arith.constant 1 : index
    %c1_62 = arith.constant 1 : index
    %c0_63 = arith.constant 0 : index
    %c0_64 = arith.constant 0 : index
    %102 = vector.load %arg3[%c1_61, %c1_62, %c0_63, %c0_64] : memref<4x2x32x32xbf16, #tpu.memory_space<vmem>>, vector<1x1x32x32xbf16>
    %103 = vector.shape_cast %102 : vector<1x1x32x32xbf16> to vector<32x32xbf16>
    %cst_65 = arith.constant dense<0.000000e+00> : vector<32x32xf32>
    %104 = tpu.matmul %101, %103, %cst_65 {dimension_numbers = #tpu.dot_dimension_numbers<[1], [0], [0], [1], [0, 0, 1, 1], [], []>} : vector<32x32xbf16>, vector<32x32xbf16>, vector<32x32xf32> -> vector<32x32xf32>
    %105 = vector.broadcast %92 : vector<1x32xf32> to vector<32x32xf32>
    %106 = arith.addf %104, %105 : vector<32x32xf32>
    %107 = arith.addf %106, %90 : vector<32x32xf32>
    %108 = arith.truncf %107 : vector<32x32xf32> to vector<32x32xbf16>
    %c2_66 = arith.constant 2 : index
    %c0_67 = arith.constant 0 : index
    %c0_68 = arith.constant 0 : index
    %c0_69 = arith.constant 0 : index
    %109 = vector.load %arg2[%c2_66, %c0_67, %c0_68, %c0_69] : memref<4x3x32x32xbf16, #tpu.memory_space<vmem>>, vector<1x1x32x32xbf16>
    %110 = vector.shape_cast %109 : vector<1x1x32x32xbf16> to vector<32x32xbf16>
    %cst_70 = arith.constant dense<0.000000e+00> : vector<32x32xf32>
    %111 = tpu.matmul %108, %110, %cst_70 {dimension_numbers = #tpu.dot_dimension_numbers<[1], [0], [0], [1], [0, 0, 1, 1], [], []>} : vector<32x32xbf16>, vector<32x32xbf16>, vector<32x32xf32> -> vector<32x32xf32>
    %c2_71 = arith.constant 2 : index
    %c1_72 = arith.constant 1 : index
    %c0_73 = arith.constant 0 : index
    %c0_74 = arith.constant 0 : index
    %112 = vector.load %arg2[%c2_71, %c1_72, %c0_73, %c0_74] : memref<4x3x32x32xbf16, #tpu.memory_space<vmem>>, vector<1x1x32x32xbf16>
    %113 = vector.shape_cast %112 : vector<1x1x32x32xbf16> to vector<32x32xbf16>
    %cst_75 = arith.constant dense<0.000000e+00> : vector<32x32xf32>
    %114 = tpu.matmul %108, %113, %cst_75 {dimension_numbers = #tpu.dot_dimension_numbers<[1], [0], [0], [1], [0, 0, 1, 1], [], []>} : vector<32x32xbf16>, vector<32x32xbf16>, vector<32x32xf32> -> vector<32x32xf32>
    %c2_76 = arith.constant 2 : index
    %c2_77 = arith.constant 2 : index
    %c0_78 = arith.constant 0 : index
    %c0_79 = arith.constant 0 : index
    %115 = vector.load %arg2[%c2_76, %c2_77, %c0_78, %c0_79] : memref<4x3x32x32xbf16, #tpu.memory_space<vmem>>, vector<1x1x32x32xbf16>
    %116 = vector.shape_cast %115 : vector<1x1x32x32xbf16> to vector<32x32xbf16>
    %cst_80 = arith.constant dense<0.000000e+00> : vector<32x32xf32>
    %117 = tpu.matmul %108, %116, %cst_80 {dimension_numbers = #tpu.dot_dimension_numbers<[1], [0], [0], [1], [0, 0, 1, 1], [], []>} : vector<32x32xbf16>, vector<32x32xbf16>, vector<32x32xf32> -> vector<32x32xf32>
    %118 = vector.shape_cast %111 : vector<32x32xf32> to vector<4x8x32xf32>
    %119 = arith.truncf %118 : vector<4x8x32xf32> to vector<4x8x32xbf16>
    %120 = vector.shape_cast %114 : vector<32x32xf32> to vector<4x8x32xf32>
    %121 = arith.truncf %120 : vector<4x8x32xf32> to vector<4x8x32xbf16>
    %122 = vector.shape_cast %117 : vector<32x32xf32> to vector<4x8x32xf32>
    %123 = arith.truncf %122 : vector<4x8x32xf32> to vector<4x8x32xbf16>
    %cst_81 = arith.constant dense<0.000000e+00> : vector<4x8x8xf32>
    %124 = tpu.matmul %119, %121, %cst_81 {dimension_numbers = #tpu.dot_dimension_numbers<[2], [2], [1], [1], [0, 0, 0, 1, 1, 1], [0], [0]>} : vector<4x8x32xbf16>, vector<4x8x32xbf16>, vector<4x8x8xf32> -> vector<4x8x8xf32>
    %125 = vector.shape_cast %7 : vector<8x8xf32> to vector<1x8x8xf32>
    %126 = vector.broadcast %125 : vector<1x8x8xf32> to vector<4x8x8xf32>
    %127 = arith.addf %124, %126 : vector<4x8x8xf32>
    %cst_82 = arith.constant dense<0xFF800000> : vector<4x8xf32>
    %128 = vector.multi_reduction <maximumf>, %127, %cst_82 [2] : vector<4x8x8xf32> to vector<4x8xf32>
    %129 = vector.shape_cast %128 : vector<4x8xf32> to vector<4x8x1xf32>
    %130 = vector.broadcast %129 : vector<4x8x1xf32> to vector<4x8x8xf32>
    %131 = arith.subf %127, %130 : vector<4x8x8xf32>
    %132 = math.exp %131 : vector<4x8x8xf32>
    %cst_83 = arith.constant dense<0.000000e+00> : vector<4x8xf32>
    %133 = vector.multi_reduction <add>, %132, %cst_83 [2] : vector<4x8x8xf32> to vector<4x8xf32>
    %134 = vector.shape_cast %133 : vector<4x8xf32> to vector<4x8x1xf32>
    %135 = tpu.reciprocal %134 {approx = true} : vector<4x8x1xf32> -> vector<4x8x1xf32>
    %136 = vector.broadcast %135 : vector<4x8x1xf32> to vector<4x8x8xf32>
    %137 = arith.mulf %132, %136 : vector<4x8x8xf32>
    %138 = arith.truncf %137 : vector<4x8x8xf32> to vector<4x8x8xbf16>
    %cst_84 = arith.constant dense<0.000000e+00> : vector<4x8x32xf32>
    %139 = tpu.matmul %138, %123, %cst_84 {dimension_numbers = #tpu.dot_dimension_numbers<[2], [1], [1], [2], [0, 0, 0, 1, 1, 2], [0], [0]>} : vector<4x8x8xbf16>, vector<4x8x32xbf16>, vector<4x8x32xf32> -> vector<4x8x32xf32>
    %140 = vector.shape_cast %139 : vector<4x8x32xf32> to vector<32x32xf32>
    %c2_85 = arith.constant 2 : index
    %c0_86 = arith.constant 0 : index
    %141 = vector.load %arg4[%c2_85, %c0_86] : memref<10x32xf32, #tpu.memory_space<vmem>>, vector<1x32xf32>
    %c6 = arith.constant 6 : index
    %c0_87 = arith.constant 0 : index
    %142 = vector.load %arg4[%c6, %c0_87] : memref<10x32xf32, #tpu.memory_space<vmem>>, vector<1x32xf32>
    %143 = arith.truncf %140 : vector<32x32xf32> to vector<32x32xbf16>
    %c2_88 = arith.constant 2 : index
    %c0_89 = arith.constant 0 : index
    %c0_90 = arith.constant 0 : index
    %c0_91 = arith.constant 0 : index
    %144 = vector.load %arg3[%c2_88, %c0_89, %c0_90, %c0_91] : memref<4x2x32x32xbf16, #tpu.memory_space<vmem>>, vector<1x1x32x32xbf16>
    %145 = vector.shape_cast %144 : vector<1x1x32x32xbf16> to vector<32x32xbf16>
    %cst_92 = arith.constant dense<0.000000e+00> : vector<32x32xf32>
    %146 = tpu.matmul %143, %145, %cst_92 {dimension_numbers = #tpu.dot_dimension_numbers<[1], [0], [0], [1], [0, 0, 1, 1], [], []>} : vector<32x32xbf16>, vector<32x32xbf16>, vector<32x32xf32> -> vector<32x32xf32>
    %147 = vector.broadcast %141 : vector<1x32xf32> to vector<32x32xf32>
    %148 = arith.addf %146, %147 : vector<32x32xf32>
    %cst_93 = arith.constant 0.000000e+00 : f32
    %149 = vector.broadcast %cst_93 : f32 to vector<32x32xf32>
    %150 = arith.maximumf %148, %149 : vector<32x32xf32>
    %151 = arith.truncf %150 : vector<32x32xf32> to vector<32x32xbf16>
    %c2_94 = arith.constant 2 : index
    %c1_95 = arith.constant 1 : index
    %c0_96 = arith.constant 0 : index
    %c0_97 = arith.constant 0 : index
    %152 = vector.load %arg3[%c2_94, %c1_95, %c0_96, %c0_97] : memref<4x2x32x32xbf16, #tpu.memory_space<vmem>>, vector<1x1x32x32xbf16>
    %153 = vector.shape_cast %152 : vector<1x1x32x32xbf16> to vector<32x32xbf16>
    %cst_98 = arith.constant dense<0.000000e+00> : vector<32x32xf32>
    %154 = tpu.matmul %151, %153, %cst_98 {dimension_numbers = #tpu.dot_dimension_numbers<[1], [0], [0], [1], [0, 0, 1, 1], [], []>} : vector<32x32xbf16>, vector<32x32xbf16>, vector<32x32xf32> -> vector<32x32xf32>
    %155 = vector.broadcast %142 : vector<1x32xf32> to vector<32x32xf32>
    %156 = arith.addf %154, %155 : vector<32x32xf32>
    %157 = arith.addf %156, %140 : vector<32x32xf32>
    %158 = arith.truncf %157 : vector<32x32xf32> to vector<32x32xbf16>
    %c3 = arith.constant 3 : index
    %c0_99 = arith.constant 0 : index
    %c0_100 = arith.constant 0 : index
    %c0_101 = arith.constant 0 : index
    %159 = vector.load %arg2[%c3, %c0_99, %c0_100, %c0_101] : memref<4x3x32x32xbf16, #tpu.memory_space<vmem>>, vector<1x1x32x32xbf16>
    %160 = vector.shape_cast %159 : vector<1x1x32x32xbf16> to vector<32x32xbf16>
    %cst_102 = arith.constant dense<0.000000e+00> : vector<32x32xf32>
    %161 = tpu.matmul %158, %160, %cst_102 {dimension_numbers = #tpu.dot_dimension_numbers<[1], [0], [0], [1], [0, 0, 1, 1], [], []>} : vector<32x32xbf16>, vector<32x32xbf16>, vector<32x32xf32> -> vector<32x32xf32>
    %c3_103 = arith.constant 3 : index
    %c1_104 = arith.constant 1 : index
    %c0_105 = arith.constant 0 : index
    %c0_106 = arith.constant 0 : index
    %162 = vector.load %arg2[%c3_103, %c1_104, %c0_105, %c0_106] : memref<4x3x32x32xbf16, #tpu.memory_space<vmem>>, vector<1x1x32x32xbf16>
    %163 = vector.shape_cast %162 : vector<1x1x32x32xbf16> to vector<32x32xbf16>
    %cst_107 = arith.constant dense<0.000000e+00> : vector<32x32xf32>
    %164 = tpu.matmul %158, %163, %cst_107 {dimension_numbers = #tpu.dot_dimension_numbers<[1], [0], [0], [1], [0, 0, 1, 1], [], []>} : vector<32x32xbf16>, vector<32x32xbf16>, vector<32x32xf32> -> vector<32x32xf32>
    %c3_108 = arith.constant 3 : index
    %c2_109 = arith.constant 2 : index
    %c0_110 = arith.constant 0 : index
    %c0_111 = arith.constant 0 : index
    %165 = vector.load %arg2[%c3_108, %c2_109, %c0_110, %c0_111] : memref<4x3x32x32xbf16, #tpu.memory_space<vmem>>, vector<1x1x32x32xbf16>
    %166 = vector.shape_cast %165 : vector<1x1x32x32xbf16> to vector<32x32xbf16>
    %cst_112 = arith.constant dense<0.000000e+00> : vector<32x32xf32>
    %167 = tpu.matmul %158, %166, %cst_112 {dimension_numbers = #tpu.dot_dimension_numbers<[1], [0], [0], [1], [0, 0, 1, 1], [], []>} : vector<32x32xbf16>, vector<32x32xbf16>, vector<32x32xf32> -> vector<32x32xf32>
    %168 = vector.shape_cast %161 : vector<32x32xf32> to vector<4x8x32xf32>
    %169 = arith.truncf %168 : vector<4x8x32xf32> to vector<4x8x32xbf16>
    %170 = vector.shape_cast %164 : vector<32x32xf32> to vector<4x8x32xf32>
    %171 = arith.truncf %170 : vector<4x8x32xf32> to vector<4x8x32xbf16>
    %172 = vector.shape_cast %167 : vector<32x32xf32> to vector<4x8x32xf32>
    %173 = arith.truncf %172 : vector<4x8x32xf32> to vector<4x8x32xbf16>
    %cst_113 = arith.constant dense<0.000000e+00> : vector<4x8x8xf32>
    %174 = tpu.matmul %169, %171, %cst_113 {dimension_numbers = #tpu.dot_dimension_numbers<[2], [2], [1], [1], [0, 0, 0, 1, 1, 1], [0], [0]>} : vector<4x8x32xbf16>, vector<4x8x32xbf16>, vector<4x8x8xf32> -> vector<4x8x8xf32>
    %175 = vector.shape_cast %7 : vector<8x8xf32> to vector<1x8x8xf32>
    %176 = vector.broadcast %175 : vector<1x8x8xf32> to vector<4x8x8xf32>
    %177 = arith.addf %174, %176 : vector<4x8x8xf32>
    %cst_114 = arith.constant dense<0xFF800000> : vector<4x8xf32>
    %178 = vector.multi_reduction <maximumf>, %177, %cst_114 [2] : vector<4x8x8xf32> to vector<4x8xf32>
    %179 = vector.shape_cast %178 : vector<4x8xf32> to vector<4x8x1xf32>
    %180 = vector.broadcast %179 : vector<4x8x1xf32> to vector<4x8x8xf32>
    %181 = arith.subf %177, %180 : vector<4x8x8xf32>
    %182 = math.exp %181 : vector<4x8x8xf32>
    %cst_115 = arith.constant dense<0.000000e+00> : vector<4x8xf32>
    %183 = vector.multi_reduction <add>, %182, %cst_115 [2] : vector<4x8x8xf32> to vector<4x8xf32>
    %184 = vector.shape_cast %183 : vector<4x8xf32> to vector<4x8x1xf32>
    %185 = tpu.reciprocal %184 {approx = true} : vector<4x8x1xf32> -> vector<4x8x1xf32>
    %186 = vector.broadcast %185 : vector<4x8x1xf32> to vector<4x8x8xf32>
    %187 = arith.mulf %182, %186 : vector<4x8x8xf32>
    %188 = arith.truncf %187 : vector<4x8x8xf32> to vector<4x8x8xbf16>
    %cst_116 = arith.constant dense<0.000000e+00> : vector<4x8x32xf32>
    %189 = tpu.matmul %188, %173, %cst_116 {dimension_numbers = #tpu.dot_dimension_numbers<[2], [1], [1], [2], [0, 0, 0, 1, 1, 2], [0], [0]>} : vector<4x8x8xbf16>, vector<4x8x32xbf16>, vector<4x8x32xf32> -> vector<4x8x32xf32>
    %190 = vector.shape_cast %189 : vector<4x8x32xf32> to vector<32x32xf32>
    %c3_117 = arith.constant 3 : index
    %c0_118 = arith.constant 0 : index
    %191 = vector.load %arg4[%c3_117, %c0_118] : memref<10x32xf32, #tpu.memory_space<vmem>>, vector<1x32xf32>
    %c7 = arith.constant 7 : index
    %c0_119 = arith.constant 0 : index
    %192 = vector.load %arg4[%c7, %c0_119] : memref<10x32xf32, #tpu.memory_space<vmem>>, vector<1x32xf32>
    %193 = arith.truncf %190 : vector<32x32xf32> to vector<32x32xbf16>
    %c3_120 = arith.constant 3 : index
    %c0_121 = arith.constant 0 : index
    %c0_122 = arith.constant 0 : index
    %c0_123 = arith.constant 0 : index
    %194 = vector.load %arg3[%c3_120, %c0_121, %c0_122, %c0_123] : memref<4x2x32x32xbf16, #tpu.memory_space<vmem>>, vector<1x1x32x32xbf16>
    %195 = vector.shape_cast %194 : vector<1x1x32x32xbf16> to vector<32x32xbf16>
    %cst_124 = arith.constant dense<0.000000e+00> : vector<32x32xf32>
    %196 = tpu.matmul %193, %195, %cst_124 {dimension_numbers = #tpu.dot_dimension_numbers<[1], [0], [0], [1], [0, 0, 1, 1], [], []>} : vector<32x32xbf16>, vector<32x32xbf16>, vector<32x32xf32> -> vector<32x32xf32>
    %197 = vector.broadcast %191 : vector<1x32xf32> to vector<32x32xf32>
    %198 = arith.addf %196, %197 : vector<32x32xf32>
    %cst_125 = arith.constant 0.000000e+00 : f32
    %199 = vector.broadcast %cst_125 : f32 to vector<32x32xf32>
    %200 = arith.maximumf %198, %199 : vector<32x32xf32>
    %201 = arith.truncf %200 : vector<32x32xf32> to vector<32x32xbf16>
    %c3_126 = arith.constant 3 : index
    %c1_127 = arith.constant 1 : index
    %c0_128 = arith.constant 0 : index
    %c0_129 = arith.constant 0 : index
    %202 = vector.load %arg3[%c3_126, %c1_127, %c0_128, %c0_129] : memref<4x2x32x32xbf16, #tpu.memory_space<vmem>>, vector<1x1x32x32xbf16>
    %203 = vector.shape_cast %202 : vector<1x1x32x32xbf16> to vector<32x32xbf16>
    %cst_130 = arith.constant dense<0.000000e+00> : vector<32x32xf32>
    %204 = tpu.matmul %201, %203, %cst_130 {dimension_numbers = #tpu.dot_dimension_numbers<[1], [0], [0], [1], [0, 0, 1, 1], [], []>} : vector<32x32xbf16>, vector<32x32xbf16>, vector<32x32xf32> -> vector<32x32xf32>
    %205 = vector.broadcast %192 : vector<1x32xf32> to vector<32x32xf32>
    %206 = arith.addf %204, %205 : vector<32x32xf32>
    %207 = arith.addf %206, %190 : vector<32x32xf32>
    %c8 = arith.constant 8 : index
    %c0_131 = arith.constant 0 : index
    %208 = vector.load %arg4[%c8, %c0_131] : memref<10x32xf32, #tpu.memory_space<vmem>>, vector<1x32xf32>
    %c9 = arith.constant 9 : index
    %c0_132 = arith.constant 0 : index
    %209 = vector.load %arg4[%c9, %c0_132] : memref<10x32xf32, #tpu.memory_space<vmem>>, vector<1x1xf32>
    %cst_133 = arith.constant dense<0.000000e+00> : vector<1x32xf32>
    %210 = tpu.matmul %208, %207, %cst_133 {dimension_numbers = #tpu.dot_dimension_numbers<[1], [1], [0], [0], [0, 0, 1, 0], [], []>} : vector<1x32xf32>, vector<32x32xf32>, vector<1x32xf32> -> vector<1x32xf32>
    %211 = vector.broadcast %209 : vector<1x1xf32> to vector<1x32xf32>
    %212 = arith.addf %210, %211 : vector<1x32xf32>
    %213 = arith.negf %212 : vector<1x32xf32>
    %214 = math.exp %213 : vector<1x32xf32>
    %cst_134 = arith.constant 1.000000e+00 : f32
    %215 = vector.broadcast %cst_134 : f32 to vector<1x32xf32>
    %216 = arith.addf %215, %214 : vector<1x32xf32>
    %217 = arith.divf %215, %216 : vector<1x32xf32>
    %cst_135 = arith.constant 0.000000e+00 : f32
    %218 = vector.broadcast %cst_135 : f32 to vector<1x128xf32>
    %c0_136 = arith.constant 0 : index
    %c0_137 = arith.constant 0 : index
    %c0_138 = arith.constant 0 : index
    %219 = vector.load %arg5[%c0_136, %c0_137, %c0_138] : memref<1x1x128xf32, #tpu.memory_space<vmem>>, vector<1x1x128xf32>
    %220 = vector.shape_cast %219 : vector<1x1x128xf32> to vector<1x128xf32>
    %221 = vector.shape_cast %218 : vector<1x128xf32> to vector<1x1x128xf32>
    tpu.vector_store %arg5[%c0_136, %c0_137, %c0_138], %221 {strides = array<i32>} : memref<1x1x128xf32, #tpu.memory_space<vmem>>, vector<1x1x128xf32>,
    %c0_139 = arith.constant 0 : index
    %c0_140 = arith.constant 0 : index
    %c0_141 = arith.constant 0 : index
    %222 = vector.load %arg5[%c0_139, %c0_140, %c0_141] : memref<1x1x128xf32, #tpu.memory_space<vmem>>, vector<1x1x32xf32>
    %223 = vector.shape_cast %222 : vector<1x1x32xf32> to vector<1x32xf32>
    %224 = vector.shape_cast %217 : vector<1x32xf32> to vector<1x1x32xf32>
    tpu.vector_store %arg5[%c0_139, %c0_140, %c0_141], %224 {strides = array<i32>} : memref<1x1x128xf32, #tpu.memory_space<vmem>>, vector<1x1x32xf32>,
    return
  }
  func.func @transform_0(%arg0: i32) -> (i32, i32) {
    %c0_i32 = arith.constant 0 : i32
    %c0_i32_0 = arith.constant 0 : i32
    return %arg0, %c0_i32 : i32, i32
  }
  func.func @transform_1(%arg0: i32) -> (i32, i32, i32, i32) {
    %c0_i32 = arith.constant 0 : i32
    %c0_i32_0 = arith.constant 0 : i32
    %c0_i32_1 = arith.constant 0 : i32
    %c0_i32_2 = arith.constant 0 : i32
    %c0_i32_3 = arith.constant 0 : i32
    return %c0_i32, %c0_i32_0, %c0_i32_1, %c0_i32_2 : i32, i32, i32, i32
  }
  func.func @transform_2(%arg0: i32) -> (i32, i32, i32, i32) {
    %c0_i32 = arith.constant 0 : i32
    %c0_i32_0 = arith.constant 0 : i32
    %c0_i32_1 = arith.constant 0 : i32
    %c0_i32_2 = arith.constant 0 : i32
    %c0_i32_3 = arith.constant 0 : i32
    return %c0_i32, %c0_i32_0, %c0_i32_1, %c0_i32_2 : i32, i32, i32, i32
  }
  func.func @transform_3(%arg0: i32) -> (i32, i32) {
    %c0_i32 = arith.constant 0 : i32
    %c0_i32_0 = arith.constant 0 : i32
    %c0_i32_1 = arith.constant 0 : i32
    return %c0_i32, %c0_i32_0 : i32, i32
  }
  func.func @transform_4(%arg0: i32) -> (i32, i32, i32) {
    %c0_i32 = arith.constant 0 : i32
    %c0_i32_0 = arith.constant 0 : i32
    %c0_i32_1 = arith.constant 0 : i32
    return %arg0, %c0_i32, %c0_i32_0 : i32, i32, i32
  }
}

</mosaic_0001>

<llo_original>
// kernel: squeeze.1
$region0: #{squeeze.1}
  %s0 = inlined_call_operand.vmem [shape: f32[2,32], index: 0, kind: input, shape index: {}]
  %s1 = inlined_call_operand.hbm [shape: f32[8,8,1], index: 1, kind: output, shape index: {}]
  $region1: #{squeeze.1} parent=0
    #allocation0 [shape = 'u8[4096]{0}', space=vmem, size = 0x1000, scoped, tag = 'operand span for operand 1']
    #allocation1 [shape = 's32[1]{0}', space=sflag, size = 0x4, scoped, tag = 'scoped memory for squeeze.1']
    #allocation2 [shape = 'u8[4096]{0}', space=vmem, size = 0x1000, scoped, tag = 'scoped mem for input reshape']
    %2 = vsyncpa [#allocation1], 0
    %s4 = sshll.u32 1, 2
    %s5 = ssub.s32 %s4, 1
    %v6 = vld [vmem:[%s0] sm:%s5]
    %7 = vst [vmem:[#allocation2] sm:%s5] %v6
    %v8 = vld [vmem:[#allocation2] sm:$0x3]
    %vm9 = vcmask 64512
    %10 = vst.msk [vmem:[#allocation0] ss:$4 sm:$0x3] %vm9, %v8
    %v11 = vld [vmem:[#allocation2] sm:$0x3]
    %12 = vrot.lane.b32.xlu0 %v11, 120
    %v13 = vpop.permute.xlu0 %12
    %vm14 = vcmask 64512
    %s15 = scalar_lea.vmem [#allocation0], 1
    %16 = vst.msk [vmem:[%s15] ss:$4 sm:$0x3] %vm14, %v13
    %v17 = vld [vmem:[#allocation2] sm:$0x3]
    %18 = vrot.lane.b32.xlu0 %v17, 112
    %v19 = vpop.permute.xlu0 %18
    %vm20 = vcmask 64512
    %s21 = scalar_lea.vmem [#allocation0], 2
    %22 = vst.msk [vmem:[%s21] ss:$4 sm:$0x3] %vm20, %v19
    %v23 = vld [vmem:[#allocation2] sm:$0x3]
    %24 = vrot.lane.b32.xlu0 %v23, 104
    %v25 = vpop.permute.xlu0 %24
    %vm26 = vcmask 64512
    %s27 = scalar_lea.vmem [#allocation0], 3
    %28 = vst.msk [vmem:[%s27] ss:$4 sm:$0x3] %vm26, %v25
    %s30 = ssub.s32 128, 128
    %31 = vsyncadd [#allocation1], %s30
    %s33 = sshll.u32 [#allocation0], 4
    %s34 = int_to_ptr.vmem [resolvable:$true] %s33
    %36 = dma.vmem_to_hbm [thread:$0]  %s34, 128, %s1, [#allocation1]
    %37 = dma.done [#allocation1], 128
    %38 = vsyncpa [#allocation1], 1

// kernel: classifier_encoder.1
$region0: #{classifier_encoder.1}
  #allocation0 [shape = 'u32[]', space=smem, size = 0x4, offset = 0x4, fixed_abs, tag = 'smem constant byte address 0x4 - core index']
  #allocation1 [shape = 'u32[144,128]{1,0:T(1,128)}', space=vmem, size = 0x12000, scoped, tag = 'internal scratch']
  %s0 = inlined_call_operand.vmem [shape: bf16[64,32], index: 0, kind: input, shape index: {}]
  %s1 = inlined_call_operand.vmem [shape: bf16[4,3,32,32], index: 1, kind: input, shape index: {}]
  %s2 = inlined_call_operand.vmem [shape: bf16[4,2,32,32], index: 2, kind: input, shape index: {}]
  %s3 = inlined_call_operand.vmem [shape: f32[10,32], index: 3, kind: input, shape index: {}]
  %s4 = inlined_call_operand.vmem [shape: f32[2,1,128], index: 4, kind: output, shape index: {}]
  %s5 = sld [smem:[#allocation0]]
  $region49: #{classifier_encoder.1} parent=0
    _
  %s7 = ssub.s32 1, %s5
  %s8 = scalar_select 0, %s7, %s5
  loop: start=0, step=1, limit=4
  $region2: #{classifier_encoder.1} parent=0 // loop_pre_header
    _
  $region3: #{classifier_encoder.1} parent=0 // loop_header
    %s10 = sphi 0, %s14
    %p11 = scmp.ge.s32.totalorder %s10, 4
    %s20 = sphi 0, %s22
    %s23 = sphi 0, %s20
    %s24 = sphi 0, %s23
    %s40 = sphi 0, %s24
    %s44 = sphi 0, %s44
    %s46 = sphi 0, %s44
    %s47 = sphi 0, %s46
    %s61 = sphi 0, %s47
    %s65 = sphi 0, %s65
    %s67 = sphi 0, %s65
    %s68 = sphi 0, %s67
    %s82 = sphi 0, %s68
    %s86 = sphi 0, %s86
    %s88 = sphi 0, %s86
    %s89 = sphi 0, %s88
    %s103 = sphi 0, %s89
    %s109 = sphi 0, %s111
    %s112 = sphi 0, %s109
    %s113 = sphi 0, %s112
    %s129 = sphi 0, %s113
  $region4: #{classifier_encoder.1} parent=0 // loop_header_branch
    %13 = sbr.rel (%p11) target = $region8
  $region5: #{classifier_encoder.1} parent=0 // loop_body
    %s15 = ssub.s32 %s10, 1
    %s16 = ssub.s32 %s10, 2
    %s17 = sadd.s32 %s10, 1
    %s18 = ssub.s32 %s10, %s17
    %p19 = scmp.eq.s32.totalorder %s18, 0
    %s21 = sadd.s32 %s20, 1
    %s22 = scalar_select %p19, %s20, %s21
    %p25 = pneg %p19
    %p26 = scmp.eq.s32.totalorder %s10, 1
    %p27 = por %p25, %p26
    %p28 = scmp.ne.s32.totalorder %s20, %s23
    %p29 = scmp.eq.s32.totalorder %s10, 0
    %p30 = por %p28, %p29
    %p31 = scmp.ne.s32.totalorder %s20, %s23
    %p32 = scmp.eq.s32.totalorder %s15, 1
    %p33 = por %p31, %p32
    %p34 = scmp.ne.s32.totalorder %s23, %s24
    %p35 = scmp.eq.s32.totalorder %s15, 0
    %p36 = por %p34, %p35
    %p37 = scmp.ne.s32.totalorder %s23, %s24
    %p38 = scmp.eq.s32.totalorder %s16, 1
    %p39 = por %p37, %p38
    %p41 = scmp.ne.s32.totalorder %s24, %s40
    %p42 = scmp.eq.s32.totalorder %s16, 0
    %p43 = por %p41, %p42
    %s45 = sadd.s32 %s44, 1
    %p48 = scmp.eq.s32.totalorder %s10, 1
    %p49 = scmp.ne.s32.totalorder %s44, %s46
    %p50 = scmp.eq.s32.totalorder %s10, 0
    %p51 = por %p49, %p50
    %p52 = scmp.ne.s32.totalorder %s44, %s46
    %p53 = scmp.eq.s32.totalorder %s15, 1
    %p54 = por %p52, %p53
    %p55 = scmp.ne.s32.totalorder %s46, %s47
    %p56 = scmp.eq.s32.totalorder %s15, 0
    %p57 = por %p55, %p56
    %p58 = scmp.ne.s32.totalorder %s46, %s47
    %p59 = scmp.eq.s32.totalorder %s16, 1
    %p60 = por %p58, %p59
    %p62 = scmp.ne.s32.totalorder %s47, %s61
    %p63 = scmp.eq.s32.totalorder %s16, 0
    %p64 = por %p62, %p63
    %s66 = sadd.s32 %s65, 1
    %p69 = scmp.eq.s32.totalorder %s10, 1
    %p70 = scmp.ne.s32.totalorder %s65, %s67
    %p71 = scmp.eq.s32.totalorder %s10, 0
    %p72 = por %p70, %p71
    %p73 = scmp.ne.s32.totalorder %s65, %s67
    %p74 = scmp.eq.s32.totalorder %s15, 1
    %p75 = por %p73, %p74
    %p76 = scmp.ne.s32.totalorder %s67, %s68
    %p77 = scmp.eq.s32.totalorder %s15, 0
    %p78 = por %p76, %p77
    %p79 = scmp.ne.s32.totalorder %s67, %s68
    %p80 = scmp.eq.s32.totalorder %s16, 1
    %p81 = por %p79, %p80
    %p83 = scmp.ne.s32.totalorder %s68, %s82
    %p84 = scmp.eq.s32.totalorder %s16, 0
    %p85 = por %p83, %p84
    %s87 = sadd.s32 %s86, 1
    %p90 = scmp.eq.s32.totalorder %s10, 1
    %p91 = scmp.ne.s32.totalorder %s86, %s88
    %p92 = scmp.eq.s32.totalorder %s10, 0
    %p93 = por %p91, %p92
    %p94 = scmp.ne.s32.totalorder %s86, %s88
    %p95 = scmp.eq.s32.totalorder %s15, 1
    %p96 = por %p94, %p95
    %p97 = scmp.ne.s32.totalorder %s88, %s89
    %p98 = scmp.eq.s32.totalorder %s15, 0
    %p99 = por %p97, %p98
    %p100 = scmp.ne.s32.totalorder %s88, %s89
    %p101 = scmp.eq.s32.totalorder %s16, 1
    %p102 = por %p100, %p101
    %p104 = scmp.ne.s32.totalorder %s89, %s103
    %p105 = scmp.eq.s32.totalorder %s16, 0
    %p106 = por %p104, %p105
    %s107 = ssub.s32 %s10, %s17
    %p108 = scmp.eq.s32.totalorder %s107, 0
    %s110 = sadd.s32 %s109, 1
    %s111 = scalar_select %p108, %s109, %s110
    %p114 = pneg %p108
    %p115 = scmp.eq.s32.totalorder %s10, 1
    %p116 = por %p114, %p115
    %p117 = scmp.ne.s32.totalorder %s109, %s112
    %p118 = scmp.eq.s32.totalorder %s10, 0
    %p119 = por %p117, %p118
    %p120 = scmp.ne.s32.totalorder %s109, %s112
    %p121 = scmp.eq.s32.totalorder %s15, 1
    %p122 = por %p120, %p121
    %p123 = scmp.ne.s32.totalorder %s112, %s113
    %p124 = scmp.eq.s32.totalorder %s15, 0
    %p125 = por %p123, %p124
    %p126 = scmp.ne.s32.totalorder %s112, %s113
    %p127 = scmp.eq.s32.totalorder %s16, 1
    %p128 = por %p126, %p127
    %p130 = scmp.ne.s32.totalorder %s113, %s129
    %p131 = scmp.eq.s32.totalorder %s16, 0
    %p132 = por %p130, %p131
    %p133 = scmp.le.s32.totalorder 1, %s10
    %p134 = scmp.lt.s32.totalorder %s10, 3
    %p135 = pnand %p133, %p134
    %p136 = pneg %p135
    // Predicated region
    $region9: #{classifier_encoder.1} parent=5 // pred_check
      _
    $region10: #{classifier_encoder.1} parent=5 // pred_check_branch
      %138 = sbr.rel (%p135) target = $region12
    $region11: #{classifier_encoder.1} parent=5 // pred_region
      %s139 = ssub.s32 %s10, 1
      // Predicated region
      $region13: #{classifier_encoder.1} parent=11 // pred_check
        %p140 = pneg %p57
      $region14: #{classifier_encoder.1} parent=11 // pred_check_branch
        %142 = sbr.rel (%p140) target = $region16
      $region15: #{classifier_encoder.1} parent=11 // pred_region
        _
      $region16: #{classifier_encoder.1} parent=11 // pred_fallthru
        _
      // Predicated region
      $region17: #{classifier_encoder.1} parent=11 // pred_check
        %p143 = pneg %p78
      $region18: #{classifier_encoder.1} parent=11 // pred_check_branch
        %145 = sbr.rel (%p143) target = $region20
      $region19: #{classifier_encoder.1} parent=11 // pred_region
        _
      $region20: #{classifier_encoder.1} parent=11 // pred_fallthru
        _
      // Predicated region
      $region21: #{classifier_encoder.1} parent=11 // pred_check
        %p146 = pneg %p99
      $region22: #{classifier_encoder.1} parent=11 // pred_check_branch
        %148 = sbr.rel (%p146) target = $region24
      $region23: #{classifier_encoder.1} parent=11 // pred_region
        _
      $region24: #{classifier_encoder.1} parent=11 // pred_fallthru
        _
    $region12: #{classifier_encoder.1} parent=5 // pred_fallthru
      _
    %p149 = scmp.lt.s32.totalorder %s10, 2
    // Predicated region
    $region25: #{classifier_encoder.1} parent=5 // pred_check
      %p150 = pneg %p149
    $region26: #{classifier_encoder.1} parent=5 // pred_check_branch
      %152 = sbr.rel (%p150) target = $region28
    $region27: #{classifier_encoder.1} parent=5 // pred_region
      // Predicated region
      $region29: #{classifier_encoder.1} parent=27 // pred_check
        %p153 = pneg %p30
      $region30: #{classifier_encoder.1} parent=27 // pred_check_branch
        %155 = sbr.rel (%p153) target = $region32
      $region31: #{classifier_encoder.1} parent=27 // pred_region
        %s156 = smul.u32 4, %s10
        %p157 = scmp.lt.s32.totalorder %s156, 7
        %s158 = scalar_select %p157, %s156, 7
        %s159 = smul.addr %s158, 4
        %s160 = scalar_lea.vmem %s0, %s159
        %s161 = smul.u32 4, %s10
      $region32: #{classifier_encoder.1} parent=27 // pred_fallthru
        _
    $region28: #{classifier_encoder.1} parent=5 // pred_fallthru
      _
    %p162 = scmp.le.s32.totalorder 1, %s10
    %p163 = scmp.lt.s32.totalorder %s10, 3
    %p164 = pnand %p162, %p163
    %p165 = pneg %p164
    // Predicated region
    $region33: #{classifier_encoder.1} parent=5 // pred_check
      _
    $region34: #{classifier_encoder.1} parent=5 // pred_check_branch
      %167 = sbr.rel (%p164) target = $region36
    $region35: #{classifier_encoder.1} parent=5 // pred_region
      %s168 = ssub.s32 %s10, 1
      %s169 = smul.u32 4, %s15
      %p170 = scmp.lt.s32.totalorder %s169, 7
      %s171 = scalar_select %p170, %s169, 7
      %s172 = smul.addr %s171, 4
      %s173 = scalar_lea.vmem %s0, %s172
      %p174 = pneg %p36
      %p175 = pneg %p33
      %p176 = pneg %p57
      %p177 = pneg %p54
      %p178 = pneg %p78
      %p179 = pneg %p75
      %p180 = pneg %p99
      %p181 = pneg %p96
      %p182 = pneg %p125
      %p183 = pneg %p122
      %p184 = scmp.lt.s32.totalorder %s15, 1
      %s185 = scalar_select %p184, %s15, 1
      %s186 = scalar_lea.vmem %s4, %s185
      %s187 = smul.u32 4, %s15
      %p188 = scmp.lt.s32.totalorder %s187, 7
      %s189 = scalar_select %p188, %s187, 7
      %s190 = smul.addr %s189, 4
      %s191 = scalar_lea.vmem %s0, %s190
      %s192 = smul.u32 4, %s15
      %p193 = scmp.lt.s32.totalorder %s15, 1
      %s194 = scalar_select %p193, %s15, 1
      %s195 = scalar_lea.vmem %s4, %s194
      %v197 = vld [vmem:[%s191] sm:$0xf]
      %v198 = vld [vmem:[%s191 + $0x4] sm:$0xf]
      %v199 = vld [vmem:[%s191 + $0x8] sm:$0xf]
      %v200 = vld [vmem:[%s191 + $0xc] sm:$0xf]
      %v201 = vlaneseq
      %v202 = vshrl.u32 %v201, 7
      %v203 = vlaneseq
      %v204 = vand.u32 %v203, 127
      %vm205 = vcmp.le.s32.totalorder %v204, %v202
      %v206 = vsel %vm205, 0.0, -1e+30
      %v207 = vld [vmem:[%s1] sm:$0xf]
      %v208 = vld [vmem:[%s1 + $0x4] sm:$0xf]
      %v209 = vld [vmem:[%s1 + $0x8] sm:$0xf]
      %v210 = vld [vmem:[%s1 + $0xc] sm:$0xf]
      %v215 = vunpack.c.l.b16 %v197
      %v216 = vunpack.c.l.b16 %v198
      %v217 = vunpack.c.l.b16 %v199
      %v218 = vunpack.c.l.b16 %v200
      %v219 = vpack.c.b16 %v216, %v215
      %v220 = vpack.c.b16 %v218, %v217
      %v225 = vunpack.c.l.b16 %v207
      %v226 = vunpack.c.l.b16 %v208
      %v227 = vunpack.c.l.b16 %v209
      %v228 = vunpack.c.l.b16 %v210
      %v229 = vpack.c.b16 %v226, %v225
      %v230 = vpack.c.b16 %v228, %v227
      %vm233 = vcmask 261120
      %v235 = vsel %vm233, %v219, 0
      %v238 = vsel %vm233, %v220, 0
      %240 = vmatprep.subr.bf16.mxu0 0
      %241 = vmatpush1.bf16.msra.mxu0 0
      %242 = vmatprep.subr.bf16.mxu0 0
      %243 = vmatpush1.bf16.msra.mxu0 0
      %244 = vmatprep.subr.bf16.mxu0 0
      %245 = vmatpush1.bf16.msra.mxu0 0
      %246 = vmatprep.subr.bf16.mxu0 0
      %247 = vmatpush1.bf16.msra.mxu0 0
      %248 = vmatprep.subr.bf16.mxu0 0
      %249 = vmatpush1.bf16.msra.mxu0 0
      %250 = vmatprep.subr.bf16.mxu0 0
      %251 = vmatpush1.bf16.msra.mxu0 0
      %252 = vmatprep.subr.bf16.mxu0 0
      %253 = vmatpush1.bf16.msra.mxu0 %v230
      %254 = vmatprep.subr.bf16.mxu0 0
      %255 = vmatpush1.bf16.msra.mxu0 %v229
      %256 = vmatprep.subr.bf16.mxu0 0
      %257 = vmatpush2.bf16.msra.mxu0 0
      %258 = vmatprep.subr.bf16.mxu0 0
      %259 = vmatpush2.bf16.msra.mxu0 0
      %260 = vmatprep.subr.bf16.mxu0 0
      %261 = vmatpush2.bf16.msra.mxu0 0
      %262 = vmatprep.subr.bf16.mxu0 0
      %263 = vmatpush2.bf16.msra.mxu0 0
      %264 = vmatprep.subr.bf16.mxu0 0
      %265 = vmatpush2.bf16.msra.mxu0 0
      %266 = vmatprep.subr.bf16.mxu0 0
      %267 = vmatpush2.bf16.msra.mxu0 0
      %268 = vmatprep.subr.bf16.mxu0 0
      %269 = vmatpush2.bf16.msra.mxu0 0
      %270 = vmatprep.subr.bf16.mxu0 0
      %271 = vmatpush2.bf16.msra.mxu0 0
      %272 = vmatprep.mubr.bf16.mxu0 0
      %273 = vmatmul.mubr.bf16.gmra.mxu0 %v235
      %v274 = vpop.f32.mrf.mxu0
      %v275 = vadd.f32 0.0, %v274
      %v276 = vpop.f32.mrf.mxu0
      %v277 = vpop.f32.mrf.mxu0
      %v278 = vadd.f32 0.0, %v277
      %v279 = vpop.f32.mrf.mxu0
      %280 = vmatprep.mubr.bf16.mxu0 0
      %281 = vmatmul.mubr.bf16.gmra.mxu0 %v238
      %v282 = vpop.f32.mrf.mxu0
      %v283 = vadd.f32 0.0, %v282
      %v284 = vpop.f32.mrf.mxu0
      %v285 = vpop.f32.mrf.mxu0
      %v286 = vadd.f32 0.0, %v285
      %v287 = vpop.f32.mrf.mxu0
      %288 = vdwg.mxu0
      %s289 = scalar_lea.vmem %s1, 16
      %v290 = vld [vmem:[%s289] sm:$0xf]
      %v291 = vld [vmem:[%s289 + $0x4] sm:$0xf]
      %v292 = vld [vmem:[%s289 + $0x8] sm:$0xf]
      %v293 = vld [vmem:[%s289 + $0xc] sm:$0xf]
      %v298 = vunpack.c.l.b16 %v290
      %v299 = vunpack.c.l.b16 %v291
      %v300 = vunpack.c.l.b16 %v292
      %v301 = vunpack.c.l.b16 %v293
      %v302 = vpack.c.b16 %v299, %v298
      %v303 = vpack.c.b16 %v301, %v300
      %306 = vmatprep.subr.bf16.mxu0 0
      %307 = vmatpush1.bf16.msra.mxu0 0
      %308 = vmatprep.subr.bf16.mxu0 0
      %309 = vmatpush1.bf16.msra.mxu0 0
      %310 = vmatprep.subr.bf16.mxu0 0
      %311 = vmatpush1.bf16.msra.mxu0 0
      %312 = vmatprep.subr.bf16.mxu0 0
      %313 = vmatpush1.bf16.msra.mxu0 0
      %314 = vmatprep.subr.bf16.mxu0 0
      %315 = vmatpush1.bf16.msra.mxu0 0
      %316 = vmatprep.subr.bf16.mxu0 0
      %317 = vmatpush1.bf16.msra.mxu0 0
      %318 = vmatprep.subr.bf16.mxu0 0
      %319 = vmatpush1.bf16.msra.mxu0 %v303
      %320 = vmatprep.subr.bf16.mxu0 0
      %321 = vmatpush1.bf16.msra.mxu0 %v302
      %322 = vmatprep.subr.bf16.mxu0 0
      %323 = vmatpush2.bf16.msra.mxu0 0
      %324 = vmatprep.subr.bf16.mxu0 0
      %325 = vmatpush2.bf16.msra.mxu0 0
      %326 = vmatprep.subr.bf16.mxu0 0
      %327 = vmatpush2.bf16.msra.mxu0 0
      %328 = vmatprep.subr.bf16.mxu0 0
      %329 = vmatpush2.bf16.msra.mxu0 0
      %330 = vmatprep.subr.bf16.mxu0 0
      %331 = vmatpush2.bf16.msra.mxu0 0
      %332 = vmatprep.subr.bf16.mxu0 0
      %333 = vmatpush2.bf16.msra.mxu0 0
      %334 = vmatprep.subr.bf16.mxu0 0
      %335 = vmatpush2.bf16.msra.mxu0 0
      %336 = vmatprep.subr.bf16.mxu0 0
      %337 = vmatpush2.bf16.msra.mxu0 0
      %338 = vmatprep.mubr.bf16.mxu0 0
      %339 = vmatmul.mubr.bf16.gmra.mxu0 %v235
      %v340 = vpop.f32.mrf.mxu0
      %v341 = vadd.f32 0.0, %v340
      %v342 = vpop.f32.mrf.mxu0
      %v343 = vpop.f32.mrf.mxu0
      %v344 = vadd.f32 0.0, %v343
      %v345 = vpop.f32.mrf.mxu0
      %346 = vmatprep.mubr.bf16.mxu0 0
      %347 = vmatmul.mubr.bf16.gmra.mxu0 %v238
      %v348 = vpop.f32.mrf.mxu0
      %v349 = vadd.f32 0.0, %v348
      %v350 = vpop.f32.mrf.mxu0
      %v351 = vpop.f32.mrf.mxu0
      %v352 = vadd.f32 0.0, %v351
      %v353 = vpop.f32.mrf.mxu0
      %354 = vdwg.mxu0
      %s355 = scalar_lea.vmem %s1, 32
      %v356 = vld [vmem:[%s355] sm:$0xf]
      %v357 = vld [vmem:[%s355 + $0x4] sm:$0xf]
      %v358 = vld [vmem:[%s355 + $0x8] sm:$0xf]
      %v359 = vld [vmem:[%s355 + $0xc] sm:$0xf]
      %v364 = vunpack.c.l.b16 %v356
      %v365 = vunpack.c.l.b16 %v357
      %v366 = vunpack.c.l.b16 %v358
      %v367 = vunpack.c.l.b16 %v359
      %v368 = vpack.c.b16 %v365, %v364
      %v369 = vpack.c.b16 %v367, %v366
      %372 = vmatprep.subr.bf16.mxu0 0
      %373 = vmatpush1.bf16.msra.mxu0 0
      %374 = vmatprep.subr.bf16.mxu0 0
      %375 = vmatpush1.bf16.msra.mxu0 0
      %376 = vmatprep.subr.bf16.mxu0 0
      %377 = vmatpush1.bf16.msra.mxu0 0
      %378 = vmatprep.subr.bf16.mxu0 0
      %379 = vmatpush1.bf16.msra.mxu0 0
      %380 = vmatprep.subr.bf16.mxu0 0
      %381 = vmatpush1.bf16.msra.mxu0 0
      %382 = vmatprep.subr.bf16.mxu0 0
      %383 = vmatpush1.bf16.msra.mxu0 0
      %384 = vmatprep.subr.bf16.mxu0 0
      %385 = vmatpush1.bf16.msra.mxu0 %v369
      %386 = vmatprep.subr.bf16.mxu0 0
      %387 = vmatpush1.bf16.msra.mxu0 %v368
      %388 = vmatprep.subr.bf16.mxu0 0
      %389 = vmatpush2.bf16.msra.mxu0 0
      %390 = vmatprep.subr.bf16.mxu0 0
      %391 = vmatpush2.bf16.msra.mxu0 0
      %392 = vmatprep.subr.bf16.mxu0 0
      %393 = vmatpush2.bf16.msra.mxu0 0
      %394 = vmatprep.subr.bf16.mxu0 0
      %395 = vmatpush2.bf16.msra.mxu0 0
      %396 = vmatprep.subr.bf16.mxu0 0
      %397 = vmatpush2.bf16.msra.mxu0 0
      %398 = vmatprep.subr.bf16.mxu0 0
      %399 = vmatpush2.bf16.msra.mxu0 0
      %400 = vmatprep.subr.bf16.mxu0 0
      %401 = vmatpush2.bf16.msra.mxu0 0
      %402 = vmatprep.subr.bf16.mxu0 0
      %403 = vmatpush2.bf16.msra.mxu0 0
      %404 = vmatprep.mubr.bf16.mxu0 0
      %405 = vmatmul.mubr.bf16.gmra.mxu0 %v235
      %v406 = vpop.f32.mrf.mxu0
      %v407 = vadd.f32 0.0, %v406
      %v408 = vpop.f32.mrf.mxu0
      %v409 = vpop.f32.mrf.mxu0
      %v410 = vadd.f32 0.0, %v409
      %v411 = vpop.f32.mrf.mxu0
      %412 = vmatprep.mubr.bf16.mxu0 0
      %413 = vmatmul.mubr.bf16.gmra.mxu0 %v238
      %v414 = vpop.f32.mrf.mxu0
      %v415 = vadd.f32 0.0, %v414
      %v416 = vpop.f32.mrf.mxu0
      %v417 = vpop.f32.mrf.mxu0
      %v418 = vadd.f32 0.0, %v417
      %v419 = vpop.f32.mrf.mxu0
      %420 = vdwg.mxu0
      %v421 = vpack.c.bf16 %v275, %v275
      %v422 = vpack.c.bf16 %v278, %v278
      %v423 = vpack.c.bf16 %v283, %v283
      %v424 = vpack.c.bf16 %v286, %v286
      %v425 = vpack.c.bf16 %v341, %v341
      %v426 = vpack.c.bf16 %v344, %v344
      %v427 = vpack.c.bf16 %v349, %v349
      %v428 = vpack.c.bf16 %v352, %v352
      %v429 = vpack.c.bf16 %v407, %v407
      %v430 = vpack.c.bf16 %v410, %v410
      %v431 = vpack.c.bf16 %v415, %v415
      %v432 = vpack.c.bf16 %v418, %v418
      %v434 = vsel %vm233, %v421, 0
      %v437 = vsel %vm233, %v425, 0
      %439 = vmatprep.subr.bf16.mxu0 0
      %440 = vmatpush1.bf16.xpose.msra.mxu0 0
      %441 = vmatprep.subr.bf16.mxu0 0
      %442 = vmatpush1.bf16.xpose.msra.mxu0 0
      %443 = vmatprep.subr.bf16.mxu0 0
      %444 = vmatpush1.bf16.xpose.msra.mxu0 0
      %445 = vmatprep.subr.bf16.mxu0 0
      %446 = vmatpush1.bf16.xpose.msra.mxu0 0
      %447 = vmatprep.subr.bf16.mxu0 0
      %448 = vmatpush1.bf16.xpose.msra.mxu0 0
      %449 = vmatprep.subr.bf16.mxu0 0
      %450 = vmatpush1.bf16.xpose.msra.mxu0 0
      %451 = vmatprep.subr.bf16.mxu0 0
      %452 = vmatpush1.bf16.xpose.msra.mxu0 0
      %453 = vmatprep.subr.bf16.mxu0 0
      %454 = vmatpush1.bf16.xpose.msra.mxu0 %v437
      %455 = vmatprep.subr.bf16.mxu0 0
      %456 = vmatpush2.bf16.xpose.msra.mxu0 0
      %457 = vmatprep.subr.bf16.mxu0 0
      %458 = vmatpush2.bf16.xpose.msra.mxu0 0
      %459 = vmatprep.subr.bf16.mxu0 0
      %460 = vmatpush2.bf16.xpose.msra.mxu0 0
      %461 = vmatprep.subr.bf16.mxu0 0
      %462 = vmatpush2.bf16.xpose.msra.mxu0 0
      %463 = vmatprep.subr.bf16.mxu0 0
      %464 = vmatpush2.bf16.xpose.msra.mxu0 0
      %465 = vmatprep.subr.bf16.mxu0 0
      %466 = vmatpush2.bf16.xpose.msra.mxu0 0
      %467 = vmatprep.subr.bf16.mxu0 0
      %468 = vmatpush2.bf16.xpose.msra.mxu0 0
      %469 = vmatprep.subr.bf16.mxu0 0
      %470 = vmatpush2.bf16.xpose.msra.mxu0 0
      %471 = vmatprep.mubr.bf16.mxu0 0
      %472 = vmatmul.mubr.bf16.gmra.mxu0 %v434
      %v473 = vpop.f32.mrf.mxu0
      %v474 = vadd.f32 %v206, %v473
      %v475 = vpop.f32.mrf.mxu0
      %v476 = vpop.f32.mrf.mxu0
      %v477 = vpop.f32.mrf.mxu0
      %478 = vdwg.mxu0
      %v480 = vsel %vm233, %v422, 0
      %v483 = vsel %vm233, %v426, 0
      %485 = vmatprep.subr.bf16.mxu0 0
      %486 = vmatpush1.bf16.xpose.msra.mxu0 0
      %487 = vmatprep.subr.bf16.mxu0 0
      %488 = vmatpush1.bf16.xpose.msra.mxu0 0
      %489 = vmatprep.subr.bf16.mxu0 0
      %490 = vmatpush1.bf16.xpose.msra.mxu0 0
      %491 = vmatprep.subr.bf16.mxu0 0
      %492 = vmatpush1.bf16.xpose.msra.mxu0 0
      %493 = vmatprep.subr.bf16.mxu0 0
      %494 = vmatpush1.bf16.xpose.msra.mxu0 0
      %495 = vmatprep.subr.bf16.mxu0 0
      %496 = vmatpush1.bf16.xpose.msra.mxu0 0
      %497 = vmatprep.subr.bf16.mxu0 0
      %498 = vmatpush1.bf16.xpose.msra.mxu0 0
      %499 = vmatprep.subr.bf16.mxu0 0
      %500 = vmatpush1.bf16.xpose.msra.mxu0 %v483
      %501 = vmatprep.subr.bf16.mxu0 0
      %502 = vmatpush2.bf16.xpose.msra.mxu0 0
      %503 = vmatprep.subr.bf16.mxu0 0
      %504 = vmatpush2.bf16.xpose.msra.mxu0 0
      %505 = vmatprep.subr.bf16.mxu0 0
      %506 = vmatpush2.bf16.xpose.msra.mxu0 0
      %507 = vmatprep.subr.bf16.mxu0 0
      %508 = vmatpush2.bf16.xpose.msra.mxu0 0
      %509 = vmatprep.subr.bf16.mxu0 0
      %510 = vmatpush2.bf16.xpose.msra.mxu0 0
      %511 = vmatprep.subr.bf16.mxu0 0
      %512 = vmatpush2.bf16.xpose.msra.mxu0 0
      %513 = vmatprep.subr.bf16.mxu0 0
      %514 = vmatpush2.bf16.xpose.msra.mxu0 0
      %515 = vmatprep.subr.bf16.mxu0 0
      %516 = vmatpush2.bf16.xpose.msra.mxu0 0
      %517 = vmatprep.mubr.bf16.mxu0 0
      %518 = vmatmul.mubr.bf16.gmra.mxu0 %v480
      %v519 = vpop.f32.mrf.mxu0
      %v520 = vadd.f32 %v206, %v519
      %v521 = vpop.f32.mrf.mxu0
      %v522 = vpop.f32.mrf.mxu0
      %v523 = vpop.f32.mrf.mxu0
      %524 = vdwg.mxu0
      %v526 = vsel %vm233, %v423, 0
      %v529 = vsel %vm233, %v427, 0
      %531 = vmatprep.subr.bf16.mxu0 0
      %532 = vmatpush1.bf16.xpose.msra.mxu0 0
      %533 = vmatprep.subr.bf16.mxu0 0
      %534 = vmatpush1.bf16.xpose.msra.mxu0 0
      %535 = vmatprep.subr.bf16.mxu0 0
      %536 = vmatpush1.bf16.xpose.msra.mxu0 0
      %537 = vmatprep.subr.bf16.mxu0 0
      %538 = vmatpush1.bf16.xpose.msra.mxu0 0
      %539 = vmatprep.subr.bf16.mxu0 0
      %540 = vmatpush1.bf16.xpose.msra.mxu0 0
      %541 = vmatprep.subr.bf16.mxu0 0
      %542 = vmatpush1.bf16.xpose.msra.mxu0 0
      %543 = vmatprep.subr.bf16.mxu0 0
      %544 = vmatpush1.bf16.xpose.msra.mxu0 0
      %545 = vmatprep.subr.bf16.mxu0 0
      %546 = vmatpush1.bf16.xpose.msra.mxu0 %v529
      %547 = vmatprep.subr.bf16.mxu0 0
      %548 = vmatpush2.bf16.xpose.msra.mxu0 0
      %549 = vmatprep.subr.bf16.mxu0 0
      %550 = vmatpush2.bf16.xpose.msra.mxu0 0
      %551 = vmatprep.subr.bf16.mxu0 0
      %552 = vmatpush2.bf16.xpose.msra.mxu0 0
      %553 = vmatprep.subr.bf16.mxu0 0
      %554 = vmatpush2.bf16.xpose.msra.mxu0 0
      %555 = vmatprep.subr.bf16.mxu0 0
      %556 = vmatpush2.bf16.xpose.msra.mxu0 0
      %557 = vmatprep.subr.bf16.mxu0 0
      %558 = vmatpush2.bf16.xpose.msra.mxu0 0
      %559 = vmatprep.subr.bf16.mxu0 0
      %560 = vmatpush2.bf16.xpose.msra.mxu0 0
      %561 = vmatprep.subr.bf16.mxu0 0
      %562 = vmatpush2.bf16.xpose.msra.mxu0 0
      %563 = vmatprep.mubr.bf16.mxu0 0
      %564 = vmatmul.mubr.bf16.gmra.mxu0 %v526
      %v565 = vpop.f32.mrf.mxu0
      %v566 = vadd.f32 %v206, %v565
      %v567 = vpop.f32.mrf.mxu0
      %v568 = vpop.f32.mrf.mxu0
      %v569 = vpop.f32.mrf.mxu0
      %570 = vdwg.mxu0
      %v572 = vsel %vm233, %v424, 0
      %v575 = vsel %vm233, %v428, 0
      %577 = vmatprep.subr.bf16.mxu0 0
      %578 = vmatpush1.bf16.xpose.msra.mxu0 0
      %579 = vmatprep.subr.bf16.mxu0 0
      %580 = vmatpush1.bf16.xpose.msra.mxu0 0
      %581 = vmatprep.subr.bf16.mxu0 0
      %582 = vmatpush1.bf16.xpose.msra.mxu0 0
      %583 = vmatprep.subr.bf16.mxu0 0
      %584 = vmatpush1.bf16.xpose.msra.mxu0 0
      %585 = vmatprep.subr.bf16.mxu0 0
      %586 = vmatpush1.bf16.xpose.msra.mxu0 0
      %587 = vmatprep.subr.bf16.mxu0 0
      %588 = vmatpush1.bf16.xpose.msra.mxu0 0
      %589 = vmatprep.subr.bf16.mxu0 0
      %590 = vmatpush1.bf16.xpose.msra.mxu0 0
      %591 = vmatprep.subr.bf16.mxu0 0
      %592 = vmatpush1.bf16.xpose.msra.mxu0 %v575
      %593 = vmatprep.subr.bf16.mxu0 0
      %594 = vmatpush2.bf16.xpose.msra.mxu0 0
      %595 = vmatprep.subr.bf16.mxu0 0
      %596 = vmatpush2.bf16.xpose.msra.mxu0 0
      %597 = vmatprep.subr.bf16.mxu0 0
      %598 = vmatpush2.bf16.xpose.msra.mxu0 0
      %599 = vmatprep.subr.bf16.mxu0 0
      %600 = vmatpush2.bf16.xpose.msra.mxu0 0
      %601 = vmatprep.subr.bf16.mxu0 0
      %602 = vmatpush2.bf16.xpose.msra.mxu0 0
      %603 = vmatprep.subr.bf16.mxu0 0
      %604 = vmatpush2.bf16.xpose.msra.mxu0 0
      %605 = vmatprep.subr.bf16.mxu0 0
      %606 = vmatpush2.bf16.xpose.msra.mxu0 0
      %607 = vmatprep.subr.bf16.mxu0 0
      %608 = vmatpush2.bf16.xpose.msra.mxu0 0
      %609 = vmatprep.mubr.bf16.mxu0 0
      %610 = vmatmul.mubr.bf16.gmra.mxu0 %v572
      %v611 = vpop.f32.mrf.mxu0
      %v612 = vadd.f32 %v206, %v611
      %v613 = vpop.f32.mrf.mxu0
      %v614 = vpop.f32.mrf.mxu0
      %v615 = vpop.f32.mrf.mxu0
      %616 = vdwg.mxu0
      %vm617 = vcmask 64512
      %v618 = vsel %vm617, %v474, -inf
      %619 = vmax.xlane.f32.xlu0 %v618
      %v620 = vpop.xlane.xlu0 %619
      %v621 = vsel %vm617, %v520, -inf
      %622 = vmax.xlane.f32.xlu0 %v621
      %v623 = vpop.xlane.xlu0 %622
      %v624 = vsel %vm617, %v566, -inf
      %625 = vmax.xlane.f32.xlu0 %v624
      %v626 = vpop.xlane.xlu0 %625
      %v627 = vsel %vm617, %v612, -inf
      %628 = vmax.xlane.f32.xlu0 %v627
      %v629 = vpop.xlane.xlu0 %628
      %v630 = vsub.f32 %v474, %v620
      %v631 = vsub.f32 %v520, %v623
      %v632 = vsub.f32 %v566, %v626
      %v633 = vsub.f32 %v612, %v629
      %v634 = vmul.f32 %v630, 1.442695
      %v635 = vpow.pop %v634
      %v636 = vmul.f32 %v631, 1.442695
      %v637 = vpow.pop %v636
      %v638 = vmul.f32 %v632, 1.442695
      %v639 = vpow.pop %v638
      %v640 = vmul.f32 %v633, 1.442695
      %v641 = vpow.pop %v640
      %v642 = vsel %vm617, %v635, 0.0
      %643 = vadd.xlane.f32.xlu0 %v642
      %v644 = vpop.xlane.xlu0 %643
      %v645 = vsel %vm617, %v637, 0.0
      %646 = vadd.xlane.f32.xlu0 %v645
      %v647 = vpop.xlane.xlu0 %646
      %v648 = vsel %vm617, %v639, 0.0
      %649 = vadd.xlane.f32.xlu0 %v648
      %v650 = vpop.xlane.xlu0 %649
      %v651 = vsel %vm617, %v641, 0.0
      %652 = vadd.xlane.f32.xlu0 %v651
      %v653 = vpop.xlane.xlu0 %652
      %v654 = vrcp.pop %v644
      %v655 = vrcp.pop %v647
      %v656 = vrcp.pop %v650
      %v657 = vrcp.pop %v653
      %v658 = vmul.f32 %v635, %v654
      %v659 = vmul.f32 %v637, %v655
      %v660 = vmul.f32 %v639, %v656
      %v661 = vmul.f32 %v641, %v657
      %v662 = vpack.c.bf16 %v658, %v658
      %v663 = vpack.c.bf16 %v659, %v659
      %v664 = vpack.c.bf16 %v660, %v660
      %v665 = vpack.c.bf16 %v661, %v661
      %v667 = vsel %vm617, %v662, 0
      %vm669 = vcmask 1043456
      %v671 = vsel %vm669, %v429, 0
      %673 = vmatprep.subr.bf16.mxu0 0
      %674 = vmatpush1.bf16.msra.mxu0 0
      %675 = vmatprep.subr.bf16.mxu0 0
      %676 = vmatpush1.bf16.msra.mxu0 0
      %677 = vmatprep.subr.bf16.mxu0 0
      %678 = vmatpush1.bf16.msra.mxu0 0
      %679 = vmatprep.subr.bf16.mxu0 0
      %680 = vmatpush1.bf16.msra.mxu0 0
      %681 = vmatprep.subr.bf16.mxu0 0
      %682 = vmatpush1.bf16.msra.mxu0 0
      %683 = vmatprep.subr.bf16.mxu0 0
      %684 = vmatpush1.bf16.msra.mxu0 0
      %685 = vmatprep.subr.bf16.mxu0 0
      %686 = vmatpush1.bf16.msra.mxu0 0
      %687 = vmatprep.subr.bf16.mxu0 0
      %688 = vmatpush1.bf16.msra.mxu0 %v671
      %689 = vmatprep.subr.bf16.mxu0 0
      %690 = vmatpush2.bf16.msra.mxu0 0
      %691 = vmatprep.subr.bf16.mxu0 0
      %692 = vmatpush2.bf16.msra.mxu0 0
      %693 = vmatprep.subr.bf16.mxu0 0
      %694 = vmatpush2.bf16.msra.mxu0 0
      %695 = vmatprep.subr.bf16.mxu0 0
      %696 = vmatpush2.bf16.msra.mxu0 0
      %697 = vmatprep.subr.bf16.mxu0 0
      %698 = vmatpush2.bf16.msra.mxu0 0
      %699 = vmatprep.subr.bf16.mxu0 0
      %700 = vmatpush2.bf16.msra.mxu0 0
      %701 = vmatprep.subr.bf16.mxu0 0
      %702 = vmatpush2.bf16.msra.mxu0 0
      %703 = vmatprep.subr.bf16.mxu0 0
      %704 = vmatpush2.bf16.msra.mxu0 0
      %705 = vmatprep.mubr.bf16.mxu0 0
      %706 = vmatmul.mubr.bf16.gmra.mxu0 %v667
      %v707 = vpop.f32.mrf.mxu0
      %v708 = vadd.f32 0.0, %v707
      %v709 = vpop.f32.mrf.mxu0
      %v710 = vpop.f32.mrf.mxu0
      %v711 = vpop.f32.mrf.mxu0
      %712 = vdwg.mxu0
      %v714 = vsel %vm617, %v663, 0
      %v717 = vsel %vm669, %v430, 0
      %719 = vmatprep.subr.bf16.mxu0 0
      %720 = vmatpush1.bf16.msra.mxu0 0
      %721 = vmatprep.subr.bf16.mxu0 0
      %722 = vmatpush1.bf16.msra.mxu0 0
      %723 = vmatprep.subr.bf16.mxu0 0
      %724 = vmatpush1.bf16.msra.mxu0 0
      %725 = vmatprep.subr.bf16.mxu0 0
      %726 = vmatpush1.bf16.msra.mxu0 0
      %727 = vmatprep.subr.bf16.mxu0 0
      %728 = vmatpush1.bf16.msra.mxu0 0
      %729 = vmatprep.subr.bf16.mxu0 0
      %730 = vmatpush1.bf16.msra.mxu0 0
      %731 = vmatprep.subr.bf16.mxu0 0
      %732 = vmatpush1.bf16.msra.mxu0 0
      %733 = vmatprep.subr.bf16.mxu0 0
      %734 = vmatpush1.bf16.msra.mxu0 %v717
      %735 = vmatprep.subr.bf16.mxu0 0
      %736 = vmatpush2.bf16.msra.mxu0 0
      %737 = vmatprep.subr.bf16.mxu0 0
      %738 = vmatpush2.bf16.msra.mxu0 0
      %739 = vmatprep.subr.bf16.mxu0 0
      %740 = vmatpush2.bf16.msra.mxu0 0
      %741 = vmatprep.subr.bf16.mxu0 0
      %742 = vmatpush2.bf16.msra.mxu0 0
      %743 = vmatprep.subr.bf16.mxu0 0
      %744 = vmatpush2.bf16.msra.mxu0 0
      %745 = vmatprep.subr.bf16.mxu0 0
      %746 = vmatpush2.bf16.msra.mxu0 0
      %747 = vmatprep.subr.bf16.mxu0 0
      %748 = vmatpush2.bf16.msra.mxu0 0
      %749 = vmatprep.subr.bf16.mxu0 0
      %750 = vmatpush2.bf16.msra.mxu0 0
      %751 = vmatprep.mubr.bf16.mxu0 0
      %752 = vmatmul.mubr.bf16.gmra.mxu0 %v714
      %v753 = vpop.f32.mrf.mxu0
      %v754 = vadd.f32 0.0, %v753
      %v755 = vpop.f32.mrf.mxu0
      %v756 = vpop.f32.mrf.mxu0
      %v757 = vpop.f32.mrf.mxu0
      %758 = vdwg.mxu0
      %v760 = vsel %vm617, %v664, 0
      %v763 = vsel %vm669, %v431, 0
      %765 = vmatprep.subr.bf16.mxu0 0
      %766 = vmatpush1.bf16.msra.mxu0 0
      %767 = vmatprep.subr.bf16.mxu0 0
      %768 = vmatpush1.bf16.msra.mxu0 0
      %769 = vmatprep.subr.bf16.mxu0 0
      %770 = vmatpush1.bf16.msra.mxu0 0
      %771 = vmatprep.subr.bf16.mxu0 0
      %772 = vmatpush1.bf16.msra.mxu0 0
      %773 = vmatprep.subr.bf16.mxu0 0
      %774 = vmatpush1.bf16.msra.mxu0 0
      %775 = vmatprep.subr.bf16.mxu0 0
      %776 = vmatpush1.bf16.msra.mxu0 0
      %777 = vmatprep.subr.bf16.mxu0 0
      %778 = vmatpush1.bf16.msra.mxu0 0
      %779 = vmatprep.subr.bf16.mxu0 0
      %780 = vmatpush1.bf16.msra.mxu0 %v763
      %781 = vmatprep.subr.bf16.mxu0 0
      %782 = vmatpush2.bf16.msra.mxu0 0
      %783 = vmatprep.subr.bf16.mxu0 0
      %784 = vmatpush2.bf16.msra.mxu0 0
      %785 = vmatprep.subr.bf16.mxu0 0
      %786 = vmatpush2.bf16.msra.mxu0 0
      %787 = vmatprep.subr.bf16.mxu0 0
      %788 = vmatpush2.bf16.msra.mxu0 0
      %789 = vmatprep.subr.bf16.mxu0 0
      %790 = vmatpush2.bf16.msra.mxu0 0
      %791 = vmatprep.subr.bf16.mxu0 0
      %792 = vmatpush2.bf16.msra.mxu0 0
      %793 = vmatprep.subr.bf16.mxu0 0
      %794 = vmatpush2.bf16.msra.mxu0 0
      %795 = vmatprep.subr.bf16.mxu0 0
      %796 = vmatpush2.bf16.msra.mxu0 0
      %797 = vmatprep.mubr.bf16.mxu0 0
      %798 = vmatmul.mubr.bf16.gmra.mxu0 %v760
      %v799 = vpop.f32.mrf.mxu0
      %v800 = vadd.f32 0.0, %v799
      %v801 = vpop.f32.mrf.mxu0
      %v802 = vpop.f32.mrf.mxu0
      %v803 = vpop.f32.mrf.mxu0
      %804 = vdwg.mxu0
      %v806 = vsel %vm617, %v665, 0
      %v809 = vsel %vm669, %v432, 0
      %811 = vmatprep.subr.bf16.mxu0 0
      %812 = vmatpush1.bf16.msra.mxu0 0
      %813 = vmatprep.subr.bf16.mxu0 0
      %814 = vmatpush1.bf16.msra.mxu0 0
      %815 = vmatprep.subr.bf16.mxu0 0
      %816 = vmatpush1.bf16.msra.mxu0 0
      %817 = vmatprep.subr.bf16.mxu0 0
      %818 = vmatpush1.bf16.msra.mxu0 0
      %819 = vmatprep.subr.bf16.mxu0 0
      %820 = vmatpush1.bf16.msra.mxu0 0
      %821 = vmatprep.subr.bf16.mxu0 0
      %822 = vmatpush1.bf16.msra.mxu0 0
      %823 = vmatprep.subr.bf16.mxu0 0
      %824 = vmatpush1.bf16.msra.mxu0 0
      %825 = vmatprep.subr.bf16.mxu0 0
      %826 = vmatpush1.bf16.msra.mxu0 %v809
      %827 = vmatprep.subr.bf16.mxu0 0
      %828 = vmatpush2.bf16.msra.mxu0 0
      %829 = vmatprep.subr.bf16.mxu0 0
      %830 = vmatpush2.bf16.msra.mxu0 0
      %831 = vmatprep.subr.bf16.mxu0 0
      %832 = vmatpush2.bf16.msra.mxu0 0
      %833 = vmatprep.subr.bf16.mxu0 0
      %834 = vmatpush2.bf16.msra.mxu0 0
      %835 = vmatprep.subr.bf16.mxu0 0
      %836 = vmatpush2.bf16.msra.mxu0 0
      %837 = vmatprep.subr.bf16.mxu0 0
      %838 = vmatpush2.bf16.msra.mxu0 0
      %839 = vmatprep.subr.bf16.mxu0 0
      %840 = vmatpush2.bf16.msra.mxu0 0
      %841 = vmatprep.subr.bf16.mxu0 0
      %842 = vmatpush2.bf16.msra.mxu0 0
      %843 = vmatprep.mubr.bf16.mxu0 0
      %844 = vmatmul.mubr.bf16.gmra.mxu0 %v806
      %v845 = vpop.f32.mrf.mxu0
      %v846 = vadd.f32 0.0, %v845
      %v847 = vpop.f32.mrf.mxu0
      %v848 = vpop.f32.mrf.mxu0
      %v849 = vpop.f32.mrf.mxu0
      %850 = vdwg.mxu0
      %v851 = vld [vmem:[%s3] sm:$0x1]
      %v852 = vld [vmem:[%s3 + $0x4] sm:$0x1]
      %v853 = vpack.c.bf16 %v754, %v708
      %v854 = vpack.c.bf16 %v846, %v800
      %v855 = vld [vmem:[%s2] sm:$0xf]
      %v856 = vld [vmem:[%s2 + $0x4] sm:$0xf]
      %v857 = vld [vmem:[%s2 + $0x8] sm:$0xf]
      %v858 = vld [vmem:[%s2 + $0xc] sm:$0xf]
      %v859 = vlaneseq
      %v860 = vshrl.u32 %v859, 7
      %v861 = vsub.s32 0, %v860
      %v862 = vrot.slane %v851, %v861
      %v867 = vunpack.c.l.b16 %v855
      %v868 = vunpack.c.l.b16 %v856
      %v869 = vunpack.c.l.b16 %v857
      %v870 = vunpack.c.l.b16 %v858
      %v871 = vpack.c.b16 %v868, %v867
      %v872 = vpack.c.b16 %v870, %v869
      %v876 = vsel %vm233, %v853, 0
      %v879 = vsel %vm233, %v854, 0
      %881 = vmatprep.subr.bf16.mxu0 0
      %882 = vmatpush1.bf16.msra.mxu0 0
      %883 = vmatprep.subr.bf16.mxu0 0
      %884 = vmatpush1.bf16.msra.mxu0 0
      %885 = vmatprep.subr.bf16.mxu0 0
      %886 = vmatpush1.bf16.msra.mxu0 0
      %887 = vmatprep.subr.bf16.mxu0 0
      %888 = vmatpush1.bf16.msra.mxu0 0
      %889 = vmatprep.subr.bf16.mxu0 0
      %890 = vmatpush1.bf16.msra.mxu0 0
      %891 = vmatprep.subr.bf16.mxu0 0
      %892 = vmatpush1.bf16.msra.mxu0 0
      %893 = vmatprep.subr.bf16.mxu0 0
      %894 = vmatpush1.bf16.msra.mxu0 %v872
      %895 = vmatprep.subr.bf16.mxu0 0
      %896 = vmatpush1.bf16.msra.mxu0 %v871
      %897 = vmatprep.subr.bf16.mxu0 0
      %898 = vmatpush2.bf16.msra.mxu0 0
      %899 = vmatprep.subr.bf16.mxu0 0
      %900 = vmatpush2.bf16.msra.mxu0 0
      %901 = vmatprep.subr.bf16.mxu0 0
      %902 = vmatpush2.bf16.msra.mxu0 0
      %903 = vmatprep.subr.bf16.mxu0 0
      %904 = vmatpush2.bf16.msra.mxu0 0
      %905 = vmatprep.subr.bf16.mxu0 0
      %906 = vmatpush2.bf16.msra.mxu0 0
      %907 = vmatprep.subr.bf16.mxu0 0
      %908 = vmatpush2.bf16.msra.mxu0 0
      %909 = vmatprep.subr.bf16.mxu0 0
      %910 = vmatpush2.bf16.msra.mxu0 0
      %911 = vmatprep.subr.bf16.mxu0 0
      %912 = vmatpush2.bf16.msra.mxu0 0
      %913 = vmatprep.mubr.bf16.mxu0 0
      %914 = vmatmul.mubr.bf16.gmra.mxu0 %v876
      %v915 = vpop.f32.mrf.mxu0
      %v916 = vadd.f32 %v862, %v915
      %v917 = vpop.f32.mrf.mxu0
      %v918 = vpop.f32.mrf.mxu0
      %v919 = vadd.f32 %v862, %v918
      %v920 = vpop.f32.mrf.mxu0
      %921 = vmatprep.mubr.bf16.mxu0 0
      %922 = vmatmul.mubr.bf16.gmra.mxu0 %v879
      %v923 = vpop.f32.mrf.mxu0
      %v924 = vadd.f32 %v862, %v923
      %v925 = vpop.f32.mrf.mxu0
      %v926 = vpop.f32.mrf.mxu0
      %v927 = vadd.f32 %v862, %v926
      %v928 = vpop.f32.mrf.mxu0
      %929 = vdwg.mxu0
      %v930 = vmax.f32 %v916, 0.0
      %v931 = vmax.f32 %v919, 0.0
      %v932 = vmax.f32 %v924, 0.0
      %v933 = vmax.f32 %v927, 0.0
      %v934 = vpack.c.bf16 %v931, %v930
      %v935 = vpack.c.bf16 %v933, %v932
      %s936 = scalar_lea.vmem %s2, 16
      %v937 = vld [vmem:[%s936] sm:$0xf]
      %v938 = vld [vmem:[%s936 + $0x4] sm:$0xf]
      %v939 = vld [vmem:[%s936 + $0x8] sm:$0xf]
      %v940 = vld [vmem:[%s936 + $0xc] sm:$0xf]
      %v941 = vlaneseq
      %v942 = vshrl.u32 %v941, 7
      %v943 = vsub.s32 0, %v942
      %v944 = vrot.slane %v852, %v943
      %v949 = vunpack.c.l.b16 %v937
      %v950 = vunpack.c.l.b16 %v938
      %v951 = vunpack.c.l.b16 %v939
      %v952 = vunpack.c.l.b16 %v940
      %v953 = vpack.c.b16 %v950, %v949
      %v954 = vpack.c.b16 %v952, %v951
      %v958 = vsel %vm233, %v934, 0
      %v961 = vsel %vm233, %v935, 0
      %963 = vmatprep.subr.bf16.mxu0 0
      %964 = vmatpush1.bf16.msra.mxu0 0
      %965 = vmatprep.subr.bf16.mxu0 0
      %966 = vmatpush1.bf16.msra.mxu0 0
      %967 = vmatprep.subr.bf16.mxu0 0
      %968 = vmatpush1.bf16.msra.mxu0 0
      %969 = vmatprep.subr.bf16.mxu0 0
      %970 = vmatpush1.bf16.msra.mxu0 0
      %971 = vmatprep.subr.bf16.mxu0 0
      %972 = vmatpush1.bf16.msra.mxu0 0
      %973 = vmatprep.subr.bf16.mxu0 0
      %974 = vmatpush1.bf16.msra.mxu0 0
      %975 = vmatprep.subr.bf16.mxu0 0
      %976 = vmatpush1.bf16.msra.mxu0 %v954
      %977 = vmatprep.subr.bf16.mxu0 0
      %978 = vmatpush1.bf16.msra.mxu0 %v953
      %979 = vmatprep.subr.bf16.mxu0 0
      %980 = vmatpush2.bf16.msra.mxu0 0
      %981 = vmatprep.subr.bf16.mxu0 0
      %982 = vmatpush2.bf16.msra.mxu0 0
      %983 = vmatprep.subr.bf16.mxu0 0
      %984 = vmatpush2.bf16.msra.mxu0 0
      %985 = vmatprep.subr.bf16.mxu0 0
      %986 = vmatpush2.bf16.msra.mxu0 0
      %987 = vmatprep.subr.bf16.mxu0 0
      %988 = vmatpush2.bf16.msra.mxu0 0
      %989 = vmatprep.subr.bf16.mxu0 0
      %990 = vmatpush2.bf16.msra.mxu0 0
      %991 = vmatprep.subr.bf16.mxu0 0
      %992 = vmatpush2.bf16.msra.mxu0 0
      %993 = vmatprep.subr.bf16.mxu0 0
      %994 = vmatpush2.bf16.msra.mxu0 0
      %995 = vmatprep.mubr.bf16.mxu0 0
      %996 = vmatmul.mubr.bf16.gmra.mxu0 %v958
      %v997 = vpop.f32.mrf.mxu0
      %v998 = vadd.f32 %v944, %v997
      %v999 = vpop.f32.mrf.mxu0
      %v1000 = vpop.f32.mrf.mxu0
      %v1001 = vadd.f32 %v944, %v1000
      %v1002 = vpop.f32.mrf.mxu0
      %1003 = vmatprep.mubr.bf16.mxu0 0
      %1004 = vmatmul.mubr.bf16.gmra.mxu0 %v961
      %v1005 = vpop.f32.mrf.mxu0
      %v1006 = vadd.f32 %v944, %v1005
      %v1007 = vpop.f32.mrf.mxu0
      %v1008 = vpop.f32.mrf.mxu0
      %v1009 = vadd.f32 %v944, %v1008
      %v1010 = vpop.f32.mrf.mxu0
      %1011 = vdwg.mxu0
      %v1012 = vadd.f32 %v998, %v708
      %v1013 = vadd.f32 %v1001, %v754
      %v1014 = vadd.f32 %v1006, %v800
      %v1015 = vadd.f32 %v1009, %v846
      %v1016 = vpack.c.bf16 %v1013, %v1012
      %v1017 = vpack.c.bf16 %v1015, %v1014
      %s1018 = scalar_lea.vmem %s1, 48
      %v1019 = vld [vmem:[%s1018] sm:$0xf]
      %v1020 = vld [vmem:[%s1018 + $0x4] sm:$0xf]
      %v1021 = vld [vmem:[%s1018 + $0x8] sm:$0xf]
      %v1022 = vld [vmem:[%s1018 + $0xc] sm:$0xf]
      %v1027 = vunpack.c.l.b16 %v1019
      %v1028 = vunpack.c.l.b16 %v1020
      %v1029 = vunpack.c.l.b16 %v1021
      %v1030 = vunpack.c.l.b16 %v1022
      %v1031 = vpack.c.b16 %v1028, %v1027
      %v1032 = vpack.c.b16 %v1030, %v1029
      %v1036 = vsel %vm233, %v1016, 0
      %v1039 = vsel %vm233, %v1017, 0
      %1041 = vmatprep.subr.bf16.mxu0 0
      %1042 = vmatpush1.bf16.msra.mxu0 0
      %1043 = vmatprep.subr.bf16.mxu0 0
      %1044 = vmatpush1.bf16.msra.mxu0 0
      %1045 = vmatprep.subr.bf16.mxu0 0
      %1046 = vmatpush1.bf16.msra.mxu0 0
      %1047 = vmatprep.subr.bf16.mxu0 0
      %1048 = vmatpush1.bf16.msra.mxu0 0
      %1049 = vmatprep.subr.bf16.mxu0 0
      %1050 = vmatpush1.bf16.msra.mxu0 0
      %1051 = vmatprep.subr.bf16.mxu0 0
      %1052 = vmatpush1.bf16.msra.mxu0 0
      %1053 = vmatprep.subr.bf16.mxu0 0
      %1054 = vmatpush1.bf16.msra.mxu0 %v1032
      %1055 = vmatprep.subr.bf16.mxu0 0
      %1056 = vmatpush1.bf16.msra.mxu0 %v1031
      %1057 = vmatprep.subr.bf16.mxu0 0
      %1058 = vmatpush2.bf16.msra.mxu0 0
      %1059 = vmatprep.subr.bf16.mxu0 0
      %1060 = vmatpush2.bf16.msra.mxu0 0
      %1061 = vmatprep.subr.bf16.mxu0 0
      %1062 = vmatpush2.bf16.msra.mxu0 0
      %1063 = vmatprep.subr.bf16.mxu0 0
      %1064 = vmatpush2.bf16.msra.mxu0 0
      %1065 = vmatprep.subr.bf16.mxu0 0
      %1066 = vmatpush2.bf16.msra.mxu0 0
      %1067 = vmatprep.subr.bf16.mxu0 0
      %1068 = vmatpush2.bf16.msra.mxu0 0
      %1069 = vmatprep.subr.bf16.mxu0 0
      %1070 = vmatpush2.bf16.msra.mxu0 0
      %1071 = vmatprep.subr.bf16.mxu0 0
      %1072 = vmatpush2.bf16.msra.mxu0 0
      %1073 = vmatprep.mubr.bf16.mxu0 0
      %1074 = vmatmul.mubr.bf16.gmra.mxu0 %v1036
      %v1075 = vpop.f32.mrf.mxu0
      %v1076 = vadd.f32 0.0, %v1075
      %v1077 = vpop.f32.mrf.mxu0
      %v1078 = vpop.f32.mrf.mxu0
      %v1079 = vadd.f32 0.0, %v1078
      %v1080 = vpop.f32.mrf.mxu0
      %1081 = vmatprep.mubr.bf16.mxu0 0
      %1082 = vmatmul.mubr.bf16.gmra.mxu0 %v1039
      %v1083 = vpop.f32.mrf.mxu0
      %v1084 = vadd.f32 0.0, %v1083
      %v1085 = vpop.f32.mrf.mxu0
      %v1086 = vpop.f32.mrf.mxu0
      %v1087 = vadd.f32 0.0, %v1086
      %v1088 = vpop.f32.mrf.mxu0
      %1089 = vdwg.mxu0
      %s1090 = scalar_lea.vmem %s1, 64
      %v1091 = vld [vmem:[%s1090] sm:$0xf]
      %v1092 = vld [vmem:[%s1090 + $0x4] sm:$0xf]
      %v1093 = vld [vmem:[%s1090 + $0x8] sm:$0xf]
      %v1094 = vld [vmem:[%s1090 + $0xc] sm:$0xf]
      %v1099 = vunpack.c.l.b16 %v1091
      %v1100 = vunpack.c.l.b16 %v1092
      %v1101 = vunpack.c.l.b16 %v1093
      %v1102 = vunpack.c.l.b16 %v1094
      %v1103 = vpack.c.b16 %v1100, %v1099
      %v1104 = vpack.c.b16 %v1102, %v1101
      %1107 = vmatprep.subr.bf16.mxu0 0
      %1108 = vmatpush1.bf16.msra.mxu0 0
      %1109 = vmatprep.subr.bf16.mxu0 0
      %1110 = vmatpush1.bf16.msra.mxu0 0
      %1111 = vmatprep.subr.bf16.mxu0 0
      %1112 = vmatpush1.bf16.msra.mxu0 0
      %1113 = vmatprep.subr.bf16.mxu0 0
      %1114 = vmatpush1.bf16.msra.mxu0 0
      %1115 = vmatprep.subr.bf16.mxu0 0
      %1116 = vmatpush1.bf16.msra.mxu0 0
      %1117 = vmatprep.subr.bf16.mxu0 0
      %1118 = vmatpush1.bf16.msra.mxu0 0
      %1119 = vmatprep.subr.bf16.mxu0 0
      %1120 = vmatpush1.bf16.msra.mxu0 %v1104
      %1121 = vmatprep.subr.bf16.mxu0 0
      %1122 = vmatpush1.bf16.msra.mxu0 %v1103
      %1123 = vmatprep.subr.bf16.mxu0 0
      %1124 = vmatpush2.bf16.msra.mxu0 0
      %1125 = vmatprep.subr.bf16.mxu0 0
      %1126 = vmatpush2.bf16.msra.mxu0 0
      %1127 = vmatprep.subr.bf16.mxu0 0
      %1128 = vmatpush2.bf16.msra.mxu0 0
      %1129 = vmatprep.subr.bf16.mxu0 0
      %1130 = vmatpush2.bf16.msra.mxu0 0
      %1131 = vmatprep.subr.bf16.mxu0 0
      %1132 = vmatpush2.bf16.msra.mxu0 0
      %1133 = vmatprep.subr.bf16.mxu0 0
      %1134 = vmatpush2.bf16.msra.mxu0 0
      %1135 = vmatprep.subr.bf16.mxu0 0
      %1136 = vmatpush2.bf16.msra.mxu0 0
      %1137 = vmatprep.subr.bf16.mxu0 0
      %1138 = vmatpush2.bf16.msra.mxu0 0
      %1139 = vmatprep.mubr.bf16.mxu0 0
      %1140 = vmatmul.mubr.bf16.gmra.mxu0 %v1036
      %v1141 = vpop.f32.mrf.mxu0
      %v1142 = vadd.f32 0.0, %v1141
      %v1143 = vpop.f32.mrf.mxu0
      %v1144 = vpop.f32.mrf.mxu0
      %v1145 = vadd.f32 0.0, %v1144
      %v1146 = vpop.f32.mrf.mxu0
      %1147 = vmatprep.mubr.bf16.mxu0 0
      %1148 = vmatmul.mubr.bf16.gmra.mxu0 %v1039
      %v1149 = vpop.f32.mrf.mxu0
      %v1150 = vadd.f32 0.0, %v1149
      %v1151 = vpop.f32.mrf.mxu0
      %v1152 = vpop.f32.mrf.mxu0
      %v1153 = vadd.f32 0.0, %v1152
      %v1154 = vpop.f32.mrf.mxu0
      %1155 = vdwg.mxu0
      %s1156 = scalar_lea.vmem %s1, 80
      %v1157 = vld [vmem:[%s1156] sm:$0xf]
      %v1158 = vld [vmem:[%s1156 + $0x4] sm:$0xf]
      %v1159 = vld [vmem:[%s1156 + $0x8] sm:$0xf]
      %v1160 = vld [vmem:[%s1156 + $0xc] sm:$0xf]
      %v1165 = vunpack.c.l.b16 %v1157
      %v1166 = vunpack.c.l.b16 %v1158
      %v1167 = vunpack.c.l.b16 %v1159
      %v1168 = vunpack.c.l.b16 %v1160
      %v1169 = vpack.c.b16 %v1166, %v1165
      %v1170 = vpack.c.b16 %v1168, %v1167
      %1173 = vmatprep.subr.bf16.mxu0 0
      %1174 = vmatpush1.bf16.msra.mxu0 0
      %1175 = vmatprep.subr.bf16.mxu0 0
      %1176 = vmatpush1.bf16.msra.mxu0 0
      %1177 = vmatprep.subr.bf16.mxu0 0
      %1178 = vmatpush1.bf16.msra.mxu0 0
      %1179 = vmatprep.subr.bf16.mxu0 0
      %1180 = vmatpush1.bf16.msra.mxu0 0
      %1181 = vmatprep.subr.bf16.mxu0 0
      %1182 = vmatpush1.bf16.msra.mxu0 0
      %1183 = vmatprep.subr.bf16.mxu0 0
      %1184 = vmatpush1.bf16.msra.mxu0 0
      %1185 = vmatprep.subr.bf16.mxu0 0
      %1186 = vmatpush1.bf16.msra.mxu0 %v1170
      %1187 = vmatprep.subr.bf16.mxu0 0
      %1188 = vmatpush1.bf16.msra.mxu0 %v1169
      %1189 = vmatprep.subr.bf16.mxu0 0
      %1190 = vmatpush2.bf16.msra.mxu0 0
      %1191 = vmatprep.subr.bf16.mxu0 0
      %1192 = vmatpush2.bf16.msra.mxu0 0
      %1193 = vmatprep.subr.bf16.mxu0 0
      %1194 = vmatpush2.bf16.msra.mxu0 0
      %1195 = vmatprep.subr.bf16.mxu0 0
      %1196 = vmatpush2.bf16.msra.mxu0 0
      %1197 = vmatprep.subr.bf16.mxu0 0
      %1198 = vmatpush2.bf16.msra.mxu0 0
      %1199 = vmatprep.subr.bf16.mxu0 0
      %1200 = vmatpush2.bf16.msra.mxu0 0
      %1201 = vmatprep.subr.bf16.mxu0 0
      %1202 = vmatpush2.bf16.msra.mxu0 0
      %1203 = vmatprep.subr.bf16.mxu0 0
      %1204 = vmatpush2.bf16.msra.mxu0 0
      %1205 = vmatprep.mubr.bf16.mxu0 0
      %1206 = vmatmul.mubr.bf16.gmra.mxu0 %v1036
      %v1207 = vpop.f32.mrf.mxu0
      %v1208 = vadd.f32 0.0, %v1207
      %v1209 = vpop.f32.mrf.mxu0
      %v1210 = vpop.f32.mrf.mxu0
      %v1211 = vadd.f32 0.0, %v1210
      %v1212 = vpop.f32.mrf.mxu0
      %1213 = vmatprep.mubr.bf16.mxu0 0
      %1214 = vmatmul.mubr.bf16.gmra.mxu0 %v1039
      %v1215 = vpop.f32.mrf.mxu0
      %v1216 = vadd.f32 0.0, %v1215
      %v1217 = vpop.f32.mrf.mxu0
      %v1218 = vpop.f32.mrf.mxu0
      %v1219 = vadd.f32 0.0, %v1218
      %v1220 = vpop.f32.mrf.mxu0
      %1221 = vdwg.mxu0
      %v1222 = vpack.c.bf16 %v1076, %v1076
      %v1223 = vpack.c.bf16 %v1079, %v1079
      %v1224 = vpack.c.bf16 %v1084, %v1084
      %v1225 = vpack.c.bf16 %v1087, %v1087
      %v1226 = vpack.c.bf16 %v1142, %v1142
      %v1227 = vpack.c.bf16 %v1145, %v1145
      %v1228 = vpack.c.bf16 %v1150, %v1150
      %v1229 = vpack.c.bf16 %v1153, %v1153
      %v1230 = vpack.c.bf16 %v1208, %v1208
      %v1231 = vpack.c.bf16 %v1211, %v1211
      %v1232 = vpack.c.bf16 %v1216, %v1216
      %v1233 = vpack.c.bf16 %v1219, %v1219
      %v1235 = vsel %vm233, %v1222, 0
      %v1238 = vsel %vm233, %v1226, 0
      %1240 = vmatprep.subr.bf16.mxu0 0
      %1241 = vmatpush1.bf16.xpose.msra.mxu0 0
      %1242 = vmatprep.subr.bf16.mxu0 0
      %1243 = vmatpush1.bf16.xpose.msra.mxu0 0
      %1244 = vmatprep.subr.bf16.mxu0 0
      %1245 = vmatpush1.bf16.xpose.msra.mxu0 0
      %1246 = vmatprep.subr.bf16.mxu0 0
      %1247 = vmatpush1.bf16.xpose.msra.mxu0 0
      %1248 = vmatprep.subr.bf16.mxu0 0
      %1249 = vmatpush1.bf16.xpose.msra.mxu0 0
      %1250 = vmatprep.subr.bf16.mxu0 0
      %1251 = vmatpush1.bf16.xpose.msra.mxu0 0
      %1252 = vmatprep.subr.bf16.mxu0 0
      %1253 = vmatpush1.bf16.xpose.msra.mxu0 0
      %1254 = vmatprep.subr.bf16.mxu0 0
      %1255 = vmatpush1.bf16.xpose.msra.mxu0 %v1238
      %1256 = vmatprep.subr.bf16.mxu0 0
      %1257 = vmatpush2.bf16.xpose.msra.mxu0 0
      %1258 = vmatprep.subr.bf16.mxu0 0
      %1259 = vmatpush2.bf16.xpose.msra.mxu0 0
      %1260 = vmatprep.subr.bf16.mxu0 0
      %1261 = vmatpush2.bf16.xpose.msra.mxu0 0
      %1262 = vmatprep.subr.bf16.mxu0 0
      %1263 = vmatpush2.bf16.xpose.msra.mxu0 0
      %1264 = vmatprep.subr.bf16.mxu0 0
      %1265 = vmatpush2.bf16.xpose.msra.mxu0 0
      %1266 = vmatprep.subr.bf16.mxu0 0
      %1267 = vmatpush2.bf16.xpose.msra.mxu0 0
      %1268 = vmatprep.subr.bf16.mxu0 0
      %1269 = vmatpush2.bf16.xpose.msra.mxu0 0
      %1270 = vmatprep.subr.bf16.mxu0 0
      %1271 = vmatpush2.bf16.xpose.msra.mxu0 0
      %1272 = vmatprep.mubr.bf16.mxu0 0
      %1273 = vmatmul.mubr.bf16.gmra.mxu0 %v1235
      %v1274 = vpop.f32.mrf.mxu0
      %v1275 = vadd.f32 %v206, %v1274
      %v1276 = vpop.f32.mrf.mxu0
      %v1277 = vpop.f32.mrf.mxu0
      %v1278 = vpop.f32.mrf.mxu0
      %1279 = vdwg.mxu0
      %v1281 = vsel %vm233, %v1223, 0
      %v1284 = vsel %vm233, %v1227, 0
      %1286 = vmatprep.subr.bf16.mxu0 0
      %1287 = vmatpush1.bf16.xpose.msra.mxu0 0
      %1288 = vmatprep.subr.bf16.mxu0 0
      %1289 = vmatpush1.bf16.xpose.msra.mxu0 0
      %1290 = vmatprep.subr.bf16.mxu0 0
      %1291 = vmatpush1.bf16.xpose.msra.mxu0 0
      %1292 = vmatprep.subr.bf16.mxu0 0
      %1293 = vmatpush1.bf16.xpose.msra.mxu0 0
      %1294 = vmatprep.subr.bf16.mxu0 0
      %1295 = vmatpush1.bf16.xpose.msra.mxu0 0
      %1296 = vmatprep.subr.bf16.mxu0 0
      %1297 = vmatpush1.bf16.xpose.msra.mxu0 0
      %1298 = vmatprep.subr.bf16.mxu0 0
      %1299 = vmatpush1.bf16.xpose.msra.mxu0 0
      %1300 = vmatprep.subr.bf16.mxu0 0
      %1301 = vmatpush1.bf16.xpose.msra.mxu0 %v1284
      %1302 = vmatprep.subr.bf16.mxu0 0
      %1303 = vmatpush2.bf16.xpose.msra.mxu0 0
      %1304 = vmatprep.subr.bf16.mxu0 0
      %1305 = vmatpush2.bf16.xpose.msra.mxu0 0
      %1306 = vmatprep.subr.bf16.mxu0 0
      %1307 = vmatpush2.bf16.xpose.msra.mxu0 0
      %1308 = vmatprep.subr.bf16.mxu0 0
      %1309 = vmatpush2.bf16.xpose.msra.mxu0 0
      %1310 = vmatprep.subr.bf16.mxu0 0
      %1311 = vmatpush2.bf16.xpose.msra.mxu0 0
      %1312 = vmatprep.subr.bf16.mxu0 0
      %1313 = vmatpush2.bf16.xpose.msra.mxu0 0
      %1314 = vmatprep.subr.bf16.mxu0 0
      %1315 = vmatpush2.bf16.xpose.msra.mxu0 0
      %1316 = vmatprep.subr.bf16.mxu0 0
      %1317 = vmatpush2.bf16.xpose.msra.mxu0 0
      %1318 = vmatprep.mubr.bf16.mxu0 0
      %1319 = vmatmul.mubr.bf16.gmra.mxu0 %v1281
      %v1320 = vpop.f32.mrf.mxu0
      %v1321 = vadd.f32 %v206, %v1320
      %v1322 = vpop.f32.mrf.mxu0
      %v1323 = vpop.f32.mrf.mxu0
      %v1324 = vpop.f32.mrf.mxu0
      %1325 = vdwg.mxu0
      %v1327 = vsel %vm233, %v1224, 0
      %v1330 = vsel %vm233, %v1228, 0
      %1332 = vmatprep.subr.bf16.mxu0 0
      %1333 = vmatpush1.bf16.xpose.msra.mxu0 0
      %1334 = vmatprep.subr.bf16.mxu0 0
      %1335 = vmatpush1.bf16.xpose.msra.mxu0 0
      %1336 = vmatprep.subr.bf16.mxu0 0
      %1337 = vmatpush1.bf16.xpose.msra.mxu0 0
      %1338 = vmatprep.subr.bf16.mxu0 0
      %1339 = vmatpush1.bf16.xpose.msra.mxu0 0
      %1340 = vmatprep.subr.bf16.mxu0 0
      %1341 = vmatpush1.bf16.xpose.msra.mxu0 0
      %1342 = vmatprep.subr.bf16.mxu0 0
      %1343 = vmatpush1.bf16.xpose.msra.mxu0 0
      %1344 = vmatprep.subr.bf16.mxu0 0
      %1345 = vmatpush1.bf16.xpose.msra.mxu0 0
      %1346 = vmatprep.subr.bf16.mxu0 0
      %1347 = vmatpush1.bf16.xpose.msra.mxu0 %v1330
      %1348 = vmatprep.subr.bf16.mxu0 0
      %1349 = vmatpush2.bf16.xpose.msra.mxu0 0
      %1350 = vmatprep.subr.bf16.mxu0 0
      %1351 = vmatpush2.bf16.xpose.msra.mxu0 0
      %1352 = vmatprep.subr.bf16.mxu0 0
      %1353 = vmatpush2.bf16.xpose.msra.mxu0 0
      %1354 = vmatprep.subr.bf16.mxu0 0
      %1355 = vmatpush2.bf16.xpose.msra.mxu0 0
      %1356 = vmatprep.subr.bf16.mxu0 0
      %1357 = vmatpush2.bf16.xpose.msra.mxu0 0
      %1358 = vmatprep.subr.bf16.mxu0 0
      %1359 = vmatpush2.bf16.xpose.msra.mxu0 0
      %1360 = vmatprep.subr.bf16.mxu0 0
      %1361 = vmatpush2.bf16.xpose.msra.mxu0 0
      %1362 = vmatprep.subr.bf16.mxu0 0
      %1363 = vmatpush2.bf16.xpose.msra.mxu0 0
      %1364 = vmatprep.mubr.bf16.mxu0 0
      %1365 = vmatmul.mubr.bf16.gmra.mxu0 %v1327
      %v1366 = vpop.f32.mrf.mxu0
      %v1367 = vadd.f32 %v206, %v1366
      %v1368 = vpop.f32.mrf.mxu0
      %v1369 = vpop.f32.mrf.mxu0
      %v1370 = vpop.f32.mrf.mxu0
      %1371 = vdwg.mxu0
      %v1373 = vsel %vm233, %v1225, 0
      %v1376 = vsel %vm233, %v1229, 0
      %1378 = vmatprep.subr.bf16.mxu0 0
      %1379 = vmatpush1.bf16.xpose.msra.mxu0 0
      %1380 = vmatprep.subr.bf16.mxu0 0
      %1381 = vmatpush1.bf16.xpose.msra.mxu0 0
      %1382 = vmatprep.subr.bf16.mxu0 0
      %1383 = vmatpush1.bf16.xpose.msra.mxu0 0
      %1384 = vmatprep.subr.bf16.mxu0 0
      %1385 = vmatpush1.bf16.xpose.msra.mxu0 0
      %1386 = vmatprep.subr.bf16.mxu0 0
      %1387 = vmatpush1.bf16.xpose.msra.mxu0 0
      %1388 = vmatprep.subr.bf16.mxu0 0
      %1389 = vmatpush1.bf16.xpose.msra.mxu0 0
      %1390 = vmatprep.subr.bf16.mxu0 0
      %1391 = vmatpush1.bf16.xpose.msra.mxu0 0
      %1392 = vmatprep.subr.bf16.mxu0 0
      %1393 = vmatpush1.bf16.xpose.msra.mxu0 %v1376
      %1394 = vmatprep.subr.bf16.mxu0 0
      %1395 = vmatpush2.bf16.xpose.msra.mxu0 0
      %1396 = vmatprep.subr.bf16.mxu0 0
      %1397 = vmatpush2.bf16.xpose.msra.mxu0 0
      %1398 = vmatprep.subr.bf16.mxu0 0
      %1399 = vmatpush2.bf16.xpose.msra.mxu0 0
      %1400 = vmatprep.subr.bf16.mxu0 0
      %1401 = vmatpush2.bf16.xpose.msra.mxu0 0
      %1402 = vmatprep.subr.bf16.mxu0 0
      %1403 = vmatpush2.bf16.xpose.msra.mxu0 0
      %1404 = vmatprep.subr.bf16.mxu0 0
      %1405 = vmatpush2.bf16.xpose.msra.mxu0 0
      %1406 = vmatprep.subr.bf16.mxu0 0
      %1407 = vmatpush2.bf16.xpose.msra.mxu0 0
      %1408 = vmatprep.subr.bf16.mxu0 0
      %1409 = vmatpush2.bf16.xpose.msra.mxu0 0
      %1410 = vmatprep.mubr.bf16.mxu0 0
      %1411 = vmatmul.mubr.bf16.gmra.mxu0 %v1373
      %v1412 = vpop.f32.mrf.mxu0
      %v1413 = vadd.f32 %v206, %v1412
      %v1414 = vpop.f32.mrf.mxu0
      %v1415 = vpop.f32.mrf.mxu0
      %v1416 = vpop.f32.mrf.mxu0
      %1417 = vdwg.mxu0
      %v1418 = vsel %vm617, %v1275, -inf
      %1419 = vmax.xlane.f32.xlu0 %v1418
      %v1420 = vpop.xlane.xlu0 %1419
      %v1421 = vsel %vm617, %v1321, -inf
      %1422 = vmax.xlane.f32.xlu0 %v1421
      %v1423 = vpop.xlane.xlu0 %1422
      %v1424 = vsel %vm617, %v1367, -inf
      %1425 = vmax.xlane.f32.xlu0 %v1424
      %v1426 = vpop.xlane.xlu0 %1425
      %v1427 = vsel %vm617, %v1413, -inf
      %1428 = vmax.xlane.f32.xlu0 %v1427
      %v1429 = vpop.xlane.xlu0 %1428
      %v1430 = vsub.f32 %v1275, %v1420
      %v1431 = vsub.f32 %v1321, %v1423
      %v1432 = vsub.f32 %v1367, %v1426
      %v1433 = vsub.f32 %v1413, %v1429
      %v1434 = vmul.f32 %v1430, 1.442695
      %v1435 = vpow.pop %v1434
      %v1436 = vmul.f32 %v1431, 1.442695
      %v1437 = vpow.pop %v1436
      %v1438 = vmul.f32 %v1432, 1.442695
      %v1439 = vpow.pop %v1438
      %v1440 = vmul.f32 %v1433, 1.442695
      %v1441 = vpow.pop %v1440
      %v1442 = vsel %vm617, %v1435, 0.0
      %1443 = vadd.xlane.f32.xlu0 %v1442
      %v1444 = vpop.xlane.xlu0 %1443
      %v1445 = vsel %vm617, %v1437, 0.0
      %1446 = vadd.xlane.f32.xlu0 %v1445
      %v1447 = vpop.xlane.xlu0 %1446
      %v1448 = vsel %vm617, %v1439, 0.0
      %1449 = vadd.xlane.f32.xlu0 %v1448
      %v1450 = vpop.xlane.xlu0 %1449
      %v1451 = vsel %vm617, %v1441, 0.0
      %1452 = vadd.xlane.f32.xlu0 %v1451
      %v1453 = vpop.xlane.xlu0 %1452
      %v1454 = vrcp.pop %v1444
      %v1455 = vrcp.pop %v1447
      %v1456 = vrcp.pop %v1450
      %v1457 = vrcp.pop %v1453
      %v1458 = vmul.f32 %v1435, %v1454
      %v1459 = vmul.f32 %v1437, %v1455
      %v1460 = vmul.f32 %v1439, %v1456
      %v1461 = vmul.f32 %v1441, %v1457
      %v1462 = vpack.c.bf16 %v1458, %v1458
      %v1463 = vpack.c.bf16 %v1459, %v1459
      %v1464 = vpack.c.bf16 %v1460, %v1460
      %v1465 = vpack.c.bf16 %v1461, %v1461
      %v1467 = vsel %vm617, %v1462, 0
      %v1470 = vsel %vm669, %v1230, 0
      %1472 = vmatprep.subr.bf16.mxu0 0
      %1473 = vmatpush1.bf16.msra.mxu0 0
      %1474 = vmatprep.subr.bf16.mxu0 0
      %1475 = vmatpush1.bf16.msra.mxu0 0
      %1476 = vmatprep.subr.bf16.mxu0 0
      %1477 = vmatpush1.bf16.msra.mxu0 0
      %1478 = vmatprep.subr.bf16.mxu0 0
      %1479 = vmatpush1.bf16.msra.mxu0 0
      %1480 = vmatprep.subr.bf16.mxu0 0
      %1481 = vmatpush1.bf16.msra.mxu0 0
      %1482 = vmatprep.subr.bf16.mxu0 0
      %1483 = vmatpush1.bf16.msra.mxu0 0
      %1484 = vmatprep.subr.bf16.mxu0 0
      %1485 = vmatpush1.bf16.msra.mxu0 0
      %1486 = vmatprep.subr.bf16.mxu0 0
      %1487 = vmatpush1.bf16.msra.mxu0 %v1470
      %1488 = vmatprep.subr.bf16.mxu0 0
      %1489 = vmatpush2.bf16.msra.mxu0 0
      %1490 = vmatprep.subr.bf16.mxu0 0
      %1491 = vmatpush2.bf16.msra.mxu0 0
      %1492 = vmatprep.subr.bf16.mxu0 0
      %1493 = vmatpush2.bf16.msra.mxu0 0
      %1494 = vmatprep.subr.bf16.mxu0 0
      %1495 = vmatpush2.bf16.msra.mxu0 0
      %1496 = vmatprep.subr.bf16.mxu0 0
      %1497 = vmatpush2.bf16.msra.mxu0 0
      %1498 = vmatprep.subr.bf16.mxu0 0
      %1499 = vmatpush2.bf16.msra.mxu0 0
      %1500 = vmatprep.subr.bf16.mxu0 0
      %1501 = vmatpush2.bf16.msra.mxu0 0
      %1502 = vmatprep.subr.bf16.mxu0 0
      %1503 = vmatpush2.bf16.msra.mxu0 0
      %1504 = vmatprep.mubr.bf16.mxu0 0
      %1505 = vmatmul.mubr.bf16.gmra.mxu0 %v1467
      %v1506 = vpop.f32.mrf.mxu0
      %v1507 = vadd.f32 0.0, %v1506
      %v1508 = vpop.f32.mrf.mxu0
      %v1509 = vpop.f32.mrf.mxu0
      %v1510 = vpop.f32.mrf.mxu0
      %1511 = vdwg.mxu0
      %v1513 = vsel %vm617, %v1463, 0
      %v1516 = vsel %vm669, %v1231, 0
      %1518 = vmatprep.subr.bf16.mxu0 0
      %1519 = vmatpush1.bf16.msra.mxu0 0
      %1520 = vmatprep.subr.bf16.mxu0 0
      %1521 = vmatpush1.bf16.msra.mxu0 0
      %1522 = vmatprep.subr.bf16.mxu0 0
      %1523 = vmatpush1.bf16.msra.mxu0 0
      %1524 = vmatprep.subr.bf16.mxu0 0
      %1525 = vmatpush1.bf16.msra.mxu0 0
      %1526 = vmatprep.subr.bf16.mxu0 0
      %1527 = vmatpush1.bf16.msra.mxu0 0
      %1528 = vmatprep.subr.bf16.mxu0 0
      %1529 = vmatpush1.bf16.msra.mxu0 0
      %1530 = vmatprep.subr.bf16.mxu0 0
      %1531 = vmatpush1.bf16.msra.mxu0 0
      %1532 = vmatprep.subr.bf16.mxu0 0
      %1533 = vmatpush1.bf16.msra.mxu0 %v1516
      %1534 = vmatprep.subr.bf16.mxu0 0
      %1535 = vmatpush2.bf16.msra.mxu0 0
      %1536 = vmatprep.subr.bf16.mxu0 0
      %1537 = vmatpush2.bf16.msra.mxu0 0
      %1538 = vmatprep.subr.bf16.mxu0 0
      %1539 = vmatpush2.bf16.msra.mxu0 0
      %1540 = vmatprep.subr.bf16.mxu0 0
      %1541 = vmatpush2.bf16.msra.mxu0 0
      %1542 = vmatprep.subr.bf16.mxu0 0
      %1543 = vmatpush2.bf16.msra.mxu0 0
      %1544 = vmatprep.subr.bf16.mxu0 0
      %1545 = vmatpush2.bf16.msra.mxu0 0
      %1546 = vmatprep.subr.bf16.mxu0 0
      %1547 = vmatpush2.bf16.msra.mxu0 0
      %1548 = vmatprep.subr.bf16.mxu0 0
      %1549 = vmatpush2.bf16.msra.mxu0 0
      %1550 = vmatprep.mubr.bf16.mxu0 0
      %1551 = vmatmul.mubr.bf16.gmra.mxu0 %v1513
      %v1552 = vpop.f32.mrf.mxu0
      %v1553 = vadd.f32 0.0, %v1552
      %v1554 = vpop.f32.mrf.mxu0
      %v1555 = vpop.f32.mrf.mxu0
      %v1556 = vpop.f32.mrf.mxu0
      %1557 = vdwg.mxu0
      %v1559 = vsel %vm617, %v1464, 0
      %v1562 = vsel %vm669, %v1232, 0
      %1564 = vmatprep.subr.bf16.mxu0 0
      %1565 = vmatpush1.bf16.msra.mxu0 0
      %1566 = vmatprep.subr.bf16.mxu0 0
      %1567 = vmatpush1.bf16.msra.mxu0 0
      %1568 = vmatprep.subr.bf16.mxu0 0
      %1569 = vmatpush1.bf16.msra.mxu0 0
      %1570 = vmatprep.subr.bf16.mxu0 0
      %1571 = vmatpush1.bf16.msra.mxu0 0
      %1572 = vmatprep.subr.bf16.mxu0 0
      %1573 = vmatpush1.bf16.msra.mxu0 0
      %1574 = vmatprep.subr.bf16.mxu0 0
      %1575 = vmatpush1.bf16.msra.mxu0 0
      %1576 = vmatprep.subr.bf16.mxu0 0
      %1577 = vmatpush1.bf16.msra.mxu0 0
      %1578 = vmatprep.subr.bf16.mxu0 0
      %1579 = vmatpush1.bf16.msra.mxu0 %v1562
      %1580 = vmatprep.subr.bf16.mxu0 0
      %1581 = vmatpush2.bf16.msra.mxu0 0
      %1582 = vmatprep.subr.bf16.mxu0 0
      %1583 = vmatpush2.bf16.msra.mxu0 0
      %1584 = vmatprep.subr.bf16.mxu0 0
      %1585 = vmatpush2.bf16.msra.mxu0 0
      %1586 = vmatprep.subr.bf16.mxu0 0
      %1587 = vmatpush2.bf16.msra.mxu0 0
      %1588 = vmatprep.subr.bf16.mxu0 0
      %1589 = vmatpush2.bf16.msra.mxu0 0
      %1590 = vmatprep.subr.bf16.mxu0 0
      %1591 = vmatpush2.bf16.msra.mxu0 0
      %1592 = vmatprep.subr.bf16.mxu0 0
      %1593 = vmatpush2.bf16.msra.mxu0 0
      %1594 = vmatprep.subr.bf16.mxu0 0
      %1595 = vmatpush2.bf16.msra.mxu0 0
      %1596 = vmatprep.mubr.bf16.mxu0 0
      %1597 = vmatmul.mubr.bf16.gmra.mxu0 %v1559
      %v1598 = vpop.f32.mrf.mxu0
      %v1599 = vadd.f32 0.0, %v1598
      %v1600 = vpop.f32.mrf.mxu0
      %v1601 = vpop.f32.mrf.mxu0
      %v1602 = vpop.f32.mrf.mxu0
      %1603 = vdwg.mxu0
      %v1605 = vsel %vm617, %v1465, 0
      %v1608 = vsel %vm669, %v1233, 0
      %1610 = vmatprep.subr.bf16.mxu0 0
      %1611 = vmatpush1.bf16.msra.mxu0 0
      %1612 = vmatprep.subr.bf16.mxu0 0
      %1613 = vmatpush1.bf16.msra.mxu0 0
      %1614 = vmatprep.subr.bf16.mxu0 0
      %1615 = vmatpush1.bf16.msra.mxu0 0
      %1616 = vmatprep.subr.bf16.mxu0 0
      %1617 = vmatpush1.bf16.msra.mxu0 0
      %1618 = vmatprep.subr.bf16.mxu0 0
      %1619 = vmatpush1.bf16.msra.mxu0 0
      %1620 = vmatprep.subr.bf16.mxu0 0
      %1621 = vmatpush1.bf16.msra.mxu0 0
      %1622 = vmatprep.subr.bf16.mxu0 0
      %1623 = vmatpush1.bf16.msra.mxu0 0
      %1624 = vmatprep.subr.bf16.mxu0 0
      %1625 = vmatpush1.bf16.msra.mxu0 %v1608
      %1626 = vmatprep.subr.bf16.mxu0 0
      %1627 = vmatpush2.bf16.msra.mxu0 0
      %1628 = vmatprep.subr.bf16.mxu0 0
      %1629 = vmatpush2.bf16.msra.mxu0 0
      %1630 = vmatprep.subr.bf16.mxu0 0
      %1631 = vmatpush2.bf16.msra.mxu0 0
      %1632 = vmatprep.subr.bf16.mxu0 0
      %1633 = vmatpush2.bf16.msra.mxu0 0
      %1634 = vmatprep.subr.bf16.mxu0 0
      %1635 = vmatpush2.bf16.msra.mxu0 0
      %1636 = vmatprep.subr.bf16.mxu0 0
      %1637 = vmatpush2.bf16.msra.mxu0 0
      %1638 = vmatprep.subr.bf16.mxu0 0
      %1639 = vmatpush2.bf16.msra.mxu0 0
      %1640 = vmatprep.subr.bf16.mxu0 0
      %1641 = vmatpush2.bf16.msra.mxu0 0
      %1642 = vmatprep.mubr.bf16.mxu0 0
      %1643 = vmatmul.mubr.bf16.gmra.mxu0 %v1605
      %v1644 = vpop.f32.mrf.mxu0
      %v1645 = vadd.f32 0.0, %v1644
      %v1646 = vpop.f32.mrf.mxu0
      %v1647 = vpop.f32.mrf.mxu0
      %v1648 = vpop.f32.mrf.mxu0
      %1649 = vdwg.mxu0
      %v1650 = vld [vmem:[%s3 + $0x1] sm:$0x1]
      %v1651 = vld [vmem:[%s3 + $0x5] sm:$0x1]
      %v1652 = vpack.c.bf16 %v1553, %v1507
      %v1653 = vpack.c.bf16 %v1645, %v1599
      %s1654 = scalar_lea.vmem %s2, 32
      %v1655 = vld [vmem:[%s1654] sm:$0xf]
      %v1656 = vld [vmem:[%s1654 + $0x4] sm:$0xf]
      %v1657 = vld [vmem:[%s1654 + $0x8] sm:$0xf]
      %v1658 = vld [vmem:[%s1654 + $0xc] sm:$0xf]
      %v1659 = vlaneseq
      %v1660 = vshrl.u32 %v1659, 7
      %v1661 = vsub.s32 0, %v1660
      %v1662 = vrot.slane %v1650, %v1661
      %v1667 = vunpack.c.l.b16 %v1655
      %v1668 = vunpack.c.l.b16 %v1656
      %v1669 = vunpack.c.l.b16 %v1657
      %v1670 = vunpack.c.l.b16 %v1658
      %v1671 = vpack.c.b16 %v1668, %v1667
      %v1672 = vpack.c.b16 %v1670, %v1669
      %v1676 = vsel %vm233, %v1652, 0
      %v1679 = vsel %vm233, %v1653, 0
      %1681 = vmatprep.subr.bf16.mxu0 0
      %1682 = vmatpush1.bf16.msra.mxu0 0
      %1683 = vmatprep.subr.bf16.mxu0 0
      %1684 = vmatpush1.bf16.msra.mxu0 0
      %1685 = vmatprep.subr.bf16.mxu0 0
      %1686 = vmatpush1.bf16.msra.mxu0 0
      %1687 = vmatprep.subr.bf16.mxu0 0
      %1688 = vmatpush1.bf16.msra.mxu0 0
      %1689 = vmatprep.subr.bf16.mxu0 0
      %1690 = vmatpush1.bf16.msra.mxu0 0
      %1691 = vmatprep.subr.bf16.mxu0 0
      %1692 = vmatpush1.bf16.msra.mxu0 0
      %1693 = vmatprep.subr.bf16.mxu0 0
      %1694 = vmatpush1.bf16.msra.mxu0 %v1672
      %1695 = vmatprep.subr.bf16.mxu0 0
      %1696 = vmatpush1.bf16.msra.mxu0 %v1671
      %1697 = vmatprep.subr.bf16.mxu0 0
      %1698 = vmatpush2.bf16.msra.mxu0 0
      %1699 = vmatprep.subr.bf16.mxu0 0
      %1700 = vmatpush2.bf16.msra.mxu0 0
      %1701 = vmatprep.subr.bf16.mxu0 0
      %1702 = vmatpush2.bf16.msra.mxu0 0
      %1703 = vmatprep.subr.bf16.mxu0 0
      %1704 = vmatpush2.bf16.msra.mxu0 0
      %1705 = vmatprep.subr.bf16.mxu0 0
      %1706 = vmatpush2.bf16.msra.mxu0 0
      %1707 = vmatprep.subr.bf16.mxu0 0
      %1708 = vmatpush2.bf16.msra.mxu0 0
      %1709 = vmatprep.subr.bf16.mxu0 0
      %1710 = vmatpush2.bf16.msra.mxu0 0
      %1711 = vmatprep.subr.bf16.mxu0 0
      %1712 = vmatpush2.bf16.msra.mxu0 0
      %1713 = vmatprep.mubr.bf16.mxu0 0
      %1714 = vmatmul.mubr.bf16.gmra.mxu0 %v1676
      %v1715 = vpop.f32.mrf.mxu0
      %v1716 = vadd.f32 %v1662, %v1715
      %v1717 = vpop.f32.mrf.mxu0
      %v1718 = vpop.f32.mrf.mxu0
      %v1719 = vadd.f32 %v1662, %v1718
      %v1720 = vpop.f32.mrf.mxu0
      %1721 = vmatprep.mubr.bf16.mxu0 0
      %1722 = vmatmul.mubr.bf16.gmra.mxu0 %v1679
      %v1723 = vpop.f32.mrf.mxu0
      %v1724 = vadd.f32 %v1662, %v1723
      %v1725 = vpop.f32.mrf.mxu0
      %v1726 = vpop.f32.mrf.mxu0
      %v1727 = vadd.f32 %v1662, %v1726
      %v1728 = vpop.f32.mrf.mxu0
      %1729 = vdwg.mxu0
      %v1730 = vmax.f32 %v1716, 0.0
      %v1731 = vmax.f32 %v1719, 0.0
      %v1732 = vmax.f32 %v1724, 0.0
      %v1733 = vmax.f32 %v1727, 0.0
      %v1734 = vpack.c.bf16 %v1731, %v1730
      %v1735 = vpack.c.bf16 %v1733, %v1732
      %s1736 = scalar_lea.vmem %s2, 48
      %v1737 = vld [vmem:[%s1736] sm:$0xf]
      %v1738 = vld [vmem:[%s1736 + $0x4] sm:$0xf]
      %v1739 = vld [vmem:[%s1736 + $0x8] sm:$0xf]
      %v1740 = vld [vmem:[%s1736 + $0xc] sm:$0xf]
      %v1741 = vlaneseq
      %v1742 = vshrl.u32 %v1741, 7
      %v1743 = vsub.s32 0, %v1742
      %v1744 = vrot.slane %v1651, %v1743
      %v1749 = vunpack.c.l.b16 %v1737
      %v1750 = vunpack.c.l.b16 %v1738
      %v1751 = vunpack.c.l.b16 %v1739
      %v1752 = vunpack.c.l.b16 %v1740
      %v1753 = vpack.c.b16 %v1750, %v1749
      %v1754 = vpack.c.b16 %v1752, %v1751
      %v1758 = vsel %vm233, %v1734, 0
      %v1761 = vsel %vm233, %v1735, 0
      %1763 = vmatprep.subr.bf16.mxu0 0
      %1764 = vmatpush1.bf16.msra.mxu0 0
      %1765 = vmatprep.subr.bf16.mxu0 0
      %1766 = vmatpush1.bf16.msra.mxu0 0
      %1767 = vmatprep.subr.bf16.mxu0 0
      %1768 = vmatpush1.bf16.msra.mxu0 0
      %1769 = vmatprep.subr.bf16.mxu0 0
      %1770 = vmatpush1.bf16.msra.mxu0 0
      %1771 = vmatprep.subr.bf16.mxu0 0
      %1772 = vmatpush1.bf16.msra.mxu0 0
      %1773 = vmatprep.subr.bf16.mxu0 0
      %1774 = vmatpush1.bf16.msra.mxu0 0
      %1775 = vmatprep.subr.bf16.mxu0 0
      %1776 = vmatpush1.bf16.msra.mxu0 %v1754
      %1777 = vmatprep.subr.bf16.mxu0 0
      %1778 = vmatpush1.bf16.msra.mxu0 %v1753
      %1779 = vmatprep.subr.bf16.mxu0 0
      %1780 = vmatpush2.bf16.msra.mxu0 0
      %1781 = vmatprep.subr.bf16.mxu0 0
      %1782 = vmatpush2.bf16.msra.mxu0 0
      %1783 = vmatprep.subr.bf16.mxu0 0
      %1784 = vmatpush2.bf16.msra.mxu0 0
      %1785 = vmatprep.subr.bf16.mxu0 0
      %1786 = vmatpush2.bf16.msra.mxu0 0
      %1787 = vmatprep.subr.bf16.mxu0 0
      %1788 = vmatpush2.bf16.msra.mxu0 0
      %1789 = vmatprep.subr.bf16.mxu0 0
      %1790 = vmatpush2.bf16.msra.mxu0 0
      %1791 = vmatprep.subr.bf16.mxu0 0
      %1792 = vmatpush2.bf16.msra.mxu0 0
      %1793 = vmatprep.subr.bf16.mxu0 0
      %1794 = vmatpush2.bf16.msra.mxu0 0
      %1795 = vmatprep.mubr.bf16.mxu0 0
      %1796 = vmatmul.mubr.bf16.gmra.mxu0 %v1758
      %v1797 = vpop.f32.mrf.mxu0
      %v1798 = vadd.f32 %v1744, %v1797
      %v1799 = vpop.f32.mrf.mxu0
      %v1800 = vpop.f32.mrf.mxu0
      %v1801 = vadd.f32 %v1744, %v1800
      %v1802 = vpop.f32.mrf.mxu0
      %1803 = vmatprep.mubr.bf16.mxu0 0
      %1804 = vmatmul.mubr.bf16.gmra.mxu0 %v1761
      %v1805 = vpop.f32.mrf.mxu0
      %v1806 = vadd.f32 %v1744, %v1805
      %v1807 = vpop.f32.mrf.mxu0
      %v1808 = vpop.f32.mrf.mxu0
      %v1809 = vadd.f32 %v1744, %v1808
      %v1810 = vpop.f32.mrf.mxu0
      %1811 = vdwg.mxu0
      %v1812 = vadd.f32 %v1798, %v1507
      %v1813 = vadd.f32 %v1801, %v1553
      %v1814 = vadd.f32 %v1806, %v1599
      %v1815 = vadd.f32 %v1809, %v1645
      %v1816 = vpack.c.bf16 %v1813, %v1812
      %v1817 = vpack.c.bf16 %v1815, %v1814
      %s1818 = scalar_lea.vmem %s1, 96
      %v1819 = vld [vmem:[%s1818] sm:$0xf]
      %v1820 = vld [vmem:[%s1818 + $0x4] sm:$0xf]
      %v1821 = vld [vmem:[%s1818 + $0x8] sm:$0xf]
      %v1822 = vld [vmem:[%s1818 + $0xc] sm:$0xf]
      %v1827 = vunpack.c.l.b16 %v1819
      %v1828 = vunpack.c.l.b16 %v1820
      %v1829 = vunpack.c.l.b16 %v1821
      %v1830 = vunpack.c.l.b16 %v1822
      %v1831 = vpack.c.b16 %v1828, %v1827
      %v1832 = vpack.c.b16 %v1830, %v1829
      %v1836 = vsel %vm233, %v1816, 0
      %v1839 = vsel %vm233, %v1817, 0
      %1841 = vmatprep.subr.bf16.mxu0 0
      %1842 = vmatpush1.bf16.msra.mxu0 0
      %1843 = vmatprep.subr.bf16.mxu0 0
      %1844 = vmatpush1.bf16.msra.mxu0 0
      %1845 = vmatprep.subr.bf16.mxu0 0
      %1846 = vmatpush1.bf16.msra.mxu0 0
      %1847 = vmatprep.subr.bf16.mxu0 0
      %1848 = vmatpush1.bf16.msra.mxu0 0
      %1849 = vmatprep.subr.bf16.mxu0 0
      %1850 = vmatpush1.bf16.msra.mxu0 0
      %1851 = vmatprep.subr.bf16.mxu0 0
      %1852 = vmatpush1.bf16.msra.mxu0 0
      %1853 = vmatprep.subr.bf16.mxu0 0
      %1854 = vmatpush1.bf16.msra.mxu0 %v1832
      %1855 = vmatprep.subr.bf16.mxu0 0
      %1856 = vmatpush1.bf16.msra.mxu0 %v1831
      %1857 = vmatprep.subr.bf16.mxu0 0
      %1858 = vmatpush2.bf16.msra.mxu0 0
      %1859 = vmatprep.subr.bf16.mxu0 0
      %1860 = vmatpush2.bf16.msra.mxu0 0
      %1861 = vmatprep.subr.bf16.mxu0 0
      %1862 = vmatpush2.bf16.msra.mxu0 0
      %1863 = vmatprep.subr.bf16.mxu0 0
      %1864 = vmatpush2.bf16.msra.mxu0 0
      %1865 = vmatprep.subr.bf16.mxu0 0
      %1866 = vmatpush2.bf16.msra.mxu0 0
      %1867 = vmatprep.subr.bf16.mxu0 0
      %1868 = vmatpush2.bf16.msra.mxu0 0
      %1869 = vmatprep.subr.bf16.mxu0 0
      %1870 = vmatpush2.bf16.msra.mxu0 0
      %1871 = vmatprep.subr.bf16.mxu0 0
      %1872 = vmatpush2.bf16.msra.mxu0 0
      %1873 = vmatprep.mubr.bf16.mxu0 0
      %1874 = vmatmul.mubr.bf16.gmra.mxu0 %v1836
      %v1875 = vpop.f32.mrf.mxu0
      %v1876 = vadd.f32 0.0, %v1875
      %v1877 = vpop.f32.mrf.mxu0
      %v1878 = vpop.f32.mrf.mxu0
      %v1879 = vadd.f32 0.0, %v1878
      %v1880 = vpop.f32.mrf.mxu0
      %1881 = vmatprep.mubr.bf16.mxu0 0
      %1882 = vmatmul.mubr.bf16.gmra.mxu0 %v1839
      %v1883 = vpop.f32.mrf.mxu0
      %v1884 = vadd.f32 0.0, %v1883
      %v1885 = vpop.f32.mrf.mxu0
      %v1886 = vpop.f32.mrf.mxu0
      %v1887 = vadd.f32 0.0, %v1886
      %v1888 = vpop.f32.mrf.mxu0
      %1889 = vdwg.mxu0
      %s1890 = scalar_lea.vmem %s1, 112
      %v1891 = vld [vmem:[%s1890] sm:$0xf]
      %v1892 = vld [vmem:[%s1890 + $0x4] sm:$0xf]
      %v1893 = vld [vmem:[%s1890 + $0x8] sm:$0xf]
      %v1894 = vld [vmem:[%s1890 + $0xc] sm:$0xf]
      %v1899 = vunpack.c.l.b16 %v1891
      %v1900 = vunpack.c.l.b16 %v1892
      %v1901 = vunpack.c.l.b16 %v1893
      %v1902 = vunpack.c.l.b16 %v1894
      %v1903 = vpack.c.b16 %v1900, %v1899
      %v1904 = vpack.c.b16 %v1902, %v1901
      %1907 = vmatprep.subr.bf16.mxu0 0
      %1908 = vmatpush1.bf16.msra.mxu0 0
      %1909 = vmatprep.subr.bf16.mxu0 0
      %1910 = vmatpush1.bf16.msra.mxu0 0
      %1911 = vmatprep.subr.bf16.mxu0 0
      %1912 = vmatpush1.bf16.msra.mxu0 0
      %1913 = vmatprep.subr.bf16.mxu0 0
      %1914 = vmatpush1.bf16.msra.mxu0 0
      %1915 = vmatprep.subr.bf16.mxu0 0
      %1916 = vmatpush1.bf16.msra.mxu0 0
      %1917 = vmatprep.subr.bf16.mxu0 0
      %1918 = vmatpush1.bf16.msra.mxu0 0
      %1919 = vmatprep.subr.bf16.mxu0 0
      %1920 = vmatpush1.bf16.msra.mxu0 %v1904
      %1921 = vmatprep.subr.bf16.mxu0 0
      %1922 = vmatpush1.bf16.msra.mxu0 %v1903
      %1923 = vmatprep.subr.bf16.mxu0 0
      %1924 = vmatpush2.bf16.msra.mxu0 0
      %1925 = vmatprep.subr.bf16.mxu0 0
      %1926 = vmatpush2.bf16.msra.mxu0 0
      %1927 = vmatprep.subr.bf16.mxu0 0
      %1928 = vmatpush2.bf16.msra.mxu0 0
      %1929 = vmatprep.subr.bf16.mxu0 0
      %1930 = vmatpush2.bf16.msra.mxu0 0
      %1931 = vmatprep.subr.bf16.mxu0 0
      %1932 = vmatpush2.bf16.msra.mxu0 0
      %1933 = vmatprep.subr.bf16.mxu0 0
      %1934 = vmatpush2.bf16.msra.mxu0 0
      %1935 = vmatprep.subr.bf16.mxu0 0
      %1936 = vmatpush2.bf16.msra.mxu0 0
      %1937 = vmatprep.subr.bf16.mxu0 0
      %1938 = vmatpush2.bf16.msra.mxu0 0
      %1939 = vmatprep.mubr.bf16.mxu0 0
      %1940 = vmatmul.mubr.bf16.gmra.mxu0 %v1836
      %v1941 = vpop.f32.mrf.mxu0
      %v1942 = vadd.f32 0.0, %v1941
      %v1943 = vpop.f32.mrf.mxu0
      %v1944 = vpop.f32.mrf.mxu0
      %v1945 = vadd.f32 0.0, %v1944
      %v1946 = vpop.f32.mrf.mxu0
      %1947 = vmatprep.mubr.bf16.mxu0 0
      %1948 = vmatmul.mubr.bf16.gmra.mxu0 %v1839
      %v1949 = vpop.f32.mrf.mxu0
      %v1950 = vadd.f32 0.0, %v1949
      %v1951 = vpop.f32.mrf.mxu0
      %v1952 = vpop.f32.mrf.mxu0
      %v1953 = vadd.f32 0.0, %v1952
      %v1954 = vpop.f32.mrf.mxu0
      %1955 = vdwg.mxu0
      %s1956 = scalar_lea.vmem %s1, 128
      %v1957 = vld [vmem:[%s1956] sm:$0xf]
      %v1958 = vld [vmem:[%s1956 + $0x4] sm:$0xf]
      %v1959 = vld [vmem:[%s1956 + $0x8] sm:$0xf]
      %v1960 = vld [vmem:[%s1956 + $0xc] sm:$0xf]
      %v1965 = vunpack.c.l.b16 %v1957
      %v1966 = vunpack.c.l.b16 %v1958
      %v1967 = vunpack.c.l.b16 %v1959
      %v1968 = vunpack.c.l.b16 %v1960
      %v1969 = vpack.c.b16 %v1966, %v1965
      %v1970 = vpack.c.b16 %v1968, %v1967
      %1973 = vmatprep.subr.bf16.mxu0 0
      %1974 = vmatpush1.bf16.msra.mxu0 0
      %1975 = vmatprep.subr.bf16.mxu0 0
      %1976 = vmatpush1.bf16.msra.mxu0 0
      %1977 = vmatprep.subr.bf16.mxu0 0
      %1978 = vmatpush1.bf16.msra.mxu0 0
      %1979 = vmatprep.subr.bf16.mxu0 0
      %1980 = vmatpush1.bf16.msra.mxu0 0
      %1981 = vmatprep.subr.bf16.mxu0 0
      %1982 = vmatpush1.bf16.msra.mxu0 0
      %1983 = vmatprep.subr.bf16.mxu0 0
      %1984 = vmatpush1.bf16.msra.mxu0 0
      %1985 = vmatprep.subr.bf16.mxu0 0
      %1986 = vmatpush1.bf16.msra.mxu0 %v1970
      %1987 = vmatprep.subr.bf16.mxu0 0
      %1988 = vmatpush1.bf16.msra.mxu0 %v1969
      %1989 = vmatprep.subr.bf16.mxu0 0
      %1990 = vmatpush2.bf16.msra.mxu0 0
      %1991 = vmatprep.subr.bf16.mxu0 0
      %1992 = vmatpush2.bf16.msra.mxu0 0
      %1993 = vmatprep.subr.bf16.mxu0 0
      %1994 = vmatpush2.bf16.msra.mxu0 0
      %1995 = vmatprep.subr.bf16.mxu0 0
      %1996 = vmatpush2.bf16.msra.mxu0 0
      %1997 = vmatprep.subr.bf16.mxu0 0
      %1998 = vmatpush2.bf16.msra.mxu0 0
      %1999 = vmatprep.subr.bf16.mxu0 0
      %2000 = vmatpush2.bf16.msra.mxu0 0
      %2001 = vmatprep.subr.bf16.mxu0 0
      %2002 = vmatpush2.bf16.msra.mxu0 0
      %2003 = vmatprep.subr.bf16.mxu0 0
      %2004 = vmatpush2.bf16.msra.mxu0 0
      %2005 = vmatprep.mubr.bf16.mxu0 0
      %2006 = vmatmul.mubr.bf16.gmra.mxu0 %v1836
      %v2007 = vpop.f32.mrf.mxu0
      %v2008 = vadd.f32 0.0, %v2007
      %v2009 = vpop.f32.mrf.mxu0
      %v2010 = vpop.f32.mrf.mxu0
      %v2011 = vadd.f32 0.0, %v2010
      %v2012 = vpop.f32.mrf.mxu0
      %2013 = vmatprep.mubr.bf16.mxu0 0
      %2014 = vmatmul.mubr.bf16.gmra.mxu0 %v1839
      %v2015 = vpop.f32.mrf.mxu0
      %v2016 = vadd.f32 0.0, %v2015
      %v2017 = vpop.f32.mrf.mxu0
      %v2018 = vpop.f32.mrf.mxu0
      %v2019 = vadd.f32 0.0, %v2018
      %v2020 = vpop.f32.mrf.mxu0
      %2021 = vdwg.mxu0
      %v2022 = vpack.c.bf16 %v1876, %v1876
      %v2023 = vpack.c.bf16 %v1879, %v1879
      %v2024 = vpack.c.bf16 %v1884, %v1884
      %v2025 = vpack.c.bf16 %v1887, %v1887
      %v2026 = vpack.c.bf16 %v1942, %v1942
      %v2027 = vpack.c.bf16 %v1945, %v1945
      %v2028 = vpack.c.bf16 %v1950, %v1950
      %v2029 = vpack.c.bf16 %v1953, %v1953
      %v2030 = vpack.c.bf16 %v2008, %v2008
      %v2031 = vpack.c.bf16 %v2011, %v2011
      %v2032 = vpack.c.bf16 %v2016, %v2016
      %v2033 = vpack.c.bf16 %v2019, %v2019
      %v2035 = vsel %vm233, %v2022, 0
      %v2038 = vsel %vm233, %v2026, 0
      %2040 = vmatprep.subr.bf16.mxu0 0
      %2041 = vmatpush1.bf16.xpose.msra.mxu0 0
      %2042 = vmatprep.subr.bf16.mxu0 0
      %2043 = vmatpush1.bf16.xpose.msra.mxu0 0
      %2044 = vmatprep.subr.bf16.mxu0 0
      %2045 = vmatpush1.bf16.xpose.msra.mxu0 0
      %2046 = vmatprep.subr.bf16.mxu0 0
      %2047 = vmatpush1.bf16.xpose.msra.mxu0 0
      %2048 = vmatprep.subr.bf16.mxu0 0
      %2049 = vmatpush1.bf16.xpose.msra.mxu0 0
      %2050 = vmatprep.subr.bf16.mxu0 0
      %2051 = vmatpush1.bf16.xpose.msra.mxu0 0
      %2052 = vmatprep.subr.bf16.mxu0 0
      %2053 = vmatpush1.bf16.xpose.msra.mxu0 0
      %2054 = vmatprep.subr.bf16.mxu0 0
      %2055 = vmatpush1.bf16.xpose.msra.mxu0 %v2038
      %2056 = vmatprep.subr.bf16.mxu0 0
      %2057 = vmatpush2.bf16.xpose.msra.mxu0 0
      %2058 = vmatprep.subr.bf16.mxu0 0
      %2059 = vmatpush2.bf16.xpose.msra.mxu0 0
      %2060 = vmatprep.subr.bf16.mxu0 0
      %2061 = vmatpush2.bf16.xpose.msra.mxu0 0
      %2062 = vmatprep.subr.bf16.mxu0 0
      %2063 = vmatpush2.bf16.xpose.msra.mxu0 0
      %2064 = vmatprep.subr.bf16.mxu0 0
      %2065 = vmatpush2.bf16.xpose.msra.mxu0 0
      %2066 = vmatprep.subr.bf16.mxu0 0
      %2067 = vmatpush2.bf16.xpose.msra.mxu0 0
      %2068 = vmatprep.subr.bf16.mxu0 0
      %2069 = vmatpush2.bf16.xpose.msra.mxu0 0
      %2070 = vmatprep.subr.bf16.mxu0 0
      %2071 = vmatpush2.bf16.xpose.msra.mxu0 0
      %2072 = vmatprep.mubr.bf16.mxu0 0
      %2073 = vmatmul.mubr.bf16.gmra.mxu0 %v2035
      %v2074 = vpop.f32.mrf.mxu0
      %v2075 = vadd.f32 %v206, %v2074
      %v2076 = vpop.f32.mrf.mxu0
      %v2077 = vpop.f32.mrf.mxu0
      %v2078 = vpop.f32.mrf.mxu0
      %2079 = vdwg.mxu0
      %v2081 = vsel %vm233, %v2023, 0
      %v2084 = vsel %vm233, %v2027, 0
      %2086 = vmatprep.subr.bf16.mxu0 0
      %2087 = vmatpush1.bf16.xpose.msra.mxu0 0
      %2088 = vmatprep.subr.bf16.mxu0 0
      %2089 = vmatpush1.bf16.xpose.msra.mxu0 0
      %2090 = vmatprep.subr.bf16.mxu0 0
      %2091 = vmatpush1.bf16.xpose.msra.mxu0 0
      %2092 = vmatprep.subr.bf16.mxu0 0
      %2093 = vmatpush1.bf16.xpose.msra.mxu0 0
      %2094 = vmatprep.subr.bf16.mxu0 0
      %2095 = vmatpush1.bf16.xpose.msra.mxu0 0
      %2096 = vmatprep.subr.bf16.mxu0 0
      %2097 = vmatpush1.bf16.xpose.msra.mxu0 0
      %2098 = vmatprep.subr.bf16.mxu0 0
      %2099 = vmatpush1.bf16.xpose.msra.mxu0 0
      %2100 = vmatprep.subr.bf16.mxu0 0
      %2101 = vmatpush1.bf16.xpose.msra.mxu0 %v2084
      %2102 = vmatprep.subr.bf16.mxu0 0
      %2103 = vmatpush2.bf16.xpose.msra.mxu0 0
      %2104 = vmatprep.subr.bf16.mxu0 0
      %2105 = vmatpush2.bf16.xpose.msra.mxu0 0
      %2106 = vmatprep.subr.bf16.mxu0 0
      %2107 = vmatpush2.bf16.xpose.msra.mxu0 0
      %2108 = vmatprep.subr.bf16.mxu0 0
      %2109 = vmatpush2.bf16.xpose.msra.mxu0 0
      %2110 = vmatprep.subr.bf16.mxu0 0
      %2111 = vmatpush2.bf16.xpose.msra.mxu0 0
      %2112 = vmatprep.subr.bf16.mxu0 0
      %2113 = vmatpush2.bf16.xpose.msra.mxu0 0
      %2114 = vmatprep.subr.bf16.mxu0 0
      %2115 = vmatpush2.bf16.xpose.msra.mxu0 0
      %2116 = vmatprep.subr.bf16.mxu0 0
      %2117 = vmatpush2.bf16.xpose.msra.mxu0 0
      %2118 = vmatprep.mubr.bf16.mxu0 0
      %2119 = vmatmul.mubr.bf16.gmra.mxu0 %v2081
      %v2120 = vpop.f32.mrf.mxu0
      %v2121 = vadd.f32 %v206, %v2120
      %v2122 = vpop.f32.mrf.mxu0
      %v2123 = vpop.f32.mrf.mxu0
      %v2124 = vpop.f32.mrf.mxu0
      %2125 = vdwg.mxu0
      %v2127 = vsel %vm233, %v2024, 0
      %v2130 = vsel %vm233, %v2028, 0
      %2132 = vmatprep.subr.bf16.mxu0 0
      %2133 = vmatpush1.bf16.xpose.msra.mxu0 0
      %2134 = vmatprep.subr.bf16.mxu0 0
      %2135 = vmatpush1.bf16.xpose.msra.mxu0 0
      %2136 = vmatprep.subr.bf16.mxu0 0
      %2137 = vmatpush1.bf16.xpose.msra.mxu0 0
      %2138 = vmatprep.subr.bf16.mxu0 0
      %2139 = vmatpush1.bf16.xpose.msra.mxu0 0
      %2140 = vmatprep.subr.bf16.mxu0 0
      %2141 = vmatpush1.bf16.xpose.msra.mxu0 0
      %2142 = vmatprep.subr.bf16.mxu0 0
      %2143 = vmatpush1.bf16.xpose.msra.mxu0 0
      %2144 = vmatprep.subr.bf16.mxu0 0
      %2145 = vmatpush1.bf16.xpose.msra.mxu0 0
      %2146 = vmatprep.subr.bf16.mxu0 0
      %2147 = vmatpush1.bf16.xpose.msra.mxu0 %v2130
      %2148 = vmatprep.subr.bf16.mxu0 0
      %2149 = vmatpush2.bf16.xpose.msra.mxu0 0
      %2150 = vmatprep.subr.bf16.mxu0 0
      %2151 = vmatpush2.bf16.xpose.msra.mxu0 0
      %2152 = vmatprep.subr.bf16.mxu0 0
      %2153 = vmatpush2.bf16.xpose.msra.mxu0 0
      %2154 = vmatprep.subr.bf16.mxu0 0
      %2155 = vmatpush2.bf16.xpose.msra.mxu0 0
      %2156 = vmatprep.subr.bf16.mxu0 0
      %2157 = vmatpush2.bf16.xpose.msra.mxu0 0
      %2158 = vmatprep.subr.bf16.mxu0 0
      %2159 = vmatpush2.bf16.xpose.msra.mxu0 0
      %2160 = vmatprep.subr.bf16.mxu0 0
      %2161 = vmatpush2.bf16.xpose.msra.mxu0 0
      %2162 = vmatprep.subr.bf16.mxu0 0
      %2163 = vmatpush2.bf16.xpose.msra.mxu0 0
      %2164 = vmatprep.mubr.bf16.mxu0 0
      %2165 = vmatmul.mubr.bf16.gmra.mxu0 %v2127
      %v2166 = vpop.f32.mrf.mxu0
      %v2167 = vadd.f32 %v206, %v2166
      %v2168 = vpop.f32.mrf.mxu0
      %v2169 = vpop.f32.mrf.mxu0
      %v2170 = vpop.f32.mrf.mxu0
      %2171 = vdwg.mxu0
      %v2173 = vsel %vm233, %v2025, 0
      %v2176 = vsel %vm233, %v2029, 0
      %2178 = vmatprep.subr.bf16.mxu0 0
      %2179 = vmatpush1.bf16.xpose.msra.mxu0 0
      %2180 = vmatprep.subr.bf16.mxu0 0
      %2181 = vmatpush1.bf16.xpose.msra.mxu0 0
      %2182 = vmatprep.subr.bf16.mxu0 0
      %2183 = vmatpush1.bf16.xpose.msra.mxu0 0
      %2184 = vmatprep.subr.bf16.mxu0 0
      %2185 = vmatpush1.bf16.xpose.msra.mxu0 0
      %2186 = vmatprep.subr.bf16.mxu0 0
      %2187 = vmatpush1.bf16.xpose.msra.mxu0 0
      %2188 = vmatprep.subr.bf16.mxu0 0
      %2189 = vmatpush1.bf16.xpose.msra.mxu0 0
      %2190 = vmatprep.subr.bf16.mxu0 0
      %2191 = vmatpush1.bf16.xpose.msra.mxu0 0
      %2192 = vmatprep.subr.bf16.mxu0 0
      %2193 = vmatpush1.bf16.xpose.msra.mxu0 %v2176
      %2194 = vmatprep.subr.bf16.mxu0 0
      %2195 = vmatpush2.bf16.xpose.msra.mxu0 0
      %2196 = vmatprep.subr.bf16.mxu0 0
      %2197 = vmatpush2.bf16.xpose.msra.mxu0 0
      %2198 = vmatprep.subr.bf16.mxu0 0
      %2199 = vmatpush2.bf16.xpose.msra.mxu0 0
      %2200 = vmatprep.subr.bf16.mxu0 0
      %2201 = vmatpush2.bf16.xpose.msra.mxu0 0
      %2202 = vmatprep.subr.bf16.mxu0 0
      %2203 = vmatpush2.bf16.xpose.msra.mxu0 0
      %2204 = vmatprep.subr.bf16.mxu0 0
      %2205 = vmatpush2.bf16.xpose.msra.mxu0 0
      %2206 = vmatprep.subr.bf16.mxu0 0
      %2207 = vmatpush2.bf16.xpose.msra.mxu0 0
      %2208 = vmatprep.subr.bf16.mxu0 0
      %2209 = vmatpush2.bf16.xpose.msra.mxu0 0
      %2210 = vmatprep.mubr.bf16.mxu0 0
      %2211 = vmatmul.mubr.bf16.gmra.mxu0 %v2173
      %v2212 = vpop.f32.mrf.mxu0
      %v2213 = vadd.f32 %v206, %v2212
      %v2214 = vpop.f32.mrf.mxu0
      %v2215 = vpop.f32.mrf.mxu0
      %v2216 = vpop.f32.mrf.mxu0
      %2217 = vdwg.mxu0
      %v2218 = vsel %vm617, %v2075, -inf
      %2219 = vmax.xlane.f32.xlu0 %v2218
      %v2220 = vpop.xlane.xlu0 %2219
      %v2221 = vsel %vm617, %v2121, -inf
      %2222 = vmax.xlane.f32.xlu0 %v2221
      %v2223 = vpop.xlane.xlu0 %2222
      %v2224 = vsel %vm617, %v2167, -inf
      %2225 = vmax.xlane.f32.xlu0 %v2224
      %v2226 = vpop.xlane.xlu0 %2225
      %v2227 = vsel %vm617, %v2213, -inf
      %2228 = vmax.xlane.f32.xlu0 %v2227
      %v2229 = vpop.xlane.xlu0 %2228
      %v2230 = vsub.f32 %v2075, %v2220
      %v2231 = vsub.f32 %v2121, %v2223
      %v2232 = vsub.f32 %v2167, %v2226
      %v2233 = vsub.f32 %v2213, %v2229
      %v2234 = vmul.f32 %v2230, 1.442695
      %v2235 = vpow.pop %v2234
      %v2236 = vmul.f32 %v2231, 1.442695
      %v2237 = vpow.pop %v2236
      %v2238 = vmul.f32 %v2232, 1.442695
      %v2239 = vpow.pop %v2238
      %v2240 = vmul.f32 %v2233, 1.442695
      %v2241 = vpow.pop %v2240
      %v2242 = vsel %vm617, %v2235, 0.0
      %2243 = vadd.xlane.f32.xlu0 %v2242
      %v2244 = vpop.xlane.xlu0 %2243
      %v2245 = vsel %vm617, %v2237, 0.0
      %2246 = vadd.xlane.f32.xlu0 %v2245
      %v2247 = vpop.xlane.xlu0 %2246
      %v2248 = vsel %vm617, %v2239, 0.0
      %2249 = vadd.xlane.f32.xlu0 %v2248
      %v2250 = vpop.xlane.xlu0 %2249
      %v2251 = vsel %vm617, %v2241, 0.0
      %2252 = vadd.xlane.f32.xlu0 %v2251
      %v2253 = vpop.xlane.xlu0 %2252
      %v2254 = vrcp.pop %v2244
      %v2255 = vrcp.pop %v2247
      %v2256 = vrcp.pop %v2250
      %v2257 = vrcp.pop %v2253
      %v2258 = vmul.f32 %v2235, %v2254
      %v2259 = vmul.f32 %v2237, %v2255
      %v2260 = vmul.f32 %v2239, %v2256
      %v2261 = vmul.f32 %v2241, %v2257
      %v2262 = vpack.c.bf16 %v2258, %v2258
      %v2263 = vpack.c.bf16 %v2259, %v2259
      %v2264 = vpack.c.bf16 %v2260, %v2260
      %v2265 = vpack.c.bf16 %v2261, %v2261
      %v2267 = vsel %vm617, %v2262, 0
      %v2270 = vsel %vm669, %v2030, 0
      %2272 = vmatprep.subr.bf16.mxu0 0
      %2273 = vmatpush1.bf16.msra.mxu0 0
      %2274 = vmatprep.subr.bf16.mxu0 0
      %2275 = vmatpush1.bf16.msra.mxu0 0
      %2276 = vmatprep.subr.bf16.mxu0 0
      %2277 = vmatpush1.bf16.msra.mxu0 0
      %2278 = vmatprep.subr.bf16.mxu0 0
      %2279 = vmatpush1.bf16.msra.mxu0 0
      %2280 = vmatprep.subr.bf16.mxu0 0
      %2281 = vmatpush1.bf16.msra.mxu0 0
      %2282 = vmatprep.subr.bf16.mxu0 0
      %2283 = vmatpush1.bf16.msra.mxu0 0
      %2284 = vmatprep.subr.bf16.mxu0 0
      %2285 = vmatpush1.bf16.msra.mxu0 0
      %2286 = vmatprep.subr.bf16.mxu0 0
      %2287 = vmatpush1.bf16.msra.mxu0 %v2270
      %2288 = vmatprep.subr.bf16.mxu0 0
      %2289 = vmatpush2.bf16.msra.mxu0 0
      %2290 = vmatprep.subr.bf16.mxu0 0
      %2291 = vmatpush2.bf16.msra.mxu0 0
      %2292 = vmatprep.subr.bf16.mxu0 0
      %2293 = vmatpush2.bf16.msra.mxu0 0
      %2294 = vmatprep.subr.bf16.mxu0 0
      %2295 = vmatpush2.bf16.msra.mxu0 0
      %2296 = vmatprep.subr.bf16.mxu0 0
      %2297 = vmatpush2.bf16.msra.mxu0 0
      %2298 = vmatprep.subr.bf16.mxu0 0
      %2299 = vmatpush2.bf16.msra.mxu0 0
      %2300 = vmatprep.subr.bf16.mxu0 0
      %2301 = vmatpush2.bf16.msra.mxu0 0
      %2302 = vmatprep.subr.bf16.mxu0 0
      %2303 = vmatpush2.bf16.msra.mxu0 0
      %2304 = vmatprep.mubr.bf16.mxu0 0
      %2305 = vmatmul.mubr.bf16.gmra.mxu0 %v2267
      %v2306 = vpop.f32.mrf.mxu0
      %v2307 = vadd.f32 0.0, %v2306
      %v2308 = vpop.f32.mrf.mxu0
      %v2309 = vpop.f32.mrf.mxu0
      %v2310 = vpop.f32.mrf.mxu0
      %2311 = vdwg.mxu0
      %v2313 = vsel %vm617, %v2263, 0
      %v2316 = vsel %vm669, %v2031, 0
      %2318 = vmatprep.subr.bf16.mxu0 0
      %2319 = vmatpush1.bf16.msra.mxu0 0
      %2320 = vmatprep.subr.bf16.mxu0 0
      %2321 = vmatpush1.bf16.msra.mxu0 0
      %2322 = vmatprep.subr.bf16.mxu0 0
      %2323 = vmatpush1.bf16.msra.mxu0 0
      %2324 = vmatprep.subr.bf16.mxu0 0
      %2325 = vmatpush1.bf16.msra.mxu0 0
      %2326 = vmatprep.subr.bf16.mxu0 0
      %2327 = vmatpush1.bf16.msra.mxu0 0
      %2328 = vmatprep.subr.bf16.mxu0 0
      %2329 = vmatpush1.bf16.msra.mxu0 0
      %2330 = vmatprep.subr.bf16.mxu0 0
      %2331 = vmatpush1.bf16.msra.mxu0 0
      %2332 = vmatprep.subr.bf16.mxu0 0
      %2333 = vmatpush1.bf16.msra.mxu0 %v2316
      %2334 = vmatprep.subr.bf16.mxu0 0
      %2335 = vmatpush2.bf16.msra.mxu0 0
      %2336 = vmatprep.subr.bf16.mxu0 0
      %2337 = vmatpush2.bf16.msra.mxu0 0
      %2338 = vmatprep.subr.bf16.mxu0 0
      %2339 = vmatpush2.bf16.msra.mxu0 0
      %2340 = vmatprep.subr.bf16.mxu0 0
      %2341 = vmatpush2.bf16.msra.mxu0 0
      %2342 = vmatprep.subr.bf16.mxu0 0
      %2343 = vmatpush2.bf16.msra.mxu0 0
      %2344 = vmatprep.subr.bf16.mxu0 0
      %2345 = vmatpush2.bf16.msra.mxu0 0
      %2346 = vmatprep.subr.bf16.mxu0 0
      %2347 = vmatpush2.bf16.msra.mxu0 0
      %2348 = vmatprep.subr.bf16.mxu0 0
      %2349 = vmatpush2.bf16.msra.mxu0 0
      %2350 = vmatprep.mubr.bf16.mxu0 0
      %2351 = vmatmul.mubr.bf16.gmra.mxu0 %v2313
      %v2352 = vpop.f32.mrf.mxu0
      %v2353 = vadd.f32 0.0, %v2352
      %v2354 = vpop.f32.mrf.mxu0
      %v2355 = vpop.f32.mrf.mxu0
      %v2356 = vpop.f32.mrf.mxu0
      %2357 = vdwg.mxu0
      %v2359 = vsel %vm617, %v2264, 0
      %v2362 = vsel %vm669, %v2032, 0
      %2364 = vmatprep.subr.bf16.mxu0 0
      %2365 = vmatpush1.bf16.msra.mxu0 0
      %2366 = vmatprep.subr.bf16.mxu0 0
      %2367 = vmatpush1.bf16.msra.mxu0 0
      %2368 = vmatprep.subr.bf16.mxu0 0
      %2369 = vmatpush1.bf16.msra.mxu0 0
      %2370 = vmatprep.subr.bf16.mxu0 0
      %2371 = vmatpush1.bf16.msra.mxu0 0
      %2372 = vmatprep.subr.bf16.mxu0 0
      %2373 = vmatpush1.bf16.msra.mxu0 0
      %2374 = vmatprep.subr.bf16.mxu0 0
      %2375 = vmatpush1.bf16.msra.mxu0 0
      %2376 = vmatprep.subr.bf16.mxu0 0
      %2377 = vmatpush1.bf16.msra.mxu0 0
      %2378 = vmatprep.subr.bf16.mxu0 0
      %2379 = vmatpush1.bf16.msra.mxu0 %v2362
      %2380 = vmatprep.subr.bf16.mxu0 0
      %2381 = vmatpush2.bf16.msra.mxu0 0
      %2382 = vmatprep.subr.bf16.mxu0 0
      %2383 = vmatpush2.bf16.msra.mxu0 0
      %2384 = vmatprep.subr.bf16.mxu0 0
      %2385 = vmatpush2.bf16.msra.mxu0 0
      %2386 = vmatprep.subr.bf16.mxu0 0
      %2387 = vmatpush2.bf16.msra.mxu0 0
      %2388 = vmatprep.subr.bf16.mxu0 0
      %2389 = vmatpush2.bf16.msra.mxu0 0
      %2390 = vmatprep.subr.bf16.mxu0 0
      %2391 = vmatpush2.bf16.msra.mxu0 0
      %2392 = vmatprep.subr.bf16.mxu0 0
      %2393 = vmatpush2.bf16.msra.mxu0 0
      %2394 = vmatprep.subr.bf16.mxu0 0
      %2395 = vmatpush2.bf16.msra.mxu0 0
      %2396 = vmatprep.mubr.bf16.mxu0 0
      %2397 = vmatmul.mubr.bf16.gmra.mxu0 %v2359
      %v2398 = vpop.f32.mrf.mxu0
      %v2399 = vadd.f32 0.0, %v2398
      %v2400 = vpop.f32.mrf.mxu0
      %v2401 = vpop.f32.mrf.mxu0
      %v2402 = vpop.f32.mrf.mxu0
      %2403 = vdwg.mxu0
      %v2405 = vsel %vm617, %v2265, 0
      %v2408 = vsel %vm669, %v2033, 0
      %2410 = vmatprep.subr.bf16.mxu0 0
      %2411 = vmatpush1.bf16.msra.mxu0 0
      %2412 = vmatprep.subr.bf16.mxu0 0
      %2413 = vmatpush1.bf16.msra.mxu0 0
      %2414 = vmatprep.subr.bf16.mxu0 0
      %2415 = vmatpush1.bf16.msra.mxu0 0
      %2416 = vmatprep.subr.bf16.mxu0 0
      %2417 = vmatpush1.bf16.msra.mxu0 0
      %2418 = vmatprep.subr.bf16.mxu0 0
      %2419 = vmatpush1.bf16.msra.mxu0 0
      %2420 = vmatprep.subr.bf16.mxu0 0
      %2421 = vmatpush1.bf16.msra.mxu0 0
      %2422 = vmatprep.subr.bf16.mxu0 0
      %2423 = vmatpush1.bf16.msra.mxu0 0
      %2424 = vmatprep.subr.bf16.mxu0 0
      %2425 = vmatpush1.bf16.msra.mxu0 %v2408
      %2426 = vmatprep.subr.bf16.mxu0 0
      %2427 = vmatpush2.bf16.msra.mxu0 0
      %2428 = vmatprep.subr.bf16.mxu0 0
      %2429 = vmatpush2.bf16.msra.mxu0 0
      %2430 = vmatprep.subr.bf16.mxu0 0
      %2431 = vmatpush2.bf16.msra.mxu0 0
      %2432 = vmatprep.subr.bf16.mxu0 0
      %2433 = vmatpush2.bf16.msra.mxu0 0
      %2434 = vmatprep.subr.bf16.mxu0 0
      %2435 = vmatpush2.bf16.msra.mxu0 0
      %2436 = vmatprep.subr.bf16.mxu0 0
      %2437 = vmatpush2.bf16.msra.mxu0 0
      %2438 = vmatprep.subr.bf16.mxu0 0
      %2439 = vmatpush2.bf16.msra.mxu0 0
      %2440 = vmatprep.subr.bf16.mxu0 0
      %2441 = vmatpush2.bf16.msra.mxu0 0
      %2442 = vmatprep.mubr.bf16.mxu0 0
      %2443 = vmatmul.mubr.bf16.gmra.mxu0 %v2405
      %v2444 = vpop.f32.mrf.mxu0
      %v2445 = vadd.f32 0.0, %v2444
      %v2446 = vpop.f32.mrf.mxu0
      %v2447 = vpop.f32.mrf.mxu0
      %v2448 = vpop.f32.mrf.mxu0
      %2449 = vdwg.mxu0
      %v2450 = vld [vmem:[%s3 + $0x2] sm:$0x1]
      %v2451 = vld [vmem:[%s3 + $0x6] sm:$0x1]
      %v2452 = vpack.c.bf16 %v2353, %v2307
      %v2453 = vpack.c.bf16 %v2445, %v2399
      %s2454 = scalar_lea.vmem %s2, 64
      %v2455 = vld [vmem:[%s2454] sm:$0xf]
      %v2456 = vld [vmem:[%s2454 + $0x4] sm:$0xf]
      %v2457 = vld [vmem:[%s2454 + $0x8] sm:$0xf]
      %v2458 = vld [vmem:[%s2454 + $0xc] sm:$0xf]
      %v2459 = vlaneseq
      %v2460 = vshrl.u32 %v2459, 7
      %v2461 = vsub.s32 0, %v2460
      %v2462 = vrot.slane %v2450, %v2461
      %v2467 = vunpack.c.l.b16 %v2455
      %v2468 = vunpack.c.l.b16 %v2456
      %v2469 = vunpack.c.l.b16 %v2457
      %v2470 = vunpack.c.l.b16 %v2458
      %v2471 = vpack.c.b16 %v2468, %v2467
      %v2472 = vpack.c.b16 %v2470, %v2469
      %v2476 = vsel %vm233, %v2452, 0
      %v2479 = vsel %vm233, %v2453, 0
      %2481 = vmatprep.subr.bf16.mxu0 0
      %2482 = vmatpush1.bf16.msra.mxu0 0
      %2483 = vmatprep.subr.bf16.mxu0 0
      %2484 = vmatpush1.bf16.msra.mxu0 0
      %2485 = vmatprep.subr.bf16.mxu0 0
      %2486 = vmatpush1.bf16.msra.mxu0 0
      %2487 = vmatprep.subr.bf16.mxu0 0
      %2488 = vmatpush1.bf16.msra.mxu0 0
      %2489 = vmatprep.subr.bf16.mxu0 0
      %2490 = vmatpush1.bf16.msra.mxu0 0
      %2491 = vmatprep.subr.bf16.mxu0 0
      %2492 = vmatpush1.bf16.msra.mxu0 0
      %2493 = vmatprep.subr.bf16.mxu0 0
      %2494 = vmatpush1.bf16.msra.mxu0 %v2472
      %2495 = vmatprep.subr.bf16.mxu0 0
      %2496 = vmatpush1.bf16.msra.mxu0 %v2471
      %2497 = vmatprep.subr.bf16.mxu0 0
      %2498 = vmatpush2.bf16.msra.mxu0 0
      %2499 = vmatprep.subr.bf16.mxu0 0
      %2500 = vmatpush2.bf16.msra.mxu0 0
      %2501 = vmatprep.subr.bf16.mxu0 0
      %2502 = vmatpush2.bf16.msra.mxu0 0
      %2503 = vmatprep.subr.bf16.mxu0 0
      %2504 = vmatpush2.bf16.msra.mxu0 0
      %2505 = vmatprep.subr.bf16.mxu0 0
      %2506 = vmatpush2.bf16.msra.mxu0 0
      %2507 = vmatprep.subr.bf16.mxu0 0
      %2508 = vmatpush2.bf16.msra.mxu0 0
      %2509 = vmatprep.subr.bf16.mxu0 0
      %2510 = vmatpush2.bf16.msra.mxu0 0
      %2511 = vmatprep.subr.bf16.mxu0 0
      %2512 = vmatpush2.bf16.msra.mxu0 0
      %2513 = vmatprep.mubr.bf16.mxu0 0
      %2514 = vmatmul.mubr.bf16.gmra.mxu0 %v2476
      %v2515 = vpop.f32.mrf.mxu0
      %v2516 = vadd.f32 %v2462, %v2515
      %v2517 = vpop.f32.mrf.mxu0
      %v2518 = vpop.f32.mrf.mxu0
      %v2519 = vadd.f32 %v2462, %v2518
      %v2520 = vpop.f32.mrf.mxu0
      %2521 = vmatprep.mubr.bf16.mxu0 0
      %2522 = vmatmul.mubr.bf16.gmra.mxu0 %v2479
      %v2523 = vpop.f32.mrf.mxu0
      %v2524 = vadd.f32 %v2462, %v2523
      %v2525 = vpop.f32.mrf.mxu0
      %v2526 = vpop.f32.mrf.mxu0
      %v2527 = vadd.f32 %v2462, %v2526
      %v2528 = vpop.f32.mrf.mxu0
      %2529 = vdwg.mxu0
      %v2530 = vmax.f32 %v2516, 0.0
      %v2531 = vmax.f32 %v2519, 0.0
      %v2532 = vmax.f32 %v2524, 0.0
      %v2533 = vmax.f32 %v2527, 0.0
      %v2534 = vpack.c.bf16 %v2531, %v2530
      %v2535 = vpack.c.bf16 %v2533, %v2532
      %s2536 = scalar_lea.vmem %s2, 80
      %v2537 = vld [vmem:[%s2536] sm:$0xf]
      %v2538 = vld [vmem:[%s2536 + $0x4] sm:$0xf]
      %v2539 = vld [vmem:[%s2536 + $0x8] sm:$0xf]
      %v2540 = vld [vmem:[%s2536 + $0xc] sm:$0xf]
      %v2541 = vlaneseq
      %v2542 = vshrl.u32 %v2541, 7
      %v2543 = vsub.s32 0, %v2542
      %v2544 = vrot.slane %v2451, %v2543
      %v2549 = vunpack.c.l.b16 %v2537
      %v2550 = vunpack.c.l.b16 %v2538
      %v2551 = vunpack.c.l.b16 %v2539
      %v2552 = vunpack.c.l.b16 %v2540
      %v2553 = vpack.c.b16 %v2550, %v2549
      %v2554 = vpack.c.b16 %v2552, %v2551
      %v2558 = vsel %vm233, %v2534, 0
      %v2561 = vsel %vm233, %v2535, 0
      %2563 = vmatprep.subr.bf16.mxu0 0
      %2564 = vmatpush1.bf16.msra.mxu0 0
      %2565 = vmatprep.subr.bf16.mxu0 0
      %2566 = vmatpush1.bf16.msra.mxu0 0
      %2567 = vmatprep.subr.bf16.mxu0 0
      %2568 = vmatpush1.bf16.msra.mxu0 0
      %2569 = vmatprep.subr.bf16.mxu0 0
      %2570 = vmatpush1.bf16.msra.mxu0 0
      %2571 = vmatprep.subr.bf16.mxu0 0
      %2572 = vmatpush1.bf16.msra.mxu0 0
      %2573 = vmatprep.subr.bf16.mxu0 0
      %2574 = vmatpush1.bf16.msra.mxu0 0
      %2575 = vmatprep.subr.bf16.mxu0 0
      %2576 = vmatpush1.bf16.msra.mxu0 %v2554
      %2577 = vmatprep.subr.bf16.mxu0 0
      %2578 = vmatpush1.bf16.msra.mxu0 %v2553
      %2579 = vmatprep.subr.bf16.mxu0 0
      %2580 = vmatpush2.bf16.msra.mxu0 0
      %2581 = vmatprep.subr.bf16.mxu0 0
      %2582 = vmatpush2.bf16.msra.mxu0 0
      %2583 = vmatprep.subr.bf16.mxu0 0
      %2584 = vmatpush2.bf16.msra.mxu0 0
      %2585 = vmatprep.subr.bf16.mxu0 0
      %2586 = vmatpush2.bf16.msra.mxu0 0
      %2587 = vmatprep.subr.bf16.mxu0 0
      %2588 = vmatpush2.bf16.msra.mxu0 0
      %2589 = vmatprep.subr.bf16.mxu0 0
      %2590 = vmatpush2.bf16.msra.mxu0 0
      %2591 = vmatprep.subr.bf16.mxu0 0
      %2592 = vmatpush2.bf16.msra.mxu0 0
      %2593 = vmatprep.subr.bf16.mxu0 0
      %2594 = vmatpush2.bf16.msra.mxu0 0
      %2595 = vmatprep.mubr.bf16.mxu0 0
      %2596 = vmatmul.mubr.bf16.gmra.mxu0 %v2558
      %v2597 = vpop.f32.mrf.mxu0
      %v2598 = vadd.f32 %v2544, %v2597
      %v2599 = vpop.f32.mrf.mxu0
      %v2600 = vpop.f32.mrf.mxu0
      %v2601 = vadd.f32 %v2544, %v2600
      %v2602 = vpop.f32.mrf.mxu0
      %2603 = vmatprep.mubr.bf16.mxu0 0
      %2604 = vmatmul.mubr.bf16.gmra.mxu0 %v2561
      %v2605 = vpop.f32.mrf.mxu0
      %v2606 = vadd.f32 %v2544, %v2605
      %v2607 = vpop.f32.mrf.mxu0
      %v2608 = vpop.f32.mrf.mxu0
      %v2609 = vadd.f32 %v2544, %v2608
      %v2610 = vpop.f32.mrf.mxu0
      %2611 = vdwg.mxu0
      %v2612 = vadd.f32 %v2598, %v2307
      %v2613 = vadd.f32 %v2601, %v2353
      %v2614 = vadd.f32 %v2606, %v2399
      %v2615 = vadd.f32 %v2609, %v2445
      %v2616 = vpack.c.bf16 %v2613, %v2612
      %v2617 = vpack.c.bf16 %v2615, %v2614
      %s2618 = scalar_lea.vmem %s1, 144
      %v2619 = vld [vmem:[%s2618] sm:$0xf]
      %v2620 = vld [vmem:[%s2618 + $0x4] sm:$0xf]
      %v2621 = vld [vmem:[%s2618 + $0x8] sm:$0xf]
      %v2622 = vld [vmem:[%s2618 + $0xc] sm:$0xf]
      %v2627 = vunpack.c.l.b16 %v2619
      %v2628 = vunpack.c.l.b16 %v2620
      %v2629 = vunpack.c.l.b16 %v2621
      %v2630 = vunpack.c.l.b16 %v2622
      %v2631 = vpack.c.b16 %v2628, %v2627
      %v2632 = vpack.c.b16 %v2630, %v2629
      %v2636 = vsel %vm233, %v2616, 0
      %v2639 = vsel %vm233, %v2617, 0
      %2641 = vmatprep.subr.bf16.mxu0 0
      %2642 = vmatpush1.bf16.msra.mxu0 0
      %2643 = vmatprep.subr.bf16.mxu0 0
      %2644 = vmatpush1.bf16.msra.mxu0 0
      %2645 = vmatprep.subr.bf16.mxu0 0
      %2646 = vmatpush1.bf16.msra.mxu0 0
      %2647 = vmatprep.subr.bf16.mxu0 0
      %2648 = vmatpush1.bf16.msra.mxu0 0
      %2649 = vmatprep.subr.bf16.mxu0 0
      %2650 = vmatpush1.bf16.msra.mxu0 0
      %2651 = vmatprep.subr.bf16.mxu0 0
      %2652 = vmatpush1.bf16.msra.mxu0 0
      %2653 = vmatprep.subr.bf16.mxu0 0
      %2654 = vmatpush1.bf16.msra.mxu0 %v2632
      %2655 = vmatprep.subr.bf16.mxu0 0
      %2656 = vmatpush1.bf16.msra.mxu0 %v2631
      %2657 = vmatprep.subr.bf16.mxu0 0
      %2658 = vmatpush2.bf16.msra.mxu0 0
      %2659 = vmatprep.subr.bf16.mxu0 0
      %2660 = vmatpush2.bf16.msra.mxu0 0
      %2661 = vmatprep.subr.bf16.mxu0 0
      %2662 = vmatpush2.bf16.msra.mxu0 0
      %2663 = vmatprep.subr.bf16.mxu0 0
      %2664 = vmatpush2.bf16.msra.mxu0 0
      %2665 = vmatprep.subr.bf16.mxu0 0
      %2666 = vmatpush2.bf16.msra.mxu0 0
      %2667 = vmatprep.subr.bf16.mxu0 0
      %2668 = vmatpush2.bf16.msra.mxu0 0
      %2669 = vmatprep.subr.bf16.mxu0 0
      %2670 = vmatpush2.bf16.msra.mxu0 0
      %2671 = vmatprep.subr.bf16.mxu0 0
      %2672 = vmatpush2.bf16.msra.mxu0 0
      %2673 = vmatprep.mubr.bf16.mxu0 0
      %2674 = vmatmul.mubr.bf16.gmra.mxu0 %v2636
      %v2675 = vpop.f32.mrf.mxu0
      %v2676 = vadd.f32 0.0, %v2675
      %v2677 = vpop.f32.mrf.mxu0
      %v2678 = vpop.f32.mrf.mxu0
      %v2679 = vadd.f32 0.0, %v2678
      %v2680 = vpop.f32.mrf.mxu0
      %2681 = vmatprep.mubr.bf16.mxu0 0
      %2682 = vmatmul.mubr.bf16.gmra.mxu0 %v2639
      %v2683 = vpop.f32.mrf.mxu0
      %v2684 = vadd.f32 0.0, %v2683
      %v2685 = vpop.f32.mrf.mxu0
      %v2686 = vpop.f32.mrf.mxu0
      %v2687 = vadd.f32 0.0, %v2686
      %v2688 = vpop.f32.mrf.mxu0
      %2689 = vdwg.mxu0
      %s2690 = scalar_lea.vmem %s1, 160
      %v2691 = vld [vmem:[%s2690] sm:$0xf]
      %v2692 = vld [vmem:[%s2690 + $0x4] sm:$0xf]
      %v2693 = vld [vmem:[%s2690 + $0x8] sm:$0xf]
      %v2694 = vld [vmem:[%s2690 + $0xc] sm:$0xf]
      %v2699 = vunpack.c.l.b16 %v2691
      %v2700 = vunpack.c.l.b16 %v2692
      %v2701 = vunpack.c.l.b16 %v2693
      %v2702 = vunpack.c.l.b16 %v2694
      %v2703 = vpack.c.b16 %v2700, %v2699
      %v2704 = vpack.c.b16 %v2702, %v2701
      %2707 = vmatprep.subr.bf16.mxu0 0
      %2708 = vmatpush1.bf16.msra.mxu0 0
      %2709 = vmatprep.subr.bf16.mxu0 0
      %2710 = vmatpush1.bf16.msra.mxu0 0
      %2711 = vmatprep.subr.bf16.mxu0 0
      %2712 = vmatpush1.bf16.msra.mxu0 0
      %2713 = vmatprep.subr.bf16.mxu0 0
      %2714 = vmatpush1.bf16.msra.mxu0 0
      %2715 = vmatprep.subr.bf16.mxu0 0
      %2716 = vmatpush1.bf16.msra.mxu0 0
      %2717 = vmatprep.subr.bf16.mxu0 0
      %2718 = vmatpush1.bf16.msra.mxu0 0
      %2719 = vmatprep.subr.bf16.mxu0 0
      %2720 = vmatpush1.bf16.msra.mxu0 %v2704
      %2721 = vmatprep.subr.bf16.mxu0 0
      %2722 = vmatpush1.bf16.msra.mxu0 %v2703
      %2723 = vmatprep.subr.bf16.mxu0 0
      %2724 = vmatpush2.bf16.msra.mxu0 0
      %2725 = vmatprep.subr.bf16.mxu0 0
      %2726 = vmatpush2.bf16.msra.mxu0 0
      %2727 = vmatprep.subr.bf16.mxu0 0
      %2728 = vmatpush2.bf16.msra.mxu0 0
      %2729 = vmatprep.subr.bf16.mxu0 0
      %2730 = vmatpush2.bf16.msra.mxu0 0
      %2731 = vmatprep.subr.bf16.mxu0 0
      %2732 = vmatpush2.bf16.msra.mxu0 0
      %2733 = vmatprep.subr.bf16.mxu0 0
      %2734 = vmatpush2.bf16.msra.mxu0 0
      %2735 = vmatprep.subr.bf16.mxu0 0
      %2736 = vmatpush2.bf16.msra.mxu0 0
      %2737 = vmatprep.subr.bf16.mxu0 0
      %2738 = vmatpush2.bf16.msra.mxu0 0
      %2739 = vmatprep.mubr.bf16.mxu0 0
      %2740 = vmatmul.mubr.bf16.gmra.mxu0 %v2636
      %v2741 = vpop.f32.mrf.mxu0
      %v2742 = vadd.f32 0.0, %v2741
      %v2743 = vpop.f32.mrf.mxu0
      %v2744 = vpop.f32.mrf.mxu0
      %v2745 = vadd.f32 0.0, %v2744
      %v2746 = vpop.f32.mrf.mxu0
      %2747 = vmatprep.mubr.bf16.mxu0 0
      %2748 = vmatmul.mubr.bf16.gmra.mxu0 %v2639
      %v2749 = vpop.f32.mrf.mxu0
      %v2750 = vadd.f32 0.0, %v2749
      %v2751 = vpop.f32.mrf.mxu0
      %v2752 = vpop.f32.mrf.mxu0
      %v2753 = vadd.f32 0.0, %v2752
      %v2754 = vpop.f32.mrf.mxu0
      %2755 = vdwg.mxu0
      %s2756 = scalar_lea.vmem %s1, 176
      %v2757 = vld [vmem:[%s2756] sm:$0xf]
      %v2758 = vld [vmem:[%s2756 + $0x4] sm:$0xf]
      %v2759 = vld [vmem:[%s2756 + $0x8] sm:$0xf]
      %v2760 = vld [vmem:[%s2756 + $0xc] sm:$0xf]
      %v2765 = vunpack.c.l.b16 %v2757
      %v2766 = vunpack.c.l.b16 %v2758
      %v2767 = vunpack.c.l.b16 %v2759
      %v2768 = vunpack.c.l.b16 %v2760
      %v2769 = vpack.c.b16 %v2766, %v2765
      %v2770 = vpack.c.b16 %v2768, %v2767
      %2773 = vmatprep.subr.bf16.mxu0 0
      %2774 = vmatpush1.bf16.msra.mxu0 0
      %2775 = vmatprep.subr.bf16.mxu0 0
      %2776 = vmatpush1.bf16.msra.mxu0 0
      %2777 = vmatprep.subr.bf16.mxu0 0
      %2778 = vmatpush1.bf16.msra.mxu0 0
      %2779 = vmatprep.subr.bf16.mxu0 0
      %2780 = vmatpush1.bf16.msra.mxu0 0
      %2781 = vmatprep.subr.bf16.mxu0 0
      %2782 = vmatpush1.bf16.msra.mxu0 0
      %2783 = vmatprep.subr.bf16.mxu0 0
      %2784 = vmatpush1.bf16.msra.mxu0 0
      %2785 = vmatprep.subr.bf16.mxu0 0
      %2786 = vmatpush1.bf16.msra.mxu0 %v2770
      %2787 = vmatprep.subr.bf16.mxu0 0
      %2788 = vmatpush1.bf16.msra.mxu0 %v2769
      %2789 = vmatprep.subr.bf16.mxu0 0
      %2790 = vmatpush2.bf16.msra.mxu0 0
      %2791 = vmatprep.subr.bf16.mxu0 0
      %2792 = vmatpush2.bf16.msra.mxu0 0
      %2793 = vmatprep.subr.bf16.mxu0 0
      %2794 = vmatpush2.bf16.msra.mxu0 0
      %2795 = vmatprep.subr.bf16.mxu0 0
      %2796 = vmatpush2.bf16.msra.mxu0 0
      %2797 = vmatprep.subr.bf16.mxu0 0
      %2798 = vmatpush2.bf16.msra.mxu0 0
      %2799 = vmatprep.subr.bf16.mxu0 0
      %2800 = vmatpush2.bf16.msra.mxu0 0
      %2801 = vmatprep.subr.bf16.mxu0 0
      %2802 = vmatpush2.bf16.msra.mxu0 0
      %2803 = vmatprep.subr.bf16.mxu0 0
      %2804 = vmatpush2.bf16.msra.mxu0 0
      %2805 = vmatprep.mubr.bf16.mxu0 0
      %2806 = vmatmul.mubr.bf16.gmra.mxu0 %v2636
      %v2807 = vpop.f32.mrf.mxu0
      %v2808 = vadd.f32 0.0, %v2807
      %v2809 = vpop.f32.mrf.mxu0
      %v2810 = vpop.f32.mrf.mxu0
      %v2811 = vadd.f32 0.0, %v2810
      %v2812 = vpop.f32.mrf.mxu0
      %2813 = vmatprep.mubr.bf16.mxu0 0
      %2814 = vmatmul.mubr.bf16.gmra.mxu0 %v2639
      %v2815 = vpop.f32.mrf.mxu0
      %v2816 = vadd.f32 0.0, %v2815
      %v2817 = vpop.f32.mrf.mxu0
      %v2818 = vpop.f32.mrf.mxu0
      %v2819 = vadd.f32 0.0, %v2818
      %v2820 = vpop.f32.mrf.mxu0
      %2821 = vdwg.mxu0
      %v2822 = vpack.c.bf16 %v2676, %v2676
      %v2823 = vpack.c.bf16 %v2679, %v2679
      %v2824 = vpack.c.bf16 %v2684, %v2684
      %v2825 = vpack.c.bf16 %v2687, %v2687
      %v2826 = vpack.c.bf16 %v2742, %v2742
      %v2827 = vpack.c.bf16 %v2745, %v2745
      %v2828 = vpack.c.bf16 %v2750, %v2750
      %v2829 = vpack.c.bf16 %v2753, %v2753
      %v2830 = vpack.c.bf16 %v2808, %v2808
      %v2831 = vpack.c.bf16 %v2811, %v2811
      %v2832 = vpack.c.bf16 %v2816, %v2816
      %v2833 = vpack.c.bf16 %v2819, %v2819
      %v2835 = vsel %vm233, %v2822, 0
      %v2838 = vsel %vm233, %v2826, 0
      %2840 = vmatprep.subr.bf16.mxu0 0
      %2841 = vmatpush1.bf16.xpose.msra.mxu0 0
      %2842 = vmatprep.subr.bf16.mxu0 0
      %2843 = vmatpush1.bf16.xpose.msra.mxu0 0
      %2844 = vmatprep.subr.bf16.mxu0 0
      %2845 = vmatpush1.bf16.xpose.msra.mxu0 0
      %2846 = vmatprep.subr.bf16.mxu0 0
      %2847 = vmatpush1.bf16.xpose.msra.mxu0 0
      %2848 = vmatprep.subr.bf16.mxu0 0
      %2849 = vmatpush1.bf16.xpose.msra.mxu0 0
      %2850 = vmatprep.subr.bf16.mxu0 0
      %2851 = vmatpush1.bf16.xpose.msra.mxu0 0
      %2852 = vmatprep.subr.bf16.mxu0 0
      %2853 = vmatpush1.bf16.xpose.msra.mxu0 0
      %2854 = vmatprep.subr.bf16.mxu0 0
      %2855 = vmatpush1.bf16.xpose.msra.mxu0 %v2838
      %2856 = vmatprep.subr.bf16.mxu0 0
      %2857 = vmatpush2.bf16.xpose.msra.mxu0 0
      %2858 = vmatprep.subr.bf16.mxu0 0
      %2859 = vmatpush2.bf16.xpose.msra.mxu0 0
      %2860 = vmatprep.subr.bf16.mxu0 0
      %2861 = vmatpush2.bf16.xpose.msra.mxu0 0
      %2862 = vmatprep.subr.bf16.mxu0 0
      %2863 = vmatpush2.bf16.xpose.msra.mxu0 0
      %2864 = vmatprep.subr.bf16.mxu0 0
      %2865 = vmatpush2.bf16.xpose.msra.mxu0 0
      %2866 = vmatprep.subr.bf16.mxu0 0
      %2867 = vmatpush2.bf16.xpose.msra.mxu0 0
      %2868 = vmatprep.subr.bf16.mxu0 0
      %2869 = vmatpush2.bf16.xpose.msra.mxu0 0
      %2870 = vmatprep.subr.bf16.mxu0 0
      %2871 = vmatpush2.bf16.xpose.msra.mxu0 0
      %2872 = vmatprep.mubr.bf16.mxu0 0
      %2873 = vmatmul.mubr.bf16.gmra.mxu0 %v2835
      %v2874 = vpop.f32.mrf.mxu0
      %v2875 = vadd.f32 %v206, %v2874
      %v2876 = vpop.f32.mrf.mxu0
      %v2877 = vpop.f32.mrf.mxu0
      %v2878 = vpop.f32.mrf.mxu0
      %2879 = vdwg.mxu0
      %v2881 = vsel %vm233, %v2823, 0
      %v2884 = vsel %vm233, %v2827, 0
      %2886 = vmatprep.subr.bf16.mxu0 0
      %2887 = vmatpush1.bf16.xpose.msra.mxu0 0
      %2888 = vmatprep.subr.bf16.mxu0 0
      %2889 = vmatpush1.bf16.xpose.msra.mxu0 0
      %2890 = vmatprep.subr.bf16.mxu0 0
      %2891 = vmatpush1.bf16.xpose.msra.mxu0 0
      %2892 = vmatprep.subr.bf16.mxu0 0
      %2893 = vmatpush1.bf16.xpose.msra.mxu0 0
      %2894 = vmatprep.subr.bf16.mxu0 0
      %2895 = vmatpush1.bf16.xpose.msra.mxu0 0
      %2896 = vmatprep.subr.bf16.mxu0 0
      %2897 = vmatpush1.bf16.xpose.msra.mxu0 0
      %2898 = vmatprep.subr.bf16.mxu0 0
      %2899 = vmatpush1.bf16.xpose.msra.mxu0 0
      %2900 = vmatprep.subr.bf16.mxu0 0
      %2901 = vmatpush1.bf16.xpose.msra.mxu0 %v2884
      %2902 = vmatprep.subr.bf16.mxu0 0
      %2903 = vmatpush2.bf16.xpose.msra.mxu0 0
      %2904 = vmatprep.subr.bf16.mxu0 0
      %2905 = vmatpush2.bf16.xpose.msra.mxu0 0
      %2906 = vmatprep.subr.bf16.mxu0 0
      %2907 = vmatpush2.bf16.xpose.msra.mxu0 0
      %2908 = vmatprep.subr.bf16.mxu0 0
      %2909 = vmatpush2.bf16.xpose.msra.mxu0 0
      %2910 = vmatprep.subr.bf16.mxu0 0
      %2911 = vmatpush2.bf16.xpose.msra.mxu0 0
      %2912 = vmatprep.subr.bf16.mxu0 0
      %2913 = vmatpush2.bf16.xpose.msra.mxu0 0
      %2914 = vmatprep.subr.bf16.mxu0 0
      %2915 = vmatpush2.bf16.xpose.msra.mxu0 0
      %2916 = vmatprep.subr.bf16.mxu0 0
      %2917 = vmatpush2.bf16.xpose.msra.mxu0 0
      %2918 = vmatprep.mubr.bf16.mxu0 0
      %2919 = vmatmul.mubr.bf16.gmra.mxu0 %v2881
      %v2920 = vpop.f32.mrf.mxu0
      %v2921 = vadd.f32 %v206, %v2920
      %v2922 = vpop.f32.mrf.mxu0
      %v2923 = vpop.f32.mrf.mxu0
      %v2924 = vpop.f32.mrf.mxu0
      %2925 = vdwg.mxu0
      %v2927 = vsel %vm233, %v2824, 0
      %v2930 = vsel %vm233, %v2828, 0
      %2932 = vmatprep.subr.bf16.mxu0 0
      %2933 = vmatpush1.bf16.xpose.msra.mxu0 0
      %2934 = vmatprep.subr.bf16.mxu0 0
      %2935 = vmatpush1.bf16.xpose.msra.mxu0 0
      %2936 = vmatprep.subr.bf16.mxu0 0
      %2937 = vmatpush1.bf16.xpose.msra.mxu0 0
      %2938 = vmatprep.subr.bf16.mxu0 0
      %2939 = vmatpush1.bf16.xpose.msra.mxu0 0
      %2940 = vmatprep.subr.bf16.mxu0 0
      %2941 = vmatpush1.bf16.xpose.msra.mxu0 0
      %2942 = vmatprep.subr.bf16.mxu0 0
      %2943 = vmatpush1.bf16.xpose.msra.mxu0 0
      %2944 = vmatprep.subr.bf16.mxu0 0
      %2945 = vmatpush1.bf16.xpose.msra.mxu0 0
      %2946 = vmatprep.subr.bf16.mxu0 0
      %2947 = vmatpush1.bf16.xpose.msra.mxu0 %v2930
      %2948 = vmatprep.subr.bf16.mxu0 0
      %2949 = vmatpush2.bf16.xpose.msra.mxu0 0
      %2950 = vmatprep.subr.bf16.mxu0 0
      %2951 = vmatpush2.bf16.xpose.msra.mxu0 0
      %2952 = vmatprep.subr.bf16.mxu0 0
      %2953 = vmatpush2.bf16.xpose.msra.mxu0 0
      %2954 = vmatprep.subr.bf16.mxu0 0
      %2955 = vmatpush2.bf16.xpose.msra.mxu0 0
      %2956 = vmatprep.subr.bf16.mxu0 0
      %2957 = vmatpush2.bf16.xpose.msra.mxu0 0
      %2958 = vmatprep.subr.bf16.mxu0 0
      %2959 = vmatpush2.bf16.xpose.msra.mxu0 0
      %2960 = vmatprep.subr.bf16.mxu0 0
      %2961 = vmatpush2.bf16.xpose.msra.mxu0 0
      %2962 = vmatprep.subr.bf16.mxu0 0
      %2963 = vmatpush2.bf16.xpose.msra.mxu0 0
      %2964 = vmatprep.mubr.bf16.mxu0 0
      %2965 = vmatmul.mubr.bf16.gmra.mxu0 %v2927
      %v2966 = vpop.f32.mrf.mxu0
      %v2967 = vadd.f32 %v206, %v2966
      %v2968 = vpop.f32.mrf.mxu0
      %v2969 = vpop.f32.mrf.mxu0
      %v2970 = vpop.f32.mrf.mxu0
      %2971 = vdwg.mxu0
      %v2973 = vsel %vm233, %v2825, 0
      %v2976 = vsel %vm233, %v2829, 0
      %2978 = vmatprep.subr.bf16.mxu0 0
      %2979 = vmatpush1.bf16.xpose.msra.mxu0 0
      %2980 = vmatprep.subr.bf16.mxu0 0
      %2981 = vmatpush1.bf16.xpose.msra.mxu0 0
      %2982 = vmatprep.subr.bf16.mxu0 0
      %2983 = vmatpush1.bf16.xpose.msra.mxu0 0
      %2984 = vmatprep.subr.bf16.mxu0 0
      %2985 = vmatpush1.bf16.xpose.msra.mxu0 0
      %2986 = vmatprep.subr.bf16.mxu0 0
      %2987 = vmatpush1.bf16.xpose.msra.mxu0 0
      %2988 = vmatprep.subr.bf16.mxu0 0
      %2989 = vmatpush1.bf16.xpose.msra.mxu0 0
      %2990 = vmatprep.subr.bf16.mxu0 0
      %2991 = vmatpush1.bf16.xpose.msra.mxu0 0
      %2992 = vmatprep.subr.bf16.mxu0 0
      %2993 = vmatpush1.bf16.xpose.msra.mxu0 %v2976
      %2994 = vmatprep.subr.bf16.mxu0 0
      %2995 = vmatpush2.bf16.xpose.msra.mxu0 0
      %2996 = vmatprep.subr.bf16.mxu0 0
      %2997 = vmatpush2.bf16.xpose.msra.mxu0 0
      %2998 = vmatprep.subr.bf16.mxu0 0
      %2999 = vmatpush2.bf16.xpose.msra.mxu0 0
      %3000 = vmatprep.subr.bf16.mxu0 0
      %3001 = vmatpush2.bf16.xpose.msra.mxu0 0
      %3002 = vmatprep.subr.bf16.mxu0 0
      %3003 = vmatpush2.bf16.xpose.msra.mxu0 0
      %3004 = vmatprep.subr.bf16.mxu0 0
      %3005 = vmatpush2.bf16.xpose.msra.mxu0 0
      %3006 = vmatprep.subr.bf16.mxu0 0
      %3007 = vmatpush2.bf16.xpose.msra.mxu0 0
      %3008 = vmatprep.subr.bf16.mxu0 0
      %3009 = vmatpush2.bf16.xpose.msra.mxu0 0
      %3010 = vmatprep.mubr.bf16.mxu0 0
      %3011 = vmatmul.mubr.bf16.gmra.mxu0 %v2973
      %v3012 = vpop.f32.mrf.mxu0
      %v3013 = vadd.f32 %v206, %v3012
      %v3014 = vpop.f32.mrf.mxu0
      %v3015 = vpop.f32.mrf.mxu0
      %v3016 = vpop.f32.mrf.mxu0
      %3017 = vdwg.mxu0
      %v3018 = vsel %vm617, %v2875, -inf
      %3019 = vmax.xlane.f32.xlu0 %v3018
      %v3020 = vpop.xlane.xlu0 %3019
      %v3021 = vsel %vm617, %v2921, -inf
      %3022 = vmax.xlane.f32.xlu0 %v3021
      %v3023 = vpop.xlane.xlu0 %3022
      %v3024 = vsel %vm617, %v2967, -inf
      %3025 = vmax.xlane.f32.xlu0 %v3024
      %v3026 = vpop.xlane.xlu0 %3025
      %v3027 = vsel %vm617, %v3013, -inf
      %3028 = vmax.xlane.f32.xlu0 %v3027
      %v3029 = vpop.xlane.xlu0 %3028
      %v3030 = vsub.f32 %v2875, %v3020
      %v3031 = vsub.f32 %v2921, %v3023
      %v3032 = vsub.f32 %v2967, %v3026
      %v3033 = vsub.f32 %v3013, %v3029
      %v3034 = vmul.f32 %v3030, 1.442695
      %v3035 = vpow.pop %v3034
      %v3036 = vmul.f32 %v3031, 1.442695
      %v3037 = vpow.pop %v3036
      %v3038 = vmul.f32 %v3032, 1.442695
      %v3039 = vpow.pop %v3038
      %v3040 = vmul.f32 %v3033, 1.442695
      %v3041 = vpow.pop %v3040
      %v3042 = vsel %vm617, %v3035, 0.0
      %3043 = vadd.xlane.f32.xlu0 %v3042
      %v3044 = vpop.xlane.xlu0 %3043
      %v3045 = vsel %vm617, %v3037, 0.0
      %3046 = vadd.xlane.f32.xlu0 %v3045
      %v3047 = vpop.xlane.xlu0 %3046
      %v3048 = vsel %vm617, %v3039, 0.0
      %3049 = vadd.xlane.f32.xlu0 %v3048
      %v3050 = vpop.xlane.xlu0 %3049
      %v3051 = vsel %vm617, %v3041, 0.0
      %3052 = vadd.xlane.f32.xlu0 %v3051
      %v3053 = vpop.xlane.xlu0 %3052
      %v3054 = vrcp.pop %v3044
      %v3055 = vrcp.pop %v3047
      %v3056 = vrcp.pop %v3050
      %v3057 = vrcp.pop %v3053
      %v3058 = vmul.f32 %v3035, %v3054
      %v3059 = vmul.f32 %v3037, %v3055
      %v3060 = vmul.f32 %v3039, %v3056
      %v3061 = vmul.f32 %v3041, %v3057
      %v3062 = vpack.c.bf16 %v3058, %v3058
      %v3063 = vpack.c.bf16 %v3059, %v3059
      %v3064 = vpack.c.bf16 %v3060, %v3060
      %v3065 = vpack.c.bf16 %v3061, %v3061
      %v3067 = vsel %vm617, %v3062, 0
      %v3070 = vsel %vm669, %v2830, 0
      %3072 = vmatprep.subr.bf16.mxu0 0
      %3073 = vmatpush1.bf16.msra.mxu0 0
      %3074 = vmatprep.subr.bf16.mxu0 0
      %3075 = vmatpush1.bf16.msra.mxu0 0
      %3076 = vmatprep.subr.bf16.mxu0 0
      %3077 = vmatpush1.bf16.msra.mxu0 0
      %3078 = vmatprep.subr.bf16.mxu0 0
      %3079 = vmatpush1.bf16.msra.mxu0 0
      %3080 = vmatprep.subr.bf16.mxu0 0
      %3081 = vmatpush1.bf16.msra.mxu0 0
      %3082 = vmatprep.subr.bf16.mxu0 0
      %3083 = vmatpush1.bf16.msra.mxu0 0
      %3084 = vmatprep.subr.bf16.mxu0 0
      %3085 = vmatpush1.bf16.msra.mxu0 0
      %3086 = vmatprep.subr.bf16.mxu0 0
      %3087 = vmatpush1.bf16.msra.mxu0 %v3070
      %3088 = vmatprep.subr.bf16.mxu0 0
      %3089 = vmatpush2.bf16.msra.mxu0 0
      %3090 = vmatprep.subr.bf16.mxu0 0
      %3091 = vmatpush2.bf16.msra.mxu0 0
      %3092 = vmatprep.subr.bf16.mxu0 0
      %3093 = vmatpush2.bf16.msra.mxu0 0
      %3094 = vmatprep.subr.bf16.mxu0 0
      %3095 = vmatpush2.bf16.msra.mxu0 0
      %3096 = vmatprep.subr.bf16.mxu0 0
      %3097 = vmatpush2.bf16.msra.mxu0 0
      %3098 = vmatprep.subr.bf16.mxu0 0
      %3099 = vmatpush2.bf16.msra.mxu0 0
      %3100 = vmatprep.subr.bf16.mxu0 0
      %3101 = vmatpush2.bf16.msra.mxu0 0
      %3102 = vmatprep.subr.bf16.mxu0 0
      %3103 = vmatpush2.bf16.msra.mxu0 0
      %3104 = vmatprep.mubr.bf16.mxu0 0
      %3105 = vmatmul.mubr.bf16.gmra.mxu0 %v3067
      %v3106 = vpop.f32.mrf.mxu0
      %v3107 = vadd.f32 0.0, %v3106
      %v3108 = vpop.f32.mrf.mxu0
      %v3109 = vpop.f32.mrf.mxu0
      %v3110 = vpop.f32.mrf.mxu0
      %3111 = vdwg.mxu0
      %v3113 = vsel %vm617, %v3063, 0
      %v3116 = vsel %vm669, %v2831, 0
      %3118 = vmatprep.subr.bf16.mxu0 0
      %3119 = vmatpush1.bf16.msra.mxu0 0
      %3120 = vmatprep.subr.bf16.mxu0 0
      %3121 = vmatpush1.bf16.msra.mxu0 0
      %3122 = vmatprep.subr.bf16.mxu0 0
      %3123 = vmatpush1.bf16.msra.mxu0 0
      %3124 = vmatprep.subr.bf16.mxu0 0
      %3125 = vmatpush1.bf16.msra.mxu0 0
      %3126 = vmatprep.subr.bf16.mxu0 0
      %3127 = vmatpush1.bf16.msra.mxu0 0
      %3128 = vmatprep.subr.bf16.mxu0 0
      %3129 = vmatpush1.bf16.msra.mxu0 0
      %3130 = vmatprep.subr.bf16.mxu0 0
      %3131 = vmatpush1.bf16.msra.mxu0 0
      %3132 = vmatprep.subr.bf16.mxu0 0
      %3133 = vmatpush1.bf16.msra.mxu0 %v3116
      %3134 = vmatprep.subr.bf16.mxu0 0
      %3135 = vmatpush2.bf16.msra.mxu0 0
      %3136 = vmatprep.subr.bf16.mxu0 0
      %3137 = vmatpush2.bf16.msra.mxu0 0
      %3138 = vmatprep.subr.bf16.mxu0 0
      %3139 = vmatpush2.bf16.msra.mxu0 0
      %3140 = vmatprep.subr.bf16.mxu0 0
      %3141 = vmatpush2.bf16.msra.mxu0 0
      %3142 = vmatprep.subr.bf16.mxu0 0
      %3143 = vmatpush2.bf16.msra.mxu0 0
      %3144 = vmatprep.subr.bf16.mxu0 0
      %3145 = vmatpush2.bf16.msra.mxu0 0
      %3146 = vmatprep.subr.bf16.mxu0 0
      %3147 = vmatpush2.bf16.msra.mxu0 0
      %3148 = vmatprep.subr.bf16.mxu0 0
      %3149 = vmatpush2.bf16.msra.mxu0 0
      %3150 = vmatprep.mubr.bf16.mxu0 0
      %3151 = vmatmul.mubr.bf16.gmra.mxu0 %v3113
      %v3152 = vpop.f32.mrf.mxu0
      %v3153 = vadd.f32 0.0, %v3152
      %v3154 = vpop.f32.mrf.mxu0
      %v3155 = vpop.f32.mrf.mxu0
      %v3156 = vpop.f32.mrf.mxu0
      %3157 = vdwg.mxu0
      %v3159 = vsel %vm617, %v3064, 0
      %v3162 = vsel %vm669, %v2832, 0
      %3164 = vmatprep.subr.bf16.mxu0 0
      %3165 = vmatpush1.bf16.msra.mxu0 0
      %3166 = vmatprep.subr.bf16.mxu0 0
      %3167 = vmatpush1.bf16.msra.mxu0 0
      %3168 = vmatprep.subr.bf16.mxu0 0
      %3169 = vmatpush1.bf16.msra.mxu0 0
      %3170 = vmatprep.subr.bf16.mxu0 0
      %3171 = vmatpush1.bf16.msra.mxu0 0
      %3172 = vmatprep.subr.bf16.mxu0 0
      %3173 = vmatpush1.bf16.msra.mxu0 0
      %3174 = vmatprep.subr.bf16.mxu0 0
      %3175 = vmatpush1.bf16.msra.mxu0 0
      %3176 = vmatprep.subr.bf16.mxu0 0
      %3177 = vmatpush1.bf16.msra.mxu0 0
      %3178 = vmatprep.subr.bf16.mxu0 0
      %3179 = vmatpush1.bf16.msra.mxu0 %v3162
      %3180 = vmatprep.subr.bf16.mxu0 0
      %3181 = vmatpush2.bf16.msra.mxu0 0
      %3182 = vmatprep.subr.bf16.mxu0 0
      %3183 = vmatpush2.bf16.msra.mxu0 0
      %3184 = vmatprep.subr.bf16.mxu0 0
      %3185 = vmatpush2.bf16.msra.mxu0 0
      %3186 = vmatprep.subr.bf16.mxu0 0
      %3187 = vmatpush2.bf16.msra.mxu0 0
      %3188 = vmatprep.subr.bf16.mxu0 0
      %3189 = vmatpush2.bf16.msra.mxu0 0
      %3190 = vmatprep.subr.bf16.mxu0 0
      %3191 = vmatpush2.bf16.msra.mxu0 0
      %3192 = vmatprep.subr.bf16.mxu0 0
      %3193 = vmatpush2.bf16.msra.mxu0 0
      %3194 = vmatprep.subr.bf16.mxu0 0
      %3195 = vmatpush2.bf16.msra.mxu0 0
      %3196 = vmatprep.mubr.bf16.mxu0 0
      %3197 = vmatmul.mubr.bf16.gmra.mxu0 %v3159
      %v3198 = vpop.f32.mrf.mxu0
      %v3199 = vadd.f32 0.0, %v3198
      %v3200 = vpop.f32.mrf.mxu0
      %v3201 = vpop.f32.mrf.mxu0
      %v3202 = vpop.f32.mrf.mxu0
      %3203 = vdwg.mxu0
      %v3205 = vsel %vm617, %v3065, 0
      %v3208 = vsel %vm669, %v2833, 0
      %3210 = vmatprep.subr.bf16.mxu0 0
      %3211 = vmatpush1.bf16.msra.mxu0 0
      %3212 = vmatprep.subr.bf16.mxu0 0
      %3213 = vmatpush1.bf16.msra.mxu0 0
      %3214 = vmatprep.subr.bf16.mxu0 0
      %3215 = vmatpush1.bf16.msra.mxu0 0
      %3216 = vmatprep.subr.bf16.mxu0 0
      %3217 = vmatpush1.bf16.msra.mxu0 0
      %3218 = vmatprep.subr.bf16.mxu0 0
      %3219 = vmatpush1.bf16.msra.mxu0 0
      %3220 = vmatprep.subr.bf16.mxu0 0
      %3221 = vmatpush1.bf16.msra.mxu0 0
      %3222 = vmatprep.subr.bf16.mxu0 0
      %3223 = vmatpush1.bf16.msra.mxu0 0
      %3224 = vmatprep.subr.bf16.mxu0 0
      %3225 = vmatpush1.bf16.msra.mxu0 %v3208
      %3226 = vmatprep.subr.bf16.mxu0 0
      %3227 = vmatpush2.bf16.msra.mxu0 0
      %3228 = vmatprep.subr.bf16.mxu0 0
      %3229 = vmatpush2.bf16.msra.mxu0 0
      %3230 = vmatprep.subr.bf16.mxu0 0
      %3231 = vmatpush2.bf16.msra.mxu0 0
      %3232 = vmatprep.subr.bf16.mxu0 0
      %3233 = vmatpush2.bf16.msra.mxu0 0
      %3234 = vmatprep.subr.bf16.mxu0 0
      %3235 = vmatpush2.bf16.msra.mxu0 0
      %3236 = vmatprep.subr.bf16.mxu0 0
      %3237 = vmatpush2.bf16.msra.mxu0 0
      %3238 = vmatprep.subr.bf16.mxu0 0
      %3239 = vmatpush2.bf16.msra.mxu0 0
      %3240 = vmatprep.subr.bf16.mxu0 0
      %3241 = vmatpush2.bf16.msra.mxu0 0
      %3242 = vmatprep.mubr.bf16.mxu0 0
      %3243 = vmatmul.mubr.bf16.gmra.mxu0 %v3205
      %v3244 = vpop.f32.mrf.mxu0
      %v3245 = vadd.f32 0.0, %v3244
      %v3246 = vpop.f32.mrf.mxu0
      %v3247 = vpop.f32.mrf.mxu0
      %v3248 = vpop.f32.mrf.mxu0
      %3249 = vdwg.mxu0
      %v3250 = vld [vmem:[%s3 + $0x3] sm:$0x1]
      %v3251 = vld [vmem:[%s3 + $0x7] sm:$0x1]
      %v3252 = vpack.c.bf16 %v3153, %v3107
      %v3253 = vpack.c.bf16 %v3245, %v3199
      %s3254 = scalar_lea.vmem %s2, 96
      %v3255 = vld [vmem:[%s3254] sm:$0xf]
      %v3256 = vld [vmem:[%s3254 + $0x4] sm:$0xf]
      %v3257 = vld [vmem:[%s3254 + $0x8] sm:$0xf]
      %v3258 = vld [vmem:[%s3254 + $0xc] sm:$0xf]
      %v3259 = vlaneseq
      %v3260 = vshrl.u32 %v3259, 7
      %v3261 = vsub.s32 0, %v3260
      %v3262 = vrot.slane %v3250, %v3261
      %v3267 = vunpack.c.l.b16 %v3255
      %v3268 = vunpack.c.l.b16 %v3256
      %v3269 = vunpack.c.l.b16 %v3257
      %v3270 = vunpack.c.l.b16 %v3258
      %v3271 = vpack.c.b16 %v3268, %v3267
      %v3272 = vpack.c.b16 %v3270, %v3269
      %v3276 = vsel %vm233, %v3252, 0
      %v3279 = vsel %vm233, %v3253, 0
      %3281 = vmatprep.subr.bf16.mxu0 0
      %3282 = vmatpush1.bf16.msra.mxu0 0
      %3283 = vmatprep.subr.bf16.mxu0 0
      %3284 = vmatpush1.bf16.msra.mxu0 0
      %3285 = vmatprep.subr.bf16.mxu0 0
      %3286 = vmatpush1.bf16.msra.mxu0 0
      %3287 = vmatprep.subr.bf16.mxu0 0
      %3288 = vmatpush1.bf16.msra.mxu0 0
      %3289 = vmatprep.subr.bf16.mxu0 0
      %3290 = vmatpush1.bf16.msra.mxu0 0
      %3291 = vmatprep.subr.bf16.mxu0 0
      %3292 = vmatpush1.bf16.msra.mxu0 0
      %3293 = vmatprep.subr.bf16.mxu0 0
      %3294 = vmatpush1.bf16.msra.mxu0 %v3272
      %3295 = vmatprep.subr.bf16.mxu0 0
      %3296 = vmatpush1.bf16.msra.mxu0 %v3271
      %3297 = vmatprep.subr.bf16.mxu0 0
      %3298 = vmatpush2.bf16.msra.mxu0 0
      %3299 = vmatprep.subr.bf16.mxu0 0
      %3300 = vmatpush2.bf16.msra.mxu0 0
      %3301 = vmatprep.subr.bf16.mxu0 0
      %3302 = vmatpush2.bf16.msra.mxu0 0
      %3303 = vmatprep.subr.bf16.mxu0 0
      %3304 = vmatpush2.bf16.msra.mxu0 0
      %3305 = vmatprep.subr.bf16.mxu0 0
      %3306 = vmatpush2.bf16.msra.mxu0 0
      %3307 = vmatprep.subr.bf16.mxu0 0
      %3308 = vmatpush2.bf16.msra.mxu0 0
      %3309 = vmatprep.subr.bf16.mxu0 0
      %3310 = vmatpush2.bf16.msra.mxu0 0
      %3311 = vmatprep.subr.bf16.mxu0 0
      %3312 = vmatpush2.bf16.msra.mxu0 0
      %3313 = vmatprep.mubr.bf16.mxu0 0
      %3314 = vmatmul.mubr.bf16.gmra.mxu0 %v3276
      %v3315 = vpop.f32.mrf.mxu0
      %v3316 = vadd.f32 %v3262, %v3315
      %v3317 = vpop.f32.mrf.mxu0
      %v3318 = vpop.f32.mrf.mxu0
      %v3319 = vadd.f32 %v3262, %v3318
      %v3320 = vpop.f32.mrf.mxu0
      %3321 = vmatprep.mubr.bf16.mxu0 0
      %3322 = vmatmul.mubr.bf16.gmra.mxu0 %v3279
      %v3323 = vpop.f32.mrf.mxu0
      %v3324 = vadd.f32 %v3262, %v3323
      %v3325 = vpop.f32.mrf.mxu0
      %v3326 = vpop.f32.mrf.mxu0
      %v3327 = vadd.f32 %v3262, %v3326
      %v3328 = vpop.f32.mrf.mxu0
      %3329 = vdwg.mxu0
      %v3330 = vmax.f32 %v3316, 0.0
      %v3331 = vmax.f32 %v3319, 0.0
      %v3332 = vmax.f32 %v3324, 0.0
      %v3333 = vmax.f32 %v3327, 0.0
      %v3334 = vpack.c.bf16 %v3331, %v3330
      %v3335 = vpack.c.bf16 %v3333, %v3332
      %s3336 = scalar_lea.vmem %s2, 112
      %v3337 = vld [vmem:[%s3336] sm:$0xf]
      %v3338 = vld [vmem:[%s3336 + $0x4] sm:$0xf]
      %v3339 = vld [vmem:[%s3336 + $0x8] sm:$0xf]
      %v3340 = vld [vmem:[%s3336 + $0xc] sm:$0xf]
      %v3341 = vlaneseq
      %v3342 = vshrl.u32 %v3341, 7
      %v3343 = vsub.s32 0, %v3342
      %v3344 = vrot.slane %v3251, %v3343
      %v3349 = vunpack.c.l.b16 %v3337
      %v3350 = vunpack.c.l.b16 %v3338
      %v3351 = vunpack.c.l.b16 %v3339
      %v3352 = vunpack.c.l.b16 %v3340
      %v3353 = vpack.c.b16 %v3350, %v3349
      %v3354 = vpack.c.b16 %v3352, %v3351
      %v3358 = vsel %vm233, %v3334, 0
      %v3361 = vsel %vm233, %v3335, 0
      %3363 = vmatprep.subr.bf16.mxu0 0
      %3364 = vmatpush1.bf16.msra.mxu0 0
      %3365 = vmatprep.subr.bf16.mxu0 0
      %3366 = vmatpush1.bf16.msra.mxu0 0
      %3367 = vmatprep.subr.bf16.mxu0 0
      %3368 = vmatpush1.bf16.msra.mxu0 0
      %3369 = vmatprep.subr.bf16.mxu0 0
      %3370 = vmatpush1.bf16.msra.mxu0 0
      %3371 = vmatprep.subr.bf16.mxu0 0
      %3372 = vmatpush1.bf16.msra.mxu0 0
      %3373 = vmatprep.subr.bf16.mxu0 0
      %3374 = vmatpush1.bf16.msra.mxu0 0
      %3375 = vmatprep.subr.bf16.mxu0 0
      %3376 = vmatpush1.bf16.msra.mxu0 %v3354
      %3377 = vmatprep.subr.bf16.mxu0 0
      %3378 = vmatpush1.bf16.msra.mxu0 %v3353
      %3379 = vmatprep.subr.bf16.mxu0 0
      %3380 = vmatpush2.bf16.msra.mxu0 0
      %3381 = vmatprep.subr.bf16.mxu0 0
      %3382 = vmatpush2.bf16.msra.mxu0 0
      %3383 = vmatprep.subr.bf16.mxu0 0
      %3384 = vmatpush2.bf16.msra.mxu0 0
      %3385 = vmatprep.subr.bf16.mxu0 0
      %3386 = vmatpush2.bf16.msra.mxu0 0
      %3387 = vmatprep.subr.bf16.mxu0 0
      %3388 = vmatpush2.bf16.msra.mxu0 0
      %3389 = vmatprep.subr.bf16.mxu0 0
      %3390 = vmatpush2.bf16.msra.mxu0 0
      %3391 = vmatprep.subr.bf16.mxu0 0
      %3392 = vmatpush2.bf16.msra.mxu0 0
      %3393 = vmatprep.subr.bf16.mxu0 0
      %3394 = vmatpush2.bf16.msra.mxu0 0
      %3395 = vmatprep.mubr.bf16.mxu0 0
      %3396 = vmatmul.mubr.bf16.gmra.mxu0 %v3358
      %v3397 = vpop.f32.mrf.mxu0
      %v3398 = vadd.f32 %v3344, %v3397
      %v3399 = vpop.f32.mrf.mxu0
      %v3400 = vpop.f32.mrf.mxu0
      %v3401 = vadd.f32 %v3344, %v3400
      %v3402 = vpop.f32.mrf.mxu0
      %3403 = vmatprep.mubr.bf16.mxu0 0
      %3404 = vmatmul.mubr.bf16.gmra.mxu0 %v3361
      %v3405 = vpop.f32.mrf.mxu0
      %v3406 = vadd.f32 %v3344, %v3405
      %v3407 = vpop.f32.mrf.mxu0
      %v3408 = vpop.f32.mrf.mxu0
      %v3409 = vadd.f32 %v3344, %v3408
      %v3410 = vpop.f32.mrf.mxu0
      %3411 = vdwg.mxu0
      %v3412 = vadd.f32 %v3398, %v3107
      %v3413 = vadd.f32 %v3401, %v3153
      %v3414 = vadd.f32 %v3406, %v3199
      %v3415 = vadd.f32 %v3409, %v3245
      %v3416 = vld [vmem:[%s3 + $0x8] sm:$0x1]
      %v3417 = vld [vmem:[%s3 + $0x9] sm:$0x1]
      %3419 = vset.pattern.permute.xlu0 0
      %3420 = vperm.xlu0 %3419, %v3417
      %v3421 = vpop.permute.xlu0 %3420
      %v3424 = vsel %vm233, %v3416, 0
      %v3427 = vsel %vm233, %v3412, 0
      %v3430 = vsel %vm233, %v3413, 0
      %v3433 = vsel %vm233, %v3414, 0
      %v3436 = vsel %vm233, %v3415, 0
      %3438 = vmatprep.subr.mxu0 0.0
      %3439 = vmatpush1.xpose.msra.mxu0 0.0
      %3440 = vmatprep.subr.mxu0 0.0
      %3441 = vmatpush1.xpose.msra.mxu0 0.0
      %3442 = vmatprep.subr.mxu0 0.0
      %3443 = vmatpush1.xpose.msra.mxu0 0.0
      %3444 = vmatprep.subr.mxu0 0.0
      %3445 = vmatpush1.xpose.msra.mxu0 0.0
      %3446 = vmatprep.subr.mxu0 0.0
      %3447 = vmatpush1.xpose.msra.mxu0 0.0
      %3448 = vmatprep.subr.mxu0 0.0
      %3449 = vmatpush1.xpose.msra.mxu0 0.0
      %3450 = vmatprep.subr.mxu0 0.0
      %3451 = vmatpush1.xpose.msra.mxu0 0.0
      %3452 = vmatprep.subr.mxu0 0.0
      %3453 = vmatpush1.xpose.msra.mxu0 0.0
      %3454 = vmatprep.subr.mxu0 0.0
      %3455 = vmatpush1.xpose.msra.mxu0 0.0
      %3456 = vmatprep.subr.mxu0 0.0
      %3457 = vmatpush1.xpose.msra.mxu0 0.0
      %3458 = vmatprep.subr.mxu0 0.0
      %3459 = vmatpush1.xpose.msra.mxu0 0.0
      %3460 = vmatprep.subr.mxu0 0.0
      %3461 = vmatpush1.xpose.msra.mxu0 0.0
      %3462 = vmatprep.subr.mxu0 0.0
      %3463 = vmatpush1.xpose.msra.mxu0 %v3436
      %3464 = vmatprep.subr.mxu0 0.0
      %3465 = vmatpush1.xpose.msra.mxu0 %v3433
      %3466 = vmatprep.subr.mxu0 0.0
      %3467 = vmatpush1.xpose.msra.mxu0 %v3430
      %3468 = vmatprep.subr.mxu0 0.0
      %3469 = vmatpush1.xpose.msra.mxu0 %v3427
      %3470 = vmatprep.subr.mxu0 0.0
      %3471 = vmatpush2.xpose.msra.mxu0 0.0
      %3472 = vmatprep.subr.mxu0 0.0
      %3473 = vmatpush2.xpose.msra.mxu0 0.0
      %3474 = vmatprep.subr.mxu0 0.0
      %3475 = vmatpush2.xpose.msra.mxu0 0.0
      %3476 = vmatprep.subr.mxu0 0.0
      %3477 = vmatpush2.xpose.msra.mxu0 0.0
      %3478 = vmatprep.subr.mxu0 0.0
      %3479 = vmatpush2.xpose.msra.mxu0 0.0
      %3480 = vmatprep.subr.mxu0 0.0
      %3481 = vmatpush2.xpose.msra.mxu0 0.0
      %3482 = vmatprep.subr.mxu0 0.0
      %3483 = vmatpush2.xpose.msra.mxu0 0.0
      %3484 = vmatprep.subr.mxu0 0.0
      %3485 = vmatpush2.xpose.msra.mxu0 0.0
      %3486 = vmatprep.subr.mxu0 0.0
      %3487 = vmatpush2.xpose.msra.mxu0 0.0
      %3488 = vmatprep.subr.mxu0 0.0
      %3489 = vmatpush2.xpose.msra.mxu0 0.0
      %3490 = vmatprep.subr.mxu0 0.0
      %3491 = vmatpush2.xpose.msra.mxu0 0.0
      %3492 = vmatprep.subr.mxu0 0.0
      %3493 = vmatpush2.xpose.msra.mxu0 0.0
      %3494 = vmatprep.subr.mxu0 0.0
      %3495 = vmatpush2.xpose.msra.mxu0 0.0
      %3496 = vmatprep.subr.mxu0 0.0
      %3497 = vmatpush2.xpose.msra.mxu0 0.0
      %3498 = vmatprep.subr.mxu0 0.0
      %3499 = vmatpush2.xpose.msra.mxu0 0.0
      %3500 = vmatprep.subr.mxu0 0.0
      %3501 = vmatpush2.xpose.msra.mxu0 0.0
      %3502 = vmatprep.mubr.f32.mxu0 0.0
      %3503 = vmatmul.mubr.f32.gmra.mxu0 %v3424
      %v3504 = vpop.f32.mrf.mxu0
      %v3505 = vadd.f32 %v3421, %v3504
      %v3506 = vpop.f32.mrf.mxu0
      %3507 = vdwg.mxu0
      %v3508 = vxor.u32 %v3505, 2147483648
      %v3509 = vmul.f32 %v3508, 1.442695
      %v3510 = vpow.pop %v3509
      %v3511 = vadd.f32 %v3510, 1.0
      %v3512 = vrcp.pop %v3511
      %v3513 = vmul.f32 1.0, %v3512
      %3514 = vst [vmem:[%s195] sm:$0x1] 0.0
      %vm3515 = vcmask 253952
      %3516 = vst.msk [vmem:[%s195] sm:$0x1] %vm3515, %v3513
      %p3517 = scmp.lt.s32.totalorder %s15, 1
      %s3518 = scalar_select %p3517, %s15, 1
      %s3519 = scalar_lea.vmem %s4, %s3518
      // Predicated region
      $region37: #{classifier_encoder.1} parent=35 // pred_check
        %p3520 = pneg %p122
      $region38: #{classifier_encoder.1} parent=35 // pred_check_branch
        %3522 = sbr.rel (%p3520) target = $region40
      $region39: #{classifier_encoder.1} parent=35 // pred_region
        _
      $region40: #{classifier_encoder.1} parent=35 // pred_fallthru
        _
    $region36: #{classifier_encoder.1} parent=5 // pred_fallthru
      _
    %p3523 = scmp.le.s32.totalorder 2, %s10
    // Predicated region
    $region41: #{classifier_encoder.1} parent=5 // pred_check
      %p3524 = pneg %p3523
    $region42: #{classifier_encoder.1} parent=5 // pred_check_branch
      %3526 = sbr.rel (%p3524) target = $region44
    $region43: #{classifier_encoder.1} parent=5 // pred_region
      %s3527 = ssub.s32 %s10, 2
      // Predicated region
      $region45: #{classifier_encoder.1} parent=43 // pred_check
        %p3528 = pneg %p128
      $region46: #{classifier_encoder.1} parent=43 // pred_check_branch
        %3530 = sbr.rel (%p3528) target = $region48
      $region47: #{classifier_encoder.1} parent=43 // pred_region
        %p3531 = scmp.lt.s32.totalorder %s16, 1
        %s3532 = scalar_select %p3531, %s16, 1
        %s3533 = scalar_lea.vmem %s4, %s3532
      $region48: #{classifier_encoder.1} parent=43 // pred_fallthru
        _
    $region44: #{classifier_encoder.1} parent=5 // pred_fallthru
      _
  $region6: #{classifier_encoder.1} parent=0 // loop_footer
    %s14 = sadd.s32 1, %s10
  $region7: #{classifier_encoder.1} parent=0 // loop_footer_branch
    %9 = sbr.rel target = $region3
  $region8: #{classifier_encoder.1} parent=0 // loop_exit
    _

</llo_original>
